<compile_context>
chip_gen: v7x
topology: tpu7x:2x2x1
jax: 0.10.0
libtpu: 0.0.40
codegen_flags: <defaults>
</compile_context>

<pallas_src>
import functools

import jax
import jax.numpy as jnp
import numpy as np
from jax import lax
from jax.experimental import pallas as pl
from jax.experimental.pallas import tpu as pltpu

EPS = 1e-5  # InstanceNorm3d default eps


# ------------------------------------------------------------------ tap tables
def _make_taps(D, H, W):
    """27 boundary masks (27, 1, S) f32 + flat lane shifts, tap = kd*9 + kh*3 + kw."""
    S = D * H * W
    s = np.arange(S)
    d_idx, h_idx, w_idx = s // (H * W), (s // W) % H, s % W
    masks = np.empty((27, 1, S), np.float32)
    shifts = []
    t = 0
    for dd in (-1, 0, 1):
        for dh in (-1, 0, 1):
            for dw in (-1, 0, 1):
                shifts.append(dd * H * W + dh * W + dw)
                valid = ((d_idx + dd >= 0) & (d_idx + dd < D) &
                         (h_idx + dh >= 0) & (h_idx + dh < H) &
                         (w_idx + dw >= 0) & (w_idx + dw < W))
                masks[t, 0, :] = valid
                t += 1
    return jnp.asarray(masks), tuple(shifts)


# ------------------------------------------------------------------ fused kernel
def _basic_block_kernel(x_ref, mask_ref, w1_ref, w2_ref, gb_ref, o_ref, stack_ref,
                        *, S, shifts):
    C = o_ref.shape[1]
    x = x_ref[0]          # (C, S) f32 — identity and conv1 input
    gb = gb_ref[...]      # (2, C, 2) f32 — [norm][channel][{gamma, beta}]

    def conv3x3x3(inp, w_ref_):
        # Build the (27*C, S) bf16 stack of masked, lane-rotated copies, then one
        # MXU dot: y[o, s] = sum_{t, c} Wflat[o, t*C + c] * stack[t*C + c, s].
        for t, raw in enumerate(shifts):
            if raw == 0:
                tap = inp                                       # center: mask == 1
            else:
                tap = pltpu.roll(inp, shift=(-raw) % S, axis=1) * mask_ref[t]
            stack_ref[pl.ds(t * C, C), :] = tap.astype(jnp.bfloat16)
        return jnp.dot(w_ref_[...], stack_ref[...],
                       preferred_element_type=jnp.float32)

    def inorm_affine(y, g, b):
        # Per-channel stats over the spatial (lane) axis; affine folded into one FMA.
        inv_s = 1.0 / S
        mean = jnp.sum(y, axis=1, keepdims=True) * inv_s
        var = jnp.maximum(jnp.sum(y * y, axis=1, keepdims=True) * inv_s
                          - mean * mean, 0.0)
        scale = g * lax.rsqrt(var + EPS)
        shift = b - mean * scale
        return y * scale + shift

    # NOTE: conv biases b1/b2 feed directly into InstanceNorm and are exactly
    # cancelled by the per-channel mean subtraction, so they are not applied here.
    h = jnp.maximum(inorm_affine(conv3x3x3(x, w1_ref),
                                 gb[0, :, 0:1], gb[0, :, 1:2]), 0.0)
    r = inorm_affine(conv3x3x3(h, w2_ref), gb[1, :, 0:1], gb[1, :, 1:2])
    o_ref[0] = jnp.maximum(x + r, 0.0).astype(o_ref.dtype)


# ------------------------------------------------------------------ wrapper
def basic_block_3d(x, params):
    """x: (B, C, D, H, W) float32 -> (B, C, D, H, W) float32."""
    B, C, D, H, W = x.shape
    S = D * H * W
    assert S % 128 == 0, "flattened spatial volume must be lane-aligned"

    # Flattened conv weights: Wflat[o, t*C + i] = w[o, i, kd, kh, kw], t = kd*9+kh*3+kw.
    def flat(w):
        return jnp.transpose(w, (0, 2, 3, 4, 1)).reshape(C, 27 * C).astype(jnp.bfloat16)

    w1f, w2f = flat(params["w1"]), flat(params["w2"])
    gb = jnp.stack([jnp.stack([params["g1"], params["be1"]], axis=1),
                    jnp.stack([params["g2"], params["be2"]], axis=1)], axis=0)  # (2,C,2)

    masks, shifts = _make_taps(D, H, W)

    kernel = functools.partial(_basic_block_kernel, S=S, shifts=shifts)
    out = pl.pallas_call(
        kernel,
        out_shape=jax.ShapeDtypeStruct((B, C, S), x.dtype),
        grid_spec=pltpu.PrefetchScalarGridSpec(
            num_scalar_prefetch=0,
            grid=(B,),
            in_specs=[
                pl.BlockSpec((1, C, S), lambda i: (i, 0, 0)),       # x (per batch)
                pl.BlockSpec((27, 1, S), lambda i: (0, 0, 0)),      # boundary masks
                pl.BlockSpec((C, 27 * C), lambda i: (0, 0)),        # conv1 weights (bf16)
                pl.BlockSpec((C, 27 * C), lambda i: (0, 0)),        # conv2 weights (bf16)
                pl.BlockSpec((2, C, 2), lambda i: (0, 0, 0)),       # IN gamma/beta
            ],
            out_specs=pl.BlockSpec((1, C, S), lambda i: (i, 0, 0)),
            scratch_shapes=[pltpu.VMEM((27 * C, S), jnp.bfloat16)],  # im2col-style stack
        ),
        compiler_params=pltpu.CompilerParams(
            dimension_semantics=("parallel",)),
    )(x.reshape(B, C, S), masks, w1f, w2f, gb)
    return out.reshape(B, C, D, H, W)


# ------------------------------------------------------------------ parameters
def init_params(key, C):
    keys = iter(jax.random.split(key, 8))

    def w(shape, scale=0.1):
        return jax.random.normal(next(keys), shape, jnp.float32) * scale

    return {
        "w1": w((C, C, 3, 3, 3)), "b1": w((C,)),
        "g1": 1.0 + w((C,)), "be1": w((C,)),
        "w2": w((C, C, 3, 3, 3)), "b2": w((C,)),
        "g2": 1.0 + w((C,)), "be2": w((C,)),
    }


# ------------------------------------------------------------------ pure-JAX reference
def _ref_forward(x, params):
    P = lax.Precision.HIGHEST

    def conv3d(x_, w, b):
        y = lax.conv_general_dilated(
            x_, w, window_strides=(1, 1, 1),
            padding=((1, 1), (1, 1), (1, 1)),
            dimension_numbers=("NCDHW", "OIDHW", "NCDHW"),
            precision=P)
        return y + b[None, :, None, None, None]

    def inorm(y, g, b):
        m = jnp.mean(y, axis=(2, 3, 4), keepdims=True)
        v = jnp.mean(jnp.square(y - m), axis=(2, 3, 4), keepdims=True)
        yh = (y - m) * lax.rsqrt(v + EPS)
        return yh * g[None, :, None, None, None] + b[None, :, None, None, None]

    h = jax.nn.relu(inorm(conv3d(x, params["w1"], params["b1"]),
                          params["g1"], params["be1"]))
    r = inorm(conv3d(h, params["w2"], params["b2"]), params["g2"], params["be2"])
    return jax.nn.relu(x + r)


# ------------------------------------------------------------------ main
if __name__ == "__main__":
    key = jax.random.PRNGKey(0)
    kx, kp = jax.random.split(key)

    # in_shape = (C, H, W, Z) = (8, 8, 8, 8); batch = 2 (feeds both v7x TCs)
    B, C, D, H, W = 2, 8, 8, 8, 8
    x = jax.random.normal(kx, (B, C, D, H, W), jnp.float32)
    params = init_params(kp, C)

    fwd = jax.jit(basic_block_3d)
    out = jax.block_until_ready(fwd(x, params))

    assert out.shape == (B, C, D, H, W)
    ref = _ref_forward(x, params)
    # Tolerance accounts for bf16 MXU operands (stats / norm / residual stay in f32).
    np.testing.assert_allclose(np.asarray(out), np.asarray(ref), rtol=2e-2, atol=2e-2)
    print("KERNEL_OK")
</pallas_src>

<mosaic_0001>
module attributes {stable_mosaic.version = 11 : i64} {
  func.func @_basic_block_kernel(%arg0: i32, %arg1: memref<1x8x512xf32, #tpu.memory_space<vmem>>, %arg2: memref<27x1x512xf32, #tpu.memory_space<vmem>>, %arg3: memref<8x216xbf16, #tpu.memory_space<vmem>>, %arg4: memref<8x216xbf16, #tpu.memory_space<vmem>>, %arg5: memref<2x8x2xf32, #tpu.memory_space<vmem>>, %arg6: memref<1x8x512xf32, #tpu.memory_space<vmem>>, %arg7: memref<216x512xbf16, #tpu.memory_space<vmem>>) attributes {dimension_semantics = [#tpu.dimension_semantics<parallel>], iteration_bounds = array<i64: 2>, scalar_prefetch = 0 : i64, scratch_operands = 1 : i64, tpu.core_type = #tpu.core_type<tc>, window_params = [{transform_indices = @transform_0, window_bounds = array<i64: 1, 8, 512>}, {pipeline_mode = #tpu.pipeline_mode<synchronous>, transform_indices = @transform_1, window_bounds = array<i64: 27, 1, 512>}, {pipeline_mode = #tpu.pipeline_mode<synchronous>, transform_indices = @transform_2, window_bounds = array<i64: 8, 216>}, {pipeline_mode = #tpu.pipeline_mode<synchronous>, transform_indices = @transform_3, window_bounds = array<i64: 8, 216>}, {pipeline_mode = #tpu.pipeline_mode<synchronous>, transform_indices = @transform_4, window_bounds = array<i64: 2, 8, 2>}, {transform_indices = @transform_5, window_bounds = array<i64: 1, 8, 512>}]} {
    %c0 = arith.constant 0 : index
    %c0_0 = arith.constant 0 : index
    %c0_1 = arith.constant 0 : index
    %0 = vector.load %arg1[%c0, %c0_0, %c0_1] : memref<1x8x512xf32, #tpu.memory_space<vmem>>, vector<1x8x512xf32>
    %1 = vector.shape_cast %0 : vector<1x8x512xf32> to vector<8x512xf32>
    %c0_2 = arith.constant 0 : index
    %c0_3 = arith.constant 0 : index
    %c0_4 = arith.constant 0 : index
    %2 = vector.load %arg5[%c0_2, %c0_3, %c0_4] : memref<2x8x2xf32, #tpu.memory_space<vmem>>, vector<2x8x2xf32>
    %c73_i32 = arith.constant 73 : i32
    %3 = tpu.dynamic_rotate %1 by %c73_i32 dim 1 : vector<8x512xf32>, i32 -> vector<8x512xf32>
    %c0_5 = arith.constant 0 : index
    %c0_6 = arith.constant 0 : index
    %c0_7 = arith.constant 0 : index
    %4 = vector.load %arg2[%c0_5, %c0_6, %c0_7] : memref<27x1x512xf32, #tpu.memory_space<vmem>>, vector<1x1x512xf32>
    %5 = vector.shape_cast %4 : vector<1x1x512xf32> to vector<1x512xf32>
    %6 = vector.broadcast %5 : vector<1x512xf32> to vector<8x512xf32>
    %7 = arith.mulf %3, %6 : vector<8x512xf32>
    %8 = arith.truncf %7 : vector<8x512xf32> to vector<8x512xbf16>
    %c0_8 = arith.constant 0 : index
    %c0_9 = arith.constant 0 : index
    %9 = vector.load %arg7[%c0_8, %c0_9] : memref<216x512xbf16, #tpu.memory_space<vmem>>, vector<8x512xbf16>
    tpu.vector_store %arg7[%c0_8, %c0_9], %8 {strides = array<i32>} : memref<216x512xbf16, #tpu.memory_space<vmem>>, vector<8x512xbf16>,
    %c72_i32 = arith.constant 72 : i32
    %10 = tpu.dynamic_rotate %1 by %c72_i32 dim 1 : vector<8x512xf32>, i32 -> vector<8x512xf32>
    %c1 = arith.constant 1 : index
    %c0_10 = arith.constant 0 : index
    %c0_11 = arith.constant 0 : index
    %11 = vector.load %arg2[%c1, %c0_10, %c0_11] : memref<27x1x512xf32, #tpu.memory_space<vmem>>, vector<1x1x512xf32>
    %12 = vector.shape_cast %11 : vector<1x1x512xf32> to vector<1x512xf32>
    %13 = vector.broadcast %12 : vector<1x512xf32> to vector<8x512xf32>
    %14 = arith.mulf %10, %13 : vector<8x512xf32>
    %15 = arith.truncf %14 : vector<8x512xf32> to vector<8x512xbf16>
    %c8 = arith.constant 8 : index
    %c0_12 = arith.constant 0 : index
    %16 = vector.load %arg7[%c8, %c0_12] : memref<216x512xbf16, #tpu.memory_space<vmem>>, vector<8x512xbf16>
    tpu.vector_store %arg7[%c8, %c0_12], %15 {strides = array<i32>} : memref<216x512xbf16, #tpu.memory_space<vmem>>, vector<8x512xbf16>,
    %c71_i32 = arith.constant 71 : i32
    %17 = tpu.dynamic_rotate %1 by %c71_i32 dim 1 : vector<8x512xf32>, i32 -> vector<8x512xf32>
    %c2 = arith.constant 2 : index
    %c0_13 = arith.constant 0 : index
    %c0_14 = arith.constant 0 : index
    %18 = vector.load %arg2[%c2, %c0_13, %c0_14] : memref<27x1x512xf32, #tpu.memory_space<vmem>>, vector<1x1x512xf32>
    %19 = vector.shape_cast %18 : vector<1x1x512xf32> to vector<1x512xf32>
    %20 = vector.broadcast %19 : vector<1x512xf32> to vector<8x512xf32>
    %21 = arith.mulf %17, %20 : vector<8x512xf32>
    %22 = arith.truncf %21 : vector<8x512xf32> to vector<8x512xbf16>
    %c16 = arith.constant 16 : index
    %c0_15 = arith.constant 0 : index
    %23 = vector.load %arg7[%c16, %c0_15] : memref<216x512xbf16, #tpu.memory_space<vmem>>, vector<8x512xbf16>
    tpu.vector_store %arg7[%c16, %c0_15], %22 {strides = array<i32>} : memref<216x512xbf16, #tpu.memory_space<vmem>>, vector<8x512xbf16>,
    %c65_i32 = arith.constant 65 : i32
    %24 = tpu.dynamic_rotate %1 by %c65_i32 dim 1 : vector<8x512xf32>, i32 -> vector<8x512xf32>
    %c3 = arith.constant 3 : index
    %c0_16 = arith.constant 0 : index
    %c0_17 = arith.constant 0 : index
    %25 = vector.load %arg2[%c3, %c0_16, %c0_17] : memref<27x1x512xf32, #tpu.memory_space<vmem>>, vector<1x1x512xf32>
    %26 = vector.shape_cast %25 : vector<1x1x512xf32> to vector<1x512xf32>
    %27 = vector.broadcast %26 : vector<1x512xf32> to vector<8x512xf32>
    %28 = arith.mulf %24, %27 : vector<8x512xf32>
    %29 = arith.truncf %28 : vector<8x512xf32> to vector<8x512xbf16>
    %c24 = arith.constant 24 : index
    %c0_18 = arith.constant 0 : index
    %30 = vector.load %arg7[%c24, %c0_18] : memref<216x512xbf16, #tpu.memory_space<vmem>>, vector<8x512xbf16>
    tpu.vector_store %arg7[%c24, %c0_18], %29 {strides = array<i32>} : memref<216x512xbf16, #tpu.memory_space<vmem>>, vector<8x512xbf16>,
    %c64_i32 = arith.constant 64 : i32
    %31 = tpu.dynamic_rotate %1 by %c64_i32 dim 1 : vector<8x512xf32>, i32 -> vector<8x512xf32>
    %c4 = arith.constant 4 : index
    %c0_19 = arith.constant 0 : index
    %c0_20 = arith.constant 0 : index
    %32 = vector.load %arg2[%c4, %c0_19, %c0_20] : memref<27x1x512xf32, #tpu.memory_space<vmem>>, vector<1x1x512xf32>
    %33 = vector.shape_cast %32 : vector<1x1x512xf32> to vector<1x512xf32>
    %34 = vector.broadcast %33 : vector<1x512xf32> to vector<8x512xf32>
    %35 = arith.mulf %31, %34 : vector<8x512xf32>
    %36 = arith.truncf %35 : vector<8x512xf32> to vector<8x512xbf16>
    %c32 = arith.constant 32 : index
    %c0_21 = arith.constant 0 : index
    %37 = vector.load %arg7[%c32, %c0_21] : memref<216x512xbf16, #tpu.memory_space<vmem>>, vector<8x512xbf16>
    tpu.vector_store %arg7[%c32, %c0_21], %36 {strides = array<i32>} : memref<216x512xbf16, #tpu.memory_space<vmem>>, vector<8x512xbf16>,
    %c63_i32 = arith.constant 63 : i32
    %38 = tpu.dynamic_rotate %1 by %c63_i32 dim 1 : vector<8x512xf32>, i32 -> vector<8x512xf32>
    %c5 = arith.constant 5 : index
    %c0_22 = arith.constant 0 : index
    %c0_23 = arith.constant 0 : index
    %39 = vector.load %arg2[%c5, %c0_22, %c0_23] : memref<27x1x512xf32, #tpu.memory_space<vmem>>, vector<1x1x512xf32>
    %40 = vector.shape_cast %39 : vector<1x1x512xf32> to vector<1x512xf32>
    %41 = vector.broadcast %40 : vector<1x512xf32> to vector<8x512xf32>
    %42 = arith.mulf %38, %41 : vector<8x512xf32>
    %43 = arith.truncf %42 : vector<8x512xf32> to vector<8x512xbf16>
    %c40 = arith.constant 40 : index
    %c0_24 = arith.constant 0 : index
    %44 = vector.load %arg7[%c40, %c0_24] : memref<216x512xbf16, #tpu.memory_space<vmem>>, vector<8x512xbf16>
    tpu.vector_store %arg7[%c40, %c0_24], %43 {strides = array<i32>} : memref<216x512xbf16, #tpu.memory_space<vmem>>, vector<8x512xbf16>,
    %c57_i32 = arith.constant 57 : i32
    %45 = tpu.dynamic_rotate %1 by %c57_i32 dim 1 : vector<8x512xf32>, i32 -> vector<8x512xf32>
    %c6 = arith.constant 6 : index
    %c0_25 = arith.constant 0 : index
    %c0_26 = arith.constant 0 : index
    %46 = vector.load %arg2[%c6, %c0_25, %c0_26] : memref<27x1x512xf32, #tpu.memory_space<vmem>>, vector<1x1x512xf32>
    %47 = vector.shape_cast %46 : vector<1x1x512xf32> to vector<1x512xf32>
    %48 = vector.broadcast %47 : vector<1x512xf32> to vector<8x512xf32>
    %49 = arith.mulf %45, %48 : vector<8x512xf32>
    %50 = arith.truncf %49 : vector<8x512xf32> to vector<8x512xbf16>
    %c48 = arith.constant 48 : index
    %c0_27 = arith.constant 0 : index
    %51 = vector.load %arg7[%c48, %c0_27] : memref<216x512xbf16, #tpu.memory_space<vmem>>, vector<8x512xbf16>
    tpu.vector_store %arg7[%c48, %c0_27], %50 {strides = array<i32>} : memref<216x512xbf16, #tpu.memory_space<vmem>>, vector<8x512xbf16>,
    %c56_i32 = arith.constant 56 : i32
    %52 = tpu.dynamic_rotate %1 by %c56_i32 dim 1 : vector<8x512xf32>, i32 -> vector<8x512xf32>
    %c7 = arith.constant 7 : index
    %c0_28 = arith.constant 0 : index
    %c0_29 = arith.constant 0 : index
    %53 = vector.load %arg2[%c7, %c0_28, %c0_29] : memref<27x1x512xf32, #tpu.memory_space<vmem>>, vector<1x1x512xf32>
    %54 = vector.shape_cast %53 : vector<1x1x512xf32> to vector<1x512xf32>
    %55 = vector.broadcast %54 : vector<1x512xf32> to vector<8x512xf32>
    %56 = arith.mulf %52, %55 : vector<8x512xf32>
    %57 = arith.truncf %56 : vector<8x512xf32> to vector<8x512xbf16>
    %c56 = arith.constant 56 : index
    %c0_30 = arith.constant 0 : index
    %58 = vector.load %arg7[%c56, %c0_30] : memref<216x512xbf16, #tpu.memory_space<vmem>>, vector<8x512xbf16>
    tpu.vector_store %arg7[%c56, %c0_30], %57 {strides = array<i32>} : memref<216x512xbf16, #tpu.memory_space<vmem>>, vector<8x512xbf16>,
    %c55_i32 = arith.constant 55 : i32
    %59 = tpu.dynamic_rotate %1 by %c55_i32 dim 1 : vector<8x512xf32>, i32 -> vector<8x512xf32>
    %c8_31 = arith.constant 8 : index
    %c0_32 = arith.constant 0 : index
    %c0_33 = arith.constant 0 : index
    %60 = vector.load %arg2[%c8_31, %c0_32, %c0_33] : memref<27x1x512xf32, #tpu.memory_space<vmem>>, vector<1x1x512xf32>
    %61 = vector.shape_cast %60 : vector<1x1x512xf32> to vector<1x512xf32>
    %62 = vector.broadcast %61 : vector<1x512xf32> to vector<8x512xf32>
    %63 = arith.mulf %59, %62 : vector<8x512xf32>
    %64 = arith.truncf %63 : vector<8x512xf32> to vector<8x512xbf16>
    %c64 = arith.constant 64 : index
    %c0_34 = arith.constant 0 : index
    %65 = vector.load %arg7[%c64, %c0_34] : memref<216x512xbf16, #tpu.memory_space<vmem>>, vector<8x512xbf16>
    tpu.vector_store %arg7[%c64, %c0_34], %64 {strides = array<i32>} : memref<216x512xbf16, #tpu.memory_space<vmem>>, vector<8x512xbf16>,
    %c9_i32 = arith.constant 9 : i32
    %66 = tpu.dynamic_rotate %1 by %c9_i32 dim 1 : vector<8x512xf32>, i32 -> vector<8x512xf32>
    %c9 = arith.constant 9 : index
    %c0_35 = arith.constant 0 : index
    %c0_36 = arith.constant 0 : index
    %67 = vector.load %arg2[%c9, %c0_35, %c0_36] : memref<27x1x512xf32, #tpu.memory_space<vmem>>, vector<1x1x512xf32>
    %68 = vector.shape_cast %67 : vector<1x1x512xf32> to vector<1x512xf32>
    %69 = vector.broadcast %68 : vector<1x512xf32> to vector<8x512xf32>
    %70 = arith.mulf %66, %69 : vector<8x512xf32>
    %71 = arith.truncf %70 : vector<8x512xf32> to vector<8x512xbf16>
    %c72 = arith.constant 72 : index
    %c0_37 = arith.constant 0 : index
    %72 = vector.load %arg7[%c72, %c0_37] : memref<216x512xbf16, #tpu.memory_space<vmem>>, vector<8x512xbf16>
    tpu.vector_store %arg7[%c72, %c0_37], %71 {strides = array<i32>} : memref<216x512xbf16, #tpu.memory_space<vmem>>, vector<8x512xbf16>,
    %c8_i32 = arith.constant 8 : i32
    %73 = tpu.dynamic_rotate %1 by %c8_i32 dim 1 : vector<8x512xf32>, i32 -> vector<8x512xf32>
    %c10 = arith.constant 10 : index
    %c0_38 = arith.constant 0 : index
    %c0_39 = arith.constant 0 : index
    %74 = vector.load %arg2[%c10, %c0_38, %c0_39] : memref<27x1x512xf32, #tpu.memory_space<vmem>>, vector<1x1x512xf32>
    %75 = vector.shape_cast %74 : vector<1x1x512xf32> to vector<1x512xf32>
    %76 = vector.broadcast %75 : vector<1x512xf32> to vector<8x512xf32>
    %77 = arith.mulf %73, %76 : vector<8x512xf32>
    %78 = arith.truncf %77 : vector<8x512xf32> to vector<8x512xbf16>
    %c80 = arith.constant 80 : index
    %c0_40 = arith.constant 0 : index
    %79 = vector.load %arg7[%c80, %c0_40] : memref<216x512xbf16, #tpu.memory_space<vmem>>, vector<8x512xbf16>
    tpu.vector_store %arg7[%c80, %c0_40], %78 {strides = array<i32>} : memref<216x512xbf16, #tpu.memory_space<vmem>>, vector<8x512xbf16>,
    %c7_i32 = arith.constant 7 : i32
    %80 = tpu.dynamic_rotate %1 by %c7_i32 dim 1 : vector<8x512xf32>, i32 -> vector<8x512xf32>
    %c11 = arith.constant 11 : index
    %c0_41 = arith.constant 0 : index
    %c0_42 = arith.constant 0 : index
    %81 = vector.load %arg2[%c11, %c0_41, %c0_42] : memref<27x1x512xf32, #tpu.memory_space<vmem>>, vector<1x1x512xf32>
    %82 = vector.shape_cast %81 : vector<1x1x512xf32> to vector<1x512xf32>
    %83 = vector.broadcast %82 : vector<1x512xf32> to vector<8x512xf32>
    %84 = arith.mulf %80, %83 : vector<8x512xf32>
    %85 = arith.truncf %84 : vector<8x512xf32> to vector<8x512xbf16>
    %c88 = arith.constant 88 : index
    %c0_43 = arith.constant 0 : index
    %86 = vector.load %arg7[%c88, %c0_43] : memref<216x512xbf16, #tpu.memory_space<vmem>>, vector<8x512xbf16>
    tpu.vector_store %arg7[%c88, %c0_43], %85 {strides = array<i32>} : memref<216x512xbf16, #tpu.memory_space<vmem>>, vector<8x512xbf16>,
    %c1_i32 = arith.constant 1 : i32
    %87 = tpu.dynamic_rotate %1 by %c1_i32 dim 1 : vector<8x512xf32>, i32 -> vector<8x512xf32>
    %c12 = arith.constant 12 : index
    %c0_44 = arith.constant 0 : index
    %c0_45 = arith.constant 0 : index
    %88 = vector.load %arg2[%c12, %c0_44, %c0_45] : memref<27x1x512xf32, #tpu.memory_space<vmem>>, vector<1x1x512xf32>
    %89 = vector.shape_cast %88 : vector<1x1x512xf32> to vector<1x512xf32>
    %90 = vector.broadcast %89 : vector<1x512xf32> to vector<8x512xf32>
    %91 = arith.mulf %87, %90 : vector<8x512xf32>
    %92 = arith.truncf %91 : vector<8x512xf32> to vector<8x512xbf16>
    %c96 = arith.constant 96 : index
    %c0_46 = arith.constant 0 : index
    %93 = vector.load %arg7[%c96, %c0_46] : memref<216x512xbf16, #tpu.memory_space<vmem>>, vector<8x512xbf16>
    tpu.vector_store %arg7[%c96, %c0_46], %92 {strides = array<i32>} : memref<216x512xbf16, #tpu.memory_space<vmem>>, vector<8x512xbf16>,
    %94 = arith.truncf %1 : vector<8x512xf32> to vector<8x512xbf16>
    %c104 = arith.constant 104 : index
    %c0_47 = arith.constant 0 : index
    %95 = vector.load %arg7[%c104, %c0_47] : memref<216x512xbf16, #tpu.memory_space<vmem>>, vector<8x512xbf16>
    tpu.vector_store %arg7[%c104, %c0_47], %94 {strides = array<i32>} : memref<216x512xbf16, #tpu.memory_space<vmem>>, vector<8x512xbf16>,
    %c511_i32 = arith.constant 511 : i32
    %96 = tpu.dynamic_rotate %1 by %c511_i32 dim 1 : vector<8x512xf32>, i32 -> vector<8x512xf32>
    %c14 = arith.constant 14 : index
    %c0_48 = arith.constant 0 : index
    %c0_49 = arith.constant 0 : index
    %97 = vector.load %arg2[%c14, %c0_48, %c0_49] : memref<27x1x512xf32, #tpu.memory_space<vmem>>, vector<1x1x512xf32>
    %98 = vector.shape_cast %97 : vector<1x1x512xf32> to vector<1x512xf32>
    %99 = vector.broadcast %98 : vector<1x512xf32> to vector<8x512xf32>
    %100 = arith.mulf %96, %99 : vector<8x512xf32>
    %101 = arith.truncf %100 : vector<8x512xf32> to vector<8x512xbf16>
    %c112 = arith.constant 112 : index
    %c0_50 = arith.constant 0 : index
    %102 = vector.load %arg7[%c112, %c0_50] : memref<216x512xbf16, #tpu.memory_space<vmem>>, vector<8x512xbf16>
    tpu.vector_store %arg7[%c112, %c0_50], %101 {strides = array<i32>} : memref<216x512xbf16, #tpu.memory_space<vmem>>, vector<8x512xbf16>,
    %c505_i32 = arith.constant 505 : i32
    %103 = tpu.dynamic_rotate %1 by %c505_i32 dim 1 : vector<8x512xf32>, i32 -> vector<8x512xf32>
    %c15 = arith.constant 15 : index
    %c0_51 = arith.constant 0 : index
    %c0_52 = arith.constant 0 : index
    %104 = vector.load %arg2[%c15, %c0_51, %c0_52] : memref<27x1x512xf32, #tpu.memory_space<vmem>>, vector<1x1x512xf32>
    %105 = vector.shape_cast %104 : vector<1x1x512xf32> to vector<1x512xf32>
    %106 = vector.broadcast %105 : vector<1x512xf32> to vector<8x512xf32>
    %107 = arith.mulf %103, %106 : vector<8x512xf32>
    %108 = arith.truncf %107 : vector<8x512xf32> to vector<8x512xbf16>
    %c120 = arith.constant 120 : index
    %c0_53 = arith.constant 0 : index
    %109 = vector.load %arg7[%c120, %c0_53] : memref<216x512xbf16, #tpu.memory_space<vmem>>, vector<8x512xbf16>
    tpu.vector_store %arg7[%c120, %c0_53], %108 {strides = array<i32>} : memref<216x512xbf16, #tpu.memory_space<vmem>>, vector<8x512xbf16>,
    %c504_i32 = arith.constant 504 : i32
    %110 = tpu.dynamic_rotate %1 by %c504_i32 dim 1 : vector<8x512xf32>, i32 -> vector<8x512xf32>
    %c16_54 = arith.constant 16 : index
    %c0_55 = arith.constant 0 : index
    %c0_56 = arith.constant 0 : index
    %111 = vector.load %arg2[%c16_54, %c0_55, %c0_56] : memref<27x1x512xf32, #tpu.memory_space<vmem>>, vector<1x1x512xf32>
    %112 = vector.shape_cast %111 : vector<1x1x512xf32> to vector<1x512xf32>
    %113 = vector.broadcast %112 : vector<1x512xf32> to vector<8x512xf32>
    %114 = arith.mulf %110, %113 : vector<8x512xf32>
    %115 = arith.truncf %114 : vector<8x512xf32> to vector<8x512xbf16>
    %c128 = arith.constant 128 : index
    %c0_57 = arith.constant 0 : index
    %116 = vector.load %arg7[%c128, %c0_57] : memref<216x512xbf16, #tpu.memory_space<vmem>>, vector<8x512xbf16>
    tpu.vector_store %arg7[%c128, %c0_57], %115 {strides = array<i32>} : memref<216x512xbf16, #tpu.memory_space<vmem>>, vector<8x512xbf16>,
    %c503_i32 = arith.constant 503 : i32
    %117 = tpu.dynamic_rotate %1 by %c503_i32 dim 1 : vector<8x512xf32>, i32 -> vector<8x512xf32>
    %c17 = arith.constant 17 : index
    %c0_58 = arith.constant 0 : index
    %c0_59 = arith.constant 0 : index
    %118 = vector.load %arg2[%c17, %c0_58, %c0_59] : memref<27x1x512xf32, #tpu.memory_space<vmem>>, vector<1x1x512xf32>
    %119 = vector.shape_cast %118 : vector<1x1x512xf32> to vector<1x512xf32>
    %120 = vector.broadcast %119 : vector<1x512xf32> to vector<8x512xf32>
    %121 = arith.mulf %117, %120 : vector<8x512xf32>
    %122 = arith.truncf %121 : vector<8x512xf32> to vector<8x512xbf16>
    %c136 = arith.constant 136 : index
    %c0_60 = arith.constant 0 : index
    %123 = vector.load %arg7[%c136, %c0_60] : memref<216x512xbf16, #tpu.memory_space<vmem>>, vector<8x512xbf16>
    tpu.vector_store %arg7[%c136, %c0_60], %122 {strides = array<i32>} : memref<216x512xbf16, #tpu.memory_space<vmem>>, vector<8x512xbf16>,
    %c457_i32 = arith.constant 457 : i32
    %124 = tpu.dynamic_rotate %1 by %c457_i32 dim 1 : vector<8x512xf32>, i32 -> vector<8x512xf32>
    %c18 = arith.constant 18 : index
    %c0_61 = arith.constant 0 : index
    %c0_62 = arith.constant 0 : index
    %125 = vector.load %arg2[%c18, %c0_61, %c0_62] : memref<27x1x512xf32, #tpu.memory_space<vmem>>, vector<1x1x512xf32>
    %126 = vector.shape_cast %125 : vector<1x1x512xf32> to vector<1x512xf32>
    %127 = vector.broadcast %126 : vector<1x512xf32> to vector<8x512xf32>
    %128 = arith.mulf %124, %127 : vector<8x512xf32>
    %129 = arith.truncf %128 : vector<8x512xf32> to vector<8x512xbf16>
    %c144 = arith.constant 144 : index
    %c0_63 = arith.constant 0 : index
    %130 = vector.load %arg7[%c144, %c0_63] : memref<216x512xbf16, #tpu.memory_space<vmem>>, vector<8x512xbf16>
    tpu.vector_store %arg7[%c144, %c0_63], %129 {strides = array<i32>} : memref<216x512xbf16, #tpu.memory_space<vmem>>, vector<8x512xbf16>,
    %c456_i32 = arith.constant 456 : i32
    %131 = tpu.dynamic_rotate %1 by %c456_i32 dim 1 : vector<8x512xf32>, i32 -> vector<8x512xf32>
    %c19 = arith.constant 19 : index
    %c0_64 = arith.constant 0 : index
    %c0_65 = arith.constant 0 : index
    %132 = vector.load %arg2[%c19, %c0_64, %c0_65] : memref<27x1x512xf32, #tpu.memory_space<vmem>>, vector<1x1x512xf32>
    %133 = vector.shape_cast %132 : vector<1x1x512xf32> to vector<1x512xf32>
    %134 = vector.broadcast %133 : vector<1x512xf32> to vector<8x512xf32>
    %135 = arith.mulf %131, %134 : vector<8x512xf32>
    %136 = arith.truncf %135 : vector<8x512xf32> to vector<8x512xbf16>
    %c152 = arith.constant 152 : index
    %c0_66 = arith.constant 0 : index
    %137 = vector.load %arg7[%c152, %c0_66] : memref<216x512xbf16, #tpu.memory_space<vmem>>, vector<8x512xbf16>
    tpu.vector_store %arg7[%c152, %c0_66], %136 {strides = array<i32>} : memref<216x512xbf16, #tpu.memory_space<vmem>>, vector<8x512xbf16>,
    %c455_i32 = arith.constant 455 : i32
    %138 = tpu.dynamic_rotate %1 by %c455_i32 dim 1 : vector<8x512xf32>, i32 -> vector<8x512xf32>
    %c20 = arith.constant 20 : index
    %c0_67 = arith.constant 0 : index
    %c0_68 = arith.constant 0 : index
    %139 = vector.load %arg2[%c20, %c0_67, %c0_68] : memref<27x1x512xf32, #tpu.memory_space<vmem>>, vector<1x1x512xf32>
    %140 = vector.shape_cast %139 : vector<1x1x512xf32> to vector<1x512xf32>
    %141 = vector.broadcast %140 : vector<1x512xf32> to vector<8x512xf32>
    %142 = arith.mulf %138, %141 : vector<8x512xf32>
    %143 = arith.truncf %142 : vector<8x512xf32> to vector<8x512xbf16>
    %c160 = arith.constant 160 : index
    %c0_69 = arith.constant 0 : index
    %144 = vector.load %arg7[%c160, %c0_69] : memref<216x512xbf16, #tpu.memory_space<vmem>>, vector<8x512xbf16>
    tpu.vector_store %arg7[%c160, %c0_69], %143 {strides = array<i32>} : memref<216x512xbf16, #tpu.memory_space<vmem>>, vector<8x512xbf16>,
    %c449_i32 = arith.constant 449 : i32
    %145 = tpu.dynamic_rotate %1 by %c449_i32 dim 1 : vector<8x512xf32>, i32 -> vector<8x512xf32>
    %c21 = arith.constant 21 : index
    %c0_70 = arith.constant 0 : index
    %c0_71 = arith.constant 0 : index
    %146 = vector.load %arg2[%c21, %c0_70, %c0_71] : memref<27x1x512xf32, #tpu.memory_space<vmem>>, vector<1x1x512xf32>
    %147 = vector.shape_cast %146 : vector<1x1x512xf32> to vector<1x512xf32>
    %148 = vector.broadcast %147 : vector<1x512xf32> to vector<8x512xf32>
    %149 = arith.mulf %145, %148 : vector<8x512xf32>
    %150 = arith.truncf %149 : vector<8x512xf32> to vector<8x512xbf16>
    %c168 = arith.constant 168 : index
    %c0_72 = arith.constant 0 : index
    %151 = vector.load %arg7[%c168, %c0_72] : memref<216x512xbf16, #tpu.memory_space<vmem>>, vector<8x512xbf16>
    tpu.vector_store %arg7[%c168, %c0_72], %150 {strides = array<i32>} : memref<216x512xbf16, #tpu.memory_space<vmem>>, vector<8x512xbf16>,
    %c448_i32 = arith.constant 448 : i32
    %152 = tpu.dynamic_rotate %1 by %c448_i32 dim 1 : vector<8x512xf32>, i32 -> vector<8x512xf32>
    %c22 = arith.constant 22 : index
    %c0_73 = arith.constant 0 : index
    %c0_74 = arith.constant 0 : index
    %153 = vector.load %arg2[%c22, %c0_73, %c0_74] : memref<27x1x512xf32, #tpu.memory_space<vmem>>, vector<1x1x512xf32>
    %154 = vector.shape_cast %153 : vector<1x1x512xf32> to vector<1x512xf32>
    %155 = vector.broadcast %154 : vector<1x512xf32> to vector<8x512xf32>
    %156 = arith.mulf %152, %155 : vector<8x512xf32>
    %157 = arith.truncf %156 : vector<8x512xf32> to vector<8x512xbf16>
    %c176 = arith.constant 176 : index
    %c0_75 = arith.constant 0 : index
    %158 = vector.load %arg7[%c176, %c0_75] : memref<216x512xbf16, #tpu.memory_space<vmem>>, vector<8x512xbf16>
    tpu.vector_store %arg7[%c176, %c0_75], %157 {strides = array<i32>} : memref<216x512xbf16, #tpu.memory_space<vmem>>, vector<8x512xbf16>,
    %c447_i32 = arith.constant 447 : i32
    %159 = tpu.dynamic_rotate %1 by %c447_i32 dim 1 : vector<8x512xf32>, i32 -> vector<8x512xf32>
    %c23 = arith.constant 23 : index
    %c0_76 = arith.constant 0 : index
    %c0_77 = arith.constant 0 : index
    %160 = vector.load %arg2[%c23, %c0_76, %c0_77] : memref<27x1x512xf32, #tpu.memory_space<vmem>>, vector<1x1x512xf32>
    %161 = vector.shape_cast %160 : vector<1x1x512xf32> to vector<1x512xf32>
    %162 = vector.broadcast %161 : vector<1x512xf32> to vector<8x512xf32>
    %163 = arith.mulf %159, %162 : vector<8x512xf32>
    %164 = arith.truncf %163 : vector<8x512xf32> to vector<8x512xbf16>
    %c184 = arith.constant 184 : index
    %c0_78 = arith.constant 0 : index
    %165 = vector.load %arg7[%c184, %c0_78] : memref<216x512xbf16, #tpu.memory_space<vmem>>, vector<8x512xbf16>
    tpu.vector_store %arg7[%c184, %c0_78], %164 {strides = array<i32>} : memref<216x512xbf16, #tpu.memory_space<vmem>>, vector<8x512xbf16>,
    %c441_i32 = arith.constant 441 : i32
    %166 = tpu.dynamic_rotate %1 by %c441_i32 dim 1 : vector<8x512xf32>, i32 -> vector<8x512xf32>
    %c24_79 = arith.constant 24 : index
    %c0_80 = arith.constant 0 : index
    %c0_81 = arith.constant 0 : index
    %167 = vector.load %arg2[%c24_79, %c0_80, %c0_81] : memref<27x1x512xf32, #tpu.memory_space<vmem>>, vector<1x1x512xf32>
    %168 = vector.shape_cast %167 : vector<1x1x512xf32> to vector<1x512xf32>
    %169 = vector.broadcast %168 : vector<1x512xf32> to vector<8x512xf32>
    %170 = arith.mulf %166, %169 : vector<8x512xf32>
    %171 = arith.truncf %170 : vector<8x512xf32> to vector<8x512xbf16>
    %c192 = arith.constant 192 : index
    %c0_82 = arith.constant 0 : index
    %172 = vector.load %arg7[%c192, %c0_82] : memref<216x512xbf16, #tpu.memory_space<vmem>>, vector<8x512xbf16>
    tpu.vector_store %arg7[%c192, %c0_82], %171 {strides = array<i32>} : memref<216x512xbf16, #tpu.memory_space<vmem>>, vector<8x512xbf16>,
    %c440_i32 = arith.constant 440 : i32
    %173 = tpu.dynamic_rotate %1 by %c440_i32 dim 1 : vector<8x512xf32>, i32 -> vector<8x512xf32>
    %c25 = arith.constant 25 : index
    %c0_83 = arith.constant 0 : index
    %c0_84 = arith.constant 0 : index
    %174 = vector.load %arg2[%c25, %c0_83, %c0_84] : memref<27x1x512xf32, #tpu.memory_space<vmem>>, vector<1x1x512xf32>
    %175 = vector.shape_cast %174 : vector<1x1x512xf32> to vector<1x512xf32>
    %176 = vector.broadcast %175 : vector<1x512xf32> to vector<8x512xf32>
    %177 = arith.mulf %173, %176 : vector<8x512xf32>
    %178 = arith.truncf %177 : vector<8x512xf32> to vector<8x512xbf16>
    %c200 = arith.constant 200 : index
    %c0_85 = arith.constant 0 : index
    %179 = vector.load %arg7[%c200, %c0_85] : memref<216x512xbf16, #tpu.memory_space<vmem>>, vector<8x512xbf16>
    tpu.vector_store %arg7[%c200, %c0_85], %178 {strides = array<i32>} : memref<216x512xbf16, #tpu.memory_space<vmem>>, vector<8x512xbf16>,
    %c439_i32 = arith.constant 439 : i32
    %180 = tpu.dynamic_rotate %1 by %c439_i32 dim 1 : vector<8x512xf32>, i32 -> vector<8x512xf32>
    %c26 = arith.constant 26 : index
    %c0_86 = arith.constant 0 : index
    %c0_87 = arith.constant 0 : index
    %181 = vector.load %arg2[%c26, %c0_86, %c0_87] : memref<27x1x512xf32, #tpu.memory_space<vmem>>, vector<1x1x512xf32>
    %182 = vector.shape_cast %181 : vector<1x1x512xf32> to vector<1x512xf32>
    %183 = vector.broadcast %182 : vector<1x512xf32> to vector<8x512xf32>
    %184 = arith.mulf %180, %183 : vector<8x512xf32>
    %185 = arith.truncf %184 : vector<8x512xf32> to vector<8x512xbf16>
    %c208 = arith.constant 208 : index
    %c0_88 = arith.constant 0 : index
    %186 = vector.load %arg7[%c208, %c0_88] : memref<216x512xbf16, #tpu.memory_space<vmem>>, vector<8x512xbf16>
    tpu.vector_store %arg7[%c208, %c0_88], %185 {strides = array<i32>} : memref<216x512xbf16, #tpu.memory_space<vmem>>, vector<8x512xbf16>,
    %c0_89 = arith.constant 0 : index
    %c0_90 = arith.constant 0 : index
    %187 = vector.load %arg3[%c0_89, %c0_90] : memref<8x216xbf16, #tpu.memory_space<vmem>>, vector<8x216xbf16>
    %c0_91 = arith.constant 0 : index
    %c0_92 = arith.constant 0 : index
    %188 = vector.load %arg7[%c0_91, %c0_92] : memref<216x512xbf16, #tpu.memory_space<vmem>>, vector<216x512xbf16>
    %cst = arith.constant dense<0.000000e+00> : vector<8x512xf32>
    %189 = tpu.matmul %187, %188, %cst {dimension_numbers = #tpu.dot_dimension_numbers<[1], [0], [0], [1], [0, 0, 1, 1], [], []>} : vector<8x216xbf16>, vector<216x512xbf16>, vector<8x512xf32> -> vector<8x512xf32>
    %190 = vector.extract_strided_slice %2 {offsets = [0, 0, 0], sizes = [1, 8, 1], strides = [1, 1, 1]} : vector<2x8x2xf32> to vector<1x8x1xf32>
    %191 = vector.shape_cast %190 : vector<1x8x1xf32> to vector<8x1xf32>
    %192 = vector.extract_strided_slice %2 {offsets = [0, 0, 1], sizes = [1, 8, 1], strides = [1, 1, 1]} : vector<2x8x2xf32> to vector<1x8x1xf32>
    %193 = vector.shape_cast %192 : vector<1x8x1xf32> to vector<8x1xf32>
    %cst_93 = arith.constant dense<0.000000e+00> : vector<8xf32>
    %194 = vector.multi_reduction <add>, %189, %cst_93 [1] : vector<8x512xf32> to vector<8xf32>
    %195 = vector.shape_cast %194 : vector<8xf32> to vector<8x1xf32>
    %cst_94 = arith.constant 0.001953125 : f32
    %196 = vector.broadcast %cst_94 : f32 to vector<8x1xf32>
    %197 = arith.mulf %195, %196 : vector<8x1xf32>
    %198 = arith.mulf %189, %189 : vector<8x512xf32>
    %cst_95 = arith.constant dense<0.000000e+00> : vector<8xf32>
    %199 = vector.multi_reduction <add>, %198, %cst_95 [1] : vector<8x512xf32> to vector<8xf32>
    %200 = vector.shape_cast %199 : vector<8xf32> to vector<8x1xf32>
    %cst_96 = arith.constant 0.001953125 : f32
    %201 = vector.broadcast %cst_96 : f32 to vector<8x1xf32>
    %202 = arith.mulf %200, %201 : vector<8x1xf32>
    %203 = arith.mulf %197, %197 : vector<8x1xf32>
    %204 = arith.subf %202, %203 : vector<8x1xf32>
    %cst_97 = arith.constant 0.000000e+00 : f32
    %205 = vector.broadcast %cst_97 : f32 to vector<8x1xf32>
    %206 = arith.maximumf %204, %205 : vector<8x1xf32>
    %cst_98 = arith.constant 9.99999974E-6 : f32
    %207 = vector.broadcast %cst_98 : f32 to vector<8x1xf32>
    %208 = arith.addf %206, %207 : vector<8x1xf32>
    %209 = math.rsqrt %208 : vector<8x1xf32>
    %210 = arith.mulf %191, %209 : vector<8x1xf32>
    %211 = arith.mulf %197, %210 : vector<8x1xf32>
    %212 = arith.subf %193, %211 : vector<8x1xf32>
    %213 = vector.broadcast %210 : vector<8x1xf32> to vector<8x512xf32>
    %214 = arith.mulf %189, %213 : vector<8x512xf32>
    %215 = vector.broadcast %212 : vector<8x1xf32> to vector<8x512xf32>
    %216 = arith.addf %214, %215 : vector<8x512xf32>
    %cst_99 = arith.constant 0.000000e+00 : f32
    %217 = vector.broadcast %cst_99 : f32 to vector<8x512xf32>
    %218 = arith.maximumf %216, %217 : vector<8x512xf32>
    %c73_i32_100 = arith.constant 73 : i32
    %219 = tpu.dynamic_rotate %218 by %c73_i32_100 dim 1 : vector<8x512xf32>, i32 -> vector<8x512xf32>
    %c0_101 = arith.constant 0 : index
    %c0_102 = arith.constant 0 : index
    %c0_103 = arith.constant 0 : index
    %220 = vector.load %arg2[%c0_101, %c0_102, %c0_103] : memref<27x1x512xf32, #tpu.memory_space<vmem>>, vector<1x1x512xf32>
    %221 = vector.shape_cast %220 : vector<1x1x512xf32> to vector<1x512xf32>
    %222 = vector.broadcast %221 : vector<1x512xf32> to vector<8x512xf32>
    %223 = arith.mulf %219, %222 : vector<8x512xf32>
    %224 = arith.truncf %223 : vector<8x512xf32> to vector<8x512xbf16>
    %c0_104 = arith.constant 0 : index
    %c0_105 = arith.constant 0 : index
    %225 = vector.load %arg7[%c0_104, %c0_105] : memref<216x512xbf16, #tpu.memory_space<vmem>>, vector<8x512xbf16>
    tpu.vector_store %arg7[%c0_104, %c0_105], %224 {strides = array<i32>} : memref<216x512xbf16, #tpu.memory_space<vmem>>, vector<8x512xbf16>,
    %c72_i32_106 = arith.constant 72 : i32
    %226 = tpu.dynamic_rotate %218 by %c72_i32_106 dim 1 : vector<8x512xf32>, i32 -> vector<8x512xf32>
    %c1_107 = arith.constant 1 : index
    %c0_108 = arith.constant 0 : index
    %c0_109 = arith.constant 0 : index
    %227 = vector.load %arg2[%c1_107, %c0_108, %c0_109] : memref<27x1x512xf32, #tpu.memory_space<vmem>>, vector<1x1x512xf32>
    %228 = vector.shape_cast %227 : vector<1x1x512xf32> to vector<1x512xf32>
    %229 = vector.broadcast %228 : vector<1x512xf32> to vector<8x512xf32>
    %230 = arith.mulf %226, %229 : vector<8x512xf32>
    %231 = arith.truncf %230 : vector<8x512xf32> to vector<8x512xbf16>
    %c8_110 = arith.constant 8 : index
    %c0_111 = arith.constant 0 : index
    %232 = vector.load %arg7[%c8_110, %c0_111] : memref<216x512xbf16, #tpu.memory_space<vmem>>, vector<8x512xbf16>
    tpu.vector_store %arg7[%c8_110, %c0_111], %231 {strides = array<i32>} : memref<216x512xbf16, #tpu.memory_space<vmem>>, vector<8x512xbf16>,
    %c71_i32_112 = arith.constant 71 : i32
    %233 = tpu.dynamic_rotate %218 by %c71_i32_112 dim 1 : vector<8x512xf32>, i32 -> vector<8x512xf32>
    %c2_113 = arith.constant 2 : index
    %c0_114 = arith.constant 0 : index
    %c0_115 = arith.constant 0 : index
    %234 = vector.load %arg2[%c2_113, %c0_114, %c0_115] : memref<27x1x512xf32, #tpu.memory_space<vmem>>, vector<1x1x512xf32>
    %235 = vector.shape_cast %234 : vector<1x1x512xf32> to vector<1x512xf32>
    %236 = vector.broadcast %235 : vector<1x512xf32> to vector<8x512xf32>
    %237 = arith.mulf %233, %236 : vector<8x512xf32>
    %238 = arith.truncf %237 : vector<8x512xf32> to vector<8x512xbf16>
    %c16_116 = arith.constant 16 : index
    %c0_117 = arith.constant 0 : index
    %239 = vector.load %arg7[%c16_116, %c0_117] : memref<216x512xbf16, #tpu.memory_space<vmem>>, vector<8x512xbf16>
    tpu.vector_store %arg7[%c16_116, %c0_117], %238 {strides = array<i32>} : memref<216x512xbf16, #tpu.memory_space<vmem>>, vector<8x512xbf16>,
    %c65_i32_118 = arith.constant 65 : i32
    %240 = tpu.dynamic_rotate %218 by %c65_i32_118 dim 1 : vector<8x512xf32>, i32 -> vector<8x512xf32>
    %c3_119 = arith.constant 3 : index
    %c0_120 = arith.constant 0 : index
    %c0_121 = arith.constant 0 : index
    %241 = vector.load %arg2[%c3_119, %c0_120, %c0_121] : memref<27x1x512xf32, #tpu.memory_space<vmem>>, vector<1x1x512xf32>
    %242 = vector.shape_cast %241 : vector<1x1x512xf32> to vector<1x512xf32>
    %243 = vector.broadcast %242 : vector<1x512xf32> to vector<8x512xf32>
    %244 = arith.mulf %240, %243 : vector<8x512xf32>
    %245 = arith.truncf %244 : vector<8x512xf32> to vector<8x512xbf16>
    %c24_122 = arith.constant 24 : index
    %c0_123 = arith.constant 0 : index
    %246 = vector.load %arg7[%c24_122, %c0_123] : memref<216x512xbf16, #tpu.memory_space<vmem>>, vector<8x512xbf16>
    tpu.vector_store %arg7[%c24_122, %c0_123], %245 {strides = array<i32>} : memref<216x512xbf16, #tpu.memory_space<vmem>>, vector<8x512xbf16>,
    %c64_i32_124 = arith.constant 64 : i32
    %247 = tpu.dynamic_rotate %218 by %c64_i32_124 dim 1 : vector<8x512xf32>, i32 -> vector<8x512xf32>
    %c4_125 = arith.constant 4 : index
    %c0_126 = arith.constant 0 : index
    %c0_127 = arith.constant 0 : index
    %248 = vector.load %arg2[%c4_125, %c0_126, %c0_127] : memref<27x1x512xf32, #tpu.memory_space<vmem>>, vector<1x1x512xf32>
    %249 = vector.shape_cast %248 : vector<1x1x512xf32> to vector<1x512xf32>
    %250 = vector.broadcast %249 : vector<1x512xf32> to vector<8x512xf32>
    %251 = arith.mulf %247, %250 : vector<8x512xf32>
    %252 = arith.truncf %251 : vector<8x512xf32> to vector<8x512xbf16>
    %c32_128 = arith.constant 32 : index
    %c0_129 = arith.constant 0 : index
    %253 = vector.load %arg7[%c32_128, %c0_129] : memref<216x512xbf16, #tpu.memory_space<vmem>>, vector<8x512xbf16>
    tpu.vector_store %arg7[%c32_128, %c0_129], %252 {strides = array<i32>} : memref<216x512xbf16, #tpu.memory_space<vmem>>, vector<8x512xbf16>,
    %c63_i32_130 = arith.constant 63 : i32
    %254 = tpu.dynamic_rotate %218 by %c63_i32_130 dim 1 : vector<8x512xf32>, i32 -> vector<8x512xf32>
    %c5_131 = arith.constant 5 : index
    %c0_132 = arith.constant 0 : index
    %c0_133 = arith.constant 0 : index
    %255 = vector.load %arg2[%c5_131, %c0_132, %c0_133] : memref<27x1x512xf32, #tpu.memory_space<vmem>>, vector<1x1x512xf32>
    %256 = vector.shape_cast %255 : vector<1x1x512xf32> to vector<1x512xf32>
    %257 = vector.broadcast %256 : vector<1x512xf32> to vector<8x512xf32>
    %258 = arith.mulf %254, %257 : vector<8x512xf32>
    %259 = arith.truncf %258 : vector<8x512xf32> to vector<8x512xbf16>
    %c40_134 = arith.constant 40 : index
    %c0_135 = arith.constant 0 : index
    %260 = vector.load %arg7[%c40_134, %c0_135] : memref<216x512xbf16, #tpu.memory_space<vmem>>, vector<8x512xbf16>
    tpu.vector_store %arg7[%c40_134, %c0_135], %259 {strides = array<i32>} : memref<216x512xbf16, #tpu.memory_space<vmem>>, vector<8x512xbf16>,
    %c57_i32_136 = arith.constant 57 : i32
    %261 = tpu.dynamic_rotate %218 by %c57_i32_136 dim 1 : vector<8x512xf32>, i32 -> vector<8x512xf32>
    %c6_137 = arith.constant 6 : index
    %c0_138 = arith.constant 0 : index
    %c0_139 = arith.constant 0 : index
    %262 = vector.load %arg2[%c6_137, %c0_138, %c0_139] : memref<27x1x512xf32, #tpu.memory_space<vmem>>, vector<1x1x512xf32>
    %263 = vector.shape_cast %262 : vector<1x1x512xf32> to vector<1x512xf32>
    %264 = vector.broadcast %263 : vector<1x512xf32> to vector<8x512xf32>
    %265 = arith.mulf %261, %264 : vector<8x512xf32>
    %266 = arith.truncf %265 : vector<8x512xf32> to vector<8x512xbf16>
    %c48_140 = arith.constant 48 : index
    %c0_141 = arith.constant 0 : index
    %267 = vector.load %arg7[%c48_140, %c0_141] : memref<216x512xbf16, #tpu.memory_space<vmem>>, vector<8x512xbf16>
    tpu.vector_store %arg7[%c48_140, %c0_141], %266 {strides = array<i32>} : memref<216x512xbf16, #tpu.memory_space<vmem>>, vector<8x512xbf16>,
    %c56_i32_142 = arith.constant 56 : i32
    %268 = tpu.dynamic_rotate %218 by %c56_i32_142 dim 1 : vector<8x512xf32>, i32 -> vector<8x512xf32>
    %c7_143 = arith.constant 7 : index
    %c0_144 = arith.constant 0 : index
    %c0_145 = arith.constant 0 : index
    %269 = vector.load %arg2[%c7_143, %c0_144, %c0_145] : memref<27x1x512xf32, #tpu.memory_space<vmem>>, vector<1x1x512xf32>
    %270 = vector.shape_cast %269 : vector<1x1x512xf32> to vector<1x512xf32>
    %271 = vector.broadcast %270 : vector<1x512xf32> to vector<8x512xf32>
    %272 = arith.mulf %268, %271 : vector<8x512xf32>
    %273 = arith.truncf %272 : vector<8x512xf32> to vector<8x512xbf16>
    %c56_146 = arith.constant 56 : index
    %c0_147 = arith.constant 0 : index
    %274 = vector.load %arg7[%c56_146, %c0_147] : memref<216x512xbf16, #tpu.memory_space<vmem>>, vector<8x512xbf16>
    tpu.vector_store %arg7[%c56_146, %c0_147], %273 {strides = array<i32>} : memref<216x512xbf16, #tpu.memory_space<vmem>>, vector<8x512xbf16>,
    %c55_i32_148 = arith.constant 55 : i32
    %275 = tpu.dynamic_rotate %218 by %c55_i32_148 dim 1 : vector<8x512xf32>, i32 -> vector<8x512xf32>
    %c8_149 = arith.constant 8 : index
    %c0_150 = arith.constant 0 : index
    %c0_151 = arith.constant 0 : index
    %276 = vector.load %arg2[%c8_149, %c0_150, %c0_151] : memref<27x1x512xf32, #tpu.memory_space<vmem>>, vector<1x1x512xf32>
    %277 = vector.shape_cast %276 : vector<1x1x512xf32> to vector<1x512xf32>
    %278 = vector.broadcast %277 : vector<1x512xf32> to vector<8x512xf32>
    %279 = arith.mulf %275, %278 : vector<8x512xf32>
    %280 = arith.truncf %279 : vector<8x512xf32> to vector<8x512xbf16>
    %c64_152 = arith.constant 64 : index
    %c0_153 = arith.constant 0 : index
    %281 = vector.load %arg7[%c64_152, %c0_153] : memref<216x512xbf16, #tpu.memory_space<vmem>>, vector<8x512xbf16>
    tpu.vector_store %arg7[%c64_152, %c0_153], %280 {strides = array<i32>} : memref<216x512xbf16, #tpu.memory_space<vmem>>, vector<8x512xbf16>,
    %c9_i32_154 = arith.constant 9 : i32
    %282 = tpu.dynamic_rotate %218 by %c9_i32_154 dim 1 : vector<8x512xf32>, i32 -> vector<8x512xf32>
    %c9_155 = arith.constant 9 : index
    %c0_156 = arith.constant 0 : index
    %c0_157 = arith.constant 0 : index
    %283 = vector.load %arg2[%c9_155, %c0_156, %c0_157] : memref<27x1x512xf32, #tpu.memory_space<vmem>>, vector<1x1x512xf32>
    %284 = vector.shape_cast %283 : vector<1x1x512xf32> to vector<1x512xf32>
    %285 = vector.broadcast %284 : vector<1x512xf32> to vector<8x512xf32>
    %286 = arith.mulf %282, %285 : vector<8x512xf32>
    %287 = arith.truncf %286 : vector<8x512xf32> to vector<8x512xbf16>
    %c72_158 = arith.constant 72 : index
    %c0_159 = arith.constant 0 : index
    %288 = vector.load %arg7[%c72_158, %c0_159] : memref<216x512xbf16, #tpu.memory_space<vmem>>, vector<8x512xbf16>
    tpu.vector_store %arg7[%c72_158, %c0_159], %287 {strides = array<i32>} : memref<216x512xbf16, #tpu.memory_space<vmem>>, vector<8x512xbf16>,
    %c8_i32_160 = arith.constant 8 : i32
    %289 = tpu.dynamic_rotate %218 by %c8_i32_160 dim 1 : vector<8x512xf32>, i32 -> vector<8x512xf32>
    %c10_161 = arith.constant 10 : index
    %c0_162 = arith.constant 0 : index
    %c0_163 = arith.constant 0 : index
    %290 = vector.load %arg2[%c10_161, %c0_162, %c0_163] : memref<27x1x512xf32, #tpu.memory_space<vmem>>, vector<1x1x512xf32>
    %291 = vector.shape_cast %290 : vector<1x1x512xf32> to vector<1x512xf32>
    %292 = vector.broadcast %291 : vector<1x512xf32> to vector<8x512xf32>
    %293 = arith.mulf %289, %292 : vector<8x512xf32>
    %294 = arith.truncf %293 : vector<8x512xf32> to vector<8x512xbf16>
    %c80_164 = arith.constant 80 : index
    %c0_165 = arith.constant 0 : index
    %295 = vector.load %arg7[%c80_164, %c0_165] : memref<216x512xbf16, #tpu.memory_space<vmem>>, vector<8x512xbf16>
    tpu.vector_store %arg7[%c80_164, %c0_165], %294 {strides = array<i32>} : memref<216x512xbf16, #tpu.memory_space<vmem>>, vector<8x512xbf16>,
    %c7_i32_166 = arith.constant 7 : i32
    %296 = tpu.dynamic_rotate %218 by %c7_i32_166 dim 1 : vector<8x512xf32>, i32 -> vector<8x512xf32>
    %c11_167 = arith.constant 11 : index
    %c0_168 = arith.constant 0 : index
    %c0_169 = arith.constant 0 : index
    %297 = vector.load %arg2[%c11_167, %c0_168, %c0_169] : memref<27x1x512xf32, #tpu.memory_space<vmem>>, vector<1x1x512xf32>
    %298 = vector.shape_cast %297 : vector<1x1x512xf32> to vector<1x512xf32>
    %299 = vector.broadcast %298 : vector<1x512xf32> to vector<8x512xf32>
    %300 = arith.mulf %296, %299 : vector<8x512xf32>
    %301 = arith.truncf %300 : vector<8x512xf32> to vector<8x512xbf16>
    %c88_170 = arith.constant 88 : index
    %c0_171 = arith.constant 0 : index
    %302 = vector.load %arg7[%c88_170, %c0_171] : memref<216x512xbf16, #tpu.memory_space<vmem>>, vector<8x512xbf16>
    tpu.vector_store %arg7[%c88_170, %c0_171], %301 {strides = array<i32>} : memref<216x512xbf16, #tpu.memory_space<vmem>>, vector<8x512xbf16>,
    %c1_i32_172 = arith.constant 1 : i32
    %303 = tpu.dynamic_rotate %218 by %c1_i32_172 dim 1 : vector<8x512xf32>, i32 -> vector<8x512xf32>
    %c12_173 = arith.constant 12 : index
    %c0_174 = arith.constant 0 : index
    %c0_175 = arith.constant 0 : index
    %304 = vector.load %arg2[%c12_173, %c0_174, %c0_175] : memref<27x1x512xf32, #tpu.memory_space<vmem>>, vector<1x1x512xf32>
    %305 = vector.shape_cast %304 : vector<1x1x512xf32> to vector<1x512xf32>
    %306 = vector.broadcast %305 : vector<1x512xf32> to vector<8x512xf32>
    %307 = arith.mulf %303, %306 : vector<8x512xf32>
    %308 = arith.truncf %307 : vector<8x512xf32> to vector<8x512xbf16>
    %c96_176 = arith.constant 96 : index
    %c0_177 = arith.constant 0 : index
    %309 = vector.load %arg7[%c96_176, %c0_177] : memref<216x512xbf16, #tpu.memory_space<vmem>>, vector<8x512xbf16>
    tpu.vector_store %arg7[%c96_176, %c0_177], %308 {strides = array<i32>} : memref<216x512xbf16, #tpu.memory_space<vmem>>, vector<8x512xbf16>,
    %310 = arith.truncf %218 : vector<8x512xf32> to vector<8x512xbf16>
    %c104_178 = arith.constant 104 : index
    %c0_179 = arith.constant 0 : index
    %311 = vector.load %arg7[%c104_178, %c0_179] : memref<216x512xbf16, #tpu.memory_space<vmem>>, vector<8x512xbf16>
    tpu.vector_store %arg7[%c104_178, %c0_179], %310 {strides = array<i32>} : memref<216x512xbf16, #tpu.memory_space<vmem>>, vector<8x512xbf16>,
    %c511_i32_180 = arith.constant 511 : i32
    %312 = tpu.dynamic_rotate %218 by %c511_i32_180 dim 1 : vector<8x512xf32>, i32 -> vector<8x512xf32>
    %c14_181 = arith.constant 14 : index
    %c0_182 = arith.constant 0 : index
    %c0_183 = arith.constant 0 : index
    %313 = vector.load %arg2[%c14_181, %c0_182, %c0_183] : memref<27x1x512xf32, #tpu.memory_space<vmem>>, vector<1x1x512xf32>
    %314 = vector.shape_cast %313 : vector<1x1x512xf32> to vector<1x512xf32>
    %315 = vector.broadcast %314 : vector<1x512xf32> to vector<8x512xf32>
    %316 = arith.mulf %312, %315 : vector<8x512xf32>
    %317 = arith.truncf %316 : vector<8x512xf32> to vector<8x512xbf16>
    %c112_184 = arith.constant 112 : index
    %c0_185 = arith.constant 0 : index
    %318 = vector.load %arg7[%c112_184, %c0_185] : memref<216x512xbf16, #tpu.memory_space<vmem>>, vector<8x512xbf16>
    tpu.vector_store %arg7[%c112_184, %c0_185], %317 {strides = array<i32>} : memref<216x512xbf16, #tpu.memory_space<vmem>>, vector<8x512xbf16>,
    %c505_i32_186 = arith.constant 505 : i32
    %319 = tpu.dynamic_rotate %218 by %c505_i32_186 dim 1 : vector<8x512xf32>, i32 -> vector<8x512xf32>
    %c15_187 = arith.constant 15 : index
    %c0_188 = arith.constant 0 : index
    %c0_189 = arith.constant 0 : index
    %320 = vector.load %arg2[%c15_187, %c0_188, %c0_189] : memref<27x1x512xf32, #tpu.memory_space<vmem>>, vector<1x1x512xf32>
    %321 = vector.shape_cast %320 : vector<1x1x512xf32> to vector<1x512xf32>
    %322 = vector.broadcast %321 : vector<1x512xf32> to vector<8x512xf32>
    %323 = arith.mulf %319, %322 : vector<8x512xf32>
    %324 = arith.truncf %323 : vector<8x512xf32> to vector<8x512xbf16>
    %c120_190 = arith.constant 120 : index
    %c0_191 = arith.constant 0 : index
    %325 = vector.load %arg7[%c120_190, %c0_191] : memref<216x512xbf16, #tpu.memory_space<vmem>>, vector<8x512xbf16>
    tpu.vector_store %arg7[%c120_190, %c0_191], %324 {strides = array<i32>} : memref<216x512xbf16, #tpu.memory_space<vmem>>, vector<8x512xbf16>,
    %c504_i32_192 = arith.constant 504 : i32
    %326 = tpu.dynamic_rotate %218 by %c504_i32_192 dim 1 : vector<8x512xf32>, i32 -> vector<8x512xf32>
    %c16_193 = arith.constant 16 : index
    %c0_194 = arith.constant 0 : index
    %c0_195 = arith.constant 0 : index
    %327 = vector.load %arg2[%c16_193, %c0_194, %c0_195] : memref<27x1x512xf32, #tpu.memory_space<vmem>>, vector<1x1x512xf32>
    %328 = vector.shape_cast %327 : vector<1x1x512xf32> to vector<1x512xf32>
    %329 = vector.broadcast %328 : vector<1x512xf32> to vector<8x512xf32>
    %330 = arith.mulf %326, %329 : vector<8x512xf32>
    %331 = arith.truncf %330 : vector<8x512xf32> to vector<8x512xbf16>
    %c128_196 = arith.constant 128 : index
    %c0_197 = arith.constant 0 : index
    %332 = vector.load %arg7[%c128_196, %c0_197] : memref<216x512xbf16, #tpu.memory_space<vmem>>, vector<8x512xbf16>
    tpu.vector_store %arg7[%c128_196, %c0_197], %331 {strides = array<i32>} : memref<216x512xbf16, #tpu.memory_space<vmem>>, vector<8x512xbf16>,
    %c503_i32_198 = arith.constant 503 : i32
    %333 = tpu.dynamic_rotate %218 by %c503_i32_198 dim 1 : vector<8x512xf32>, i32 -> vector<8x512xf32>
    %c17_199 = arith.constant 17 : index
    %c0_200 = arith.constant 0 : index
    %c0_201 = arith.constant 0 : index
    %334 = vector.load %arg2[%c17_199, %c0_200, %c0_201] : memref<27x1x512xf32, #tpu.memory_space<vmem>>, vector<1x1x512xf32>
    %335 = vector.shape_cast %334 : vector<1x1x512xf32> to vector<1x512xf32>
    %336 = vector.broadcast %335 : vector<1x512xf32> to vector<8x512xf32>
    %337 = arith.mulf %333, %336 : vector<8x512xf32>
    %338 = arith.truncf %337 : vector<8x512xf32> to vector<8x512xbf16>
    %c136_202 = arith.constant 136 : index
    %c0_203 = arith.constant 0 : index
    %339 = vector.load %arg7[%c136_202, %c0_203] : memref<216x512xbf16, #tpu.memory_space<vmem>>, vector<8x512xbf16>
    tpu.vector_store %arg7[%c136_202, %c0_203], %338 {strides = array<i32>} : memref<216x512xbf16, #tpu.memory_space<vmem>>, vector<8x512xbf16>,
    %c457_i32_204 = arith.constant 457 : i32
    %340 = tpu.dynamic_rotate %218 by %c457_i32_204 dim 1 : vector<8x512xf32>, i32 -> vector<8x512xf32>
    %c18_205 = arith.constant 18 : index
    %c0_206 = arith.constant 0 : index
    %c0_207 = arith.constant 0 : index
    %341 = vector.load %arg2[%c18_205, %c0_206, %c0_207] : memref<27x1x512xf32, #tpu.memory_space<vmem>>, vector<1x1x512xf32>
    %342 = vector.shape_cast %341 : vector<1x1x512xf32> to vector<1x512xf32>
    %343 = vector.broadcast %342 : vector<1x512xf32> to vector<8x512xf32>
    %344 = arith.mulf %340, %343 : vector<8x512xf32>
    %345 = arith.truncf %344 : vector<8x512xf32> to vector<8x512xbf16>
    %c144_208 = arith.constant 144 : index
    %c0_209 = arith.constant 0 : index
    %346 = vector.load %arg7[%c144_208, %c0_209] : memref<216x512xbf16, #tpu.memory_space<vmem>>, vector<8x512xbf16>
    tpu.vector_store %arg7[%c144_208, %c0_209], %345 {strides = array<i32>} : memref<216x512xbf16, #tpu.memory_space<vmem>>, vector<8x512xbf16>,
    %c456_i32_210 = arith.constant 456 : i32
    %347 = tpu.dynamic_rotate %218 by %c456_i32_210 dim 1 : vector<8x512xf32>, i32 -> vector<8x512xf32>
    %c19_211 = arith.constant 19 : index
    %c0_212 = arith.constant 0 : index
    %c0_213 = arith.constant 0 : index
    %348 = vector.load %arg2[%c19_211, %c0_212, %c0_213] : memref<27x1x512xf32, #tpu.memory_space<vmem>>, vector<1x1x512xf32>
    %349 = vector.shape_cast %348 : vector<1x1x512xf32> to vector<1x512xf32>
    %350 = vector.broadcast %349 : vector<1x512xf32> to vector<8x512xf32>
    %351 = arith.mulf %347, %350 : vector<8x512xf32>
    %352 = arith.truncf %351 : vector<8x512xf32> to vector<8x512xbf16>
    %c152_214 = arith.constant 152 : index
    %c0_215 = arith.constant 0 : index
    %353 = vector.load %arg7[%c152_214, %c0_215] : memref<216x512xbf16, #tpu.memory_space<vmem>>, vector<8x512xbf16>
    tpu.vector_store %arg7[%c152_214, %c0_215], %352 {strides = array<i32>} : memref<216x512xbf16, #tpu.memory_space<vmem>>, vector<8x512xbf16>,
    %c455_i32_216 = arith.constant 455 : i32
    %354 = tpu.dynamic_rotate %218 by %c455_i32_216 dim 1 : vector<8x512xf32>, i32 -> vector<8x512xf32>
    %c20_217 = arith.constant 20 : index
    %c0_218 = arith.constant 0 : index
    %c0_219 = arith.constant 0 : index
    %355 = vector.load %arg2[%c20_217, %c0_218, %c0_219] : memref<27x1x512xf32, #tpu.memory_space<vmem>>, vector<1x1x512xf32>
    %356 = vector.shape_cast %355 : vector<1x1x512xf32> to vector<1x512xf32>
    %357 = vector.broadcast %356 : vector<1x512xf32> to vector<8x512xf32>
    %358 = arith.mulf %354, %357 : vector<8x512xf32>
    %359 = arith.truncf %358 : vector<8x512xf32> to vector<8x512xbf16>
    %c160_220 = arith.constant 160 : index
    %c0_221 = arith.constant 0 : index
    %360 = vector.load %arg7[%c160_220, %c0_221] : memref<216x512xbf16, #tpu.memory_space<vmem>>, vector<8x512xbf16>
    tpu.vector_store %arg7[%c160_220, %c0_221], %359 {strides = array<i32>} : memref<216x512xbf16, #tpu.memory_space<vmem>>, vector<8x512xbf16>,
    %c449_i32_222 = arith.constant 449 : i32
    %361 = tpu.dynamic_rotate %218 by %c449_i32_222 dim 1 : vector<8x512xf32>, i32 -> vector<8x512xf32>
    %c21_223 = arith.constant 21 : index
    %c0_224 = arith.constant 0 : index
    %c0_225 = arith.constant 0 : index
    %362 = vector.load %arg2[%c21_223, %c0_224, %c0_225] : memref<27x1x512xf32, #tpu.memory_space<vmem>>, vector<1x1x512xf32>
    %363 = vector.shape_cast %362 : vector<1x1x512xf32> to vector<1x512xf32>
    %364 = vector.broadcast %363 : vector<1x512xf32> to vector<8x512xf32>
    %365 = arith.mulf %361, %364 : vector<8x512xf32>
    %366 = arith.truncf %365 : vector<8x512xf32> to vector<8x512xbf16>
    %c168_226 = arith.constant 168 : index
    %c0_227 = arith.constant 0 : index
    %367 = vector.load %arg7[%c168_226, %c0_227] : memref<216x512xbf16, #tpu.memory_space<vmem>>, vector<8x512xbf16>
    tpu.vector_store %arg7[%c168_226, %c0_227], %366 {strides = array<i32>} : memref<216x512xbf16, #tpu.memory_space<vmem>>, vector<8x512xbf16>,
    %c448_i32_228 = arith.constant 448 : i32
    %368 = tpu.dynamic_rotate %218 by %c448_i32_228 dim 1 : vector<8x512xf32>, i32 -> vector<8x512xf32>
    %c22_229 = arith.constant 22 : index
    %c0_230 = arith.constant 0 : index
    %c0_231 = arith.constant 0 : index
    %369 = vector.load %arg2[%c22_229, %c0_230, %c0_231] : memref<27x1x512xf32, #tpu.memory_space<vmem>>, vector<1x1x512xf32>
    %370 = vector.shape_cast %369 : vector<1x1x512xf32> to vector<1x512xf32>
    %371 = vector.broadcast %370 : vector<1x512xf32> to vector<8x512xf32>
    %372 = arith.mulf %368, %371 : vector<8x512xf32>
    %373 = arith.truncf %372 : vector<8x512xf32> to vector<8x512xbf16>
    %c176_232 = arith.constant 176 : index
    %c0_233 = arith.constant 0 : index
    %374 = vector.load %arg7[%c176_232, %c0_233] : memref<216x512xbf16, #tpu.memory_space<vmem>>, vector<8x512xbf16>
    tpu.vector_store %arg7[%c176_232, %c0_233], %373 {strides = array<i32>} : memref<216x512xbf16, #tpu.memory_space<vmem>>, vector<8x512xbf16>,
    %c447_i32_234 = arith.constant 447 : i32
    %375 = tpu.dynamic_rotate %218 by %c447_i32_234 dim 1 : vector<8x512xf32>, i32 -> vector<8x512xf32>
    %c23_235 = arith.constant 23 : index
    %c0_236 = arith.constant 0 : index
    %c0_237 = arith.constant 0 : index
    %376 = vector.load %arg2[%c23_235, %c0_236, %c0_237] : memref<27x1x512xf32, #tpu.memory_space<vmem>>, vector<1x1x512xf32>
    %377 = vector.shape_cast %376 : vector<1x1x512xf32> to vector<1x512xf32>
    %378 = vector.broadcast %377 : vector<1x512xf32> to vector<8x512xf32>
    %379 = arith.mulf %375, %378 : vector<8x512xf32>
    %380 = arith.truncf %379 : vector<8x512xf32> to vector<8x512xbf16>
    %c184_238 = arith.constant 184 : index
    %c0_239 = arith.constant 0 : index
    %381 = vector.load %arg7[%c184_238, %c0_239] : memref<216x512xbf16, #tpu.memory_space<vmem>>, vector<8x512xbf16>
    tpu.vector_store %arg7[%c184_238, %c0_239], %380 {strides = array<i32>} : memref<216x512xbf16, #tpu.memory_space<vmem>>, vector<8x512xbf16>,
    %c441_i32_240 = arith.constant 441 : i32
    %382 = tpu.dynamic_rotate %218 by %c441_i32_240 dim 1 : vector<8x512xf32>, i32 -> vector<8x512xf32>
    %c24_241 = arith.constant 24 : index
    %c0_242 = arith.constant 0 : index
    %c0_243 = arith.constant 0 : index
    %383 = vector.load %arg2[%c24_241, %c0_242, %c0_243] : memref<27x1x512xf32, #tpu.memory_space<vmem>>, vector<1x1x512xf32>
    %384 = vector.shape_cast %383 : vector<1x1x512xf32> to vector<1x512xf32>
    %385 = vector.broadcast %384 : vector<1x512xf32> to vector<8x512xf32>
    %386 = arith.mulf %382, %385 : vector<8x512xf32>
    %387 = arith.truncf %386 : vector<8x512xf32> to vector<8x512xbf16>
    %c192_244 = arith.constant 192 : index
    %c0_245 = arith.constant 0 : index
    %388 = vector.load %arg7[%c192_244, %c0_245] : memref<216x512xbf16, #tpu.memory_space<vmem>>, vector<8x512xbf16>
    tpu.vector_store %arg7[%c192_244, %c0_245], %387 {strides = array<i32>} : memref<216x512xbf16, #tpu.memory_space<vmem>>, vector<8x512xbf16>,
    %c440_i32_246 = arith.constant 440 : i32
    %389 = tpu.dynamic_rotate %218 by %c440_i32_246 dim 1 : vector<8x512xf32>, i32 -> vector<8x512xf32>
    %c25_247 = arith.constant 25 : index
    %c0_248 = arith.constant 0 : index
    %c0_249 = arith.constant 0 : index
    %390 = vector.load %arg2[%c25_247, %c0_248, %c0_249] : memref<27x1x512xf32, #tpu.memory_space<vmem>>, vector<1x1x512xf32>
    %391 = vector.shape_cast %390 : vector<1x1x512xf32> to vector<1x512xf32>
    %392 = vector.broadcast %391 : vector<1x512xf32> to vector<8x512xf32>
    %393 = arith.mulf %389, %392 : vector<8x512xf32>
    %394 = arith.truncf %393 : vector<8x512xf32> to vector<8x512xbf16>
    %c200_250 = arith.constant 200 : index
    %c0_251 = arith.constant 0 : index
    %395 = vector.load %arg7[%c200_250, %c0_251] : memref<216x512xbf16, #tpu.memory_space<vmem>>, vector<8x512xbf16>
    tpu.vector_store %arg7[%c200_250, %c0_251], %394 {strides = array<i32>} : memref<216x512xbf16, #tpu.memory_space<vmem>>, vector<8x512xbf16>,
    %c439_i32_252 = arith.constant 439 : i32
    %396 = tpu.dynamic_rotate %218 by %c439_i32_252 dim 1 : vector<8x512xf32>, i32 -> vector<8x512xf32>
    %c26_253 = arith.constant 26 : index
    %c0_254 = arith.constant 0 : index
    %c0_255 = arith.constant 0 : index
    %397 = vector.load %arg2[%c26_253, %c0_254, %c0_255] : memref<27x1x512xf32, #tpu.memory_space<vmem>>, vector<1x1x512xf32>
    %398 = vector.shape_cast %397 : vector<1x1x512xf32> to vector<1x512xf32>
    %399 = vector.broadcast %398 : vector<1x512xf32> to vector<8x512xf32>
    %400 = arith.mulf %396, %399 : vector<8x512xf32>
    %401 = arith.truncf %400 : vector<8x512xf32> to vector<8x512xbf16>
    %c208_256 = arith.constant 208 : index
    %c0_257 = arith.constant 0 : index
    %402 = vector.load %arg7[%c208_256, %c0_257] : memref<216x512xbf16, #tpu.memory_space<vmem>>, vector<8x512xbf16>
    tpu.vector_store %arg7[%c208_256, %c0_257], %401 {strides = array<i32>} : memref<216x512xbf16, #tpu.memory_space<vmem>>, vector<8x512xbf16>,
    %c0_258 = arith.constant 0 : index
    %c0_259 = arith.constant 0 : index
    %403 = vector.load %arg4[%c0_258, %c0_259] : memref<8x216xbf16, #tpu.memory_space<vmem>>, vector<8x216xbf16>
    %c0_260 = arith.constant 0 : index
    %c0_261 = arith.constant 0 : index
    %404 = vector.load %arg7[%c0_260, %c0_261] : memref<216x512xbf16, #tpu.memory_space<vmem>>, vector<216x512xbf16>
    %cst_262 = arith.constant dense<0.000000e+00> : vector<8x512xf32>
    %405 = tpu.matmul %403, %404, %cst_262 {dimension_numbers = #tpu.dot_dimension_numbers<[1], [0], [0], [1], [0, 0, 1, 1], [], []>} : vector<8x216xbf16>, vector<216x512xbf16>, vector<8x512xf32> -> vector<8x512xf32>
    %406 = vector.extract_strided_slice %2 {offsets = [1, 0, 0], sizes = [1, 8, 1], strides = [1, 1, 1]} : vector<2x8x2xf32> to vector<1x8x1xf32>
    %407 = vector.shape_cast %406 : vector<1x8x1xf32> to vector<8x1xf32>
    %408 = vector.extract_strided_slice %2 {offsets = [1, 0, 1], sizes = [1, 8, 1], strides = [1, 1, 1]} : vector<2x8x2xf32> to vector<1x8x1xf32>
    %409 = vector.shape_cast %408 : vector<1x8x1xf32> to vector<8x1xf32>
    %cst_263 = arith.constant dense<0.000000e+00> : vector<8xf32>
    %410 = vector.multi_reduction <add>, %405, %cst_263 [1] : vector<8x512xf32> to vector<8xf32>
    %411 = vector.shape_cast %410 : vector<8xf32> to vector<8x1xf32>
    %cst_264 = arith.constant 0.001953125 : f32
    %412 = vector.broadcast %cst_264 : f32 to vector<8x1xf32>
    %413 = arith.mulf %411, %412 : vector<8x1xf32>
    %414 = arith.mulf %405, %405 : vector<8x512xf32>
    %cst_265 = arith.constant dense<0.000000e+00> : vector<8xf32>
    %415 = vector.multi_reduction <add>, %414, %cst_265 [1] : vector<8x512xf32> to vector<8xf32>
    %416 = vector.shape_cast %415 : vector<8xf32> to vector<8x1xf32>
    %cst_266 = arith.constant 0.001953125 : f32
    %417 = vector.broadcast %cst_266 : f32 to vector<8x1xf32>
    %418 = arith.mulf %416, %417 : vector<8x1xf32>
    %419 = arith.mulf %413, %413 : vector<8x1xf32>
    %420 = arith.subf %418, %419 : vector<8x1xf32>
    %cst_267 = arith.constant 0.000000e+00 : f32
    %421 = vector.broadcast %cst_267 : f32 to vector<8x1xf32>
    %422 = arith.maximumf %420, %421 : vector<8x1xf32>
    %cst_268 = arith.constant 9.99999974E-6 : f32
    %423 = vector.broadcast %cst_268 : f32 to vector<8x1xf32>
    %424 = arith.addf %422, %423 : vector<8x1xf32>
    %425 = math.rsqrt %424 : vector<8x1xf32>
    %426 = arith.mulf %407, %425 : vector<8x1xf32>
    %427 = arith.mulf %413, %426 : vector<8x1xf32>
    %428 = arith.subf %409, %427 : vector<8x1xf32>
    %429 = vector.broadcast %426 : vector<8x1xf32> to vector<8x512xf32>
    %430 = arith.mulf %405, %429 : vector<8x512xf32>
    %431 = vector.broadcast %428 : vector<8x1xf32> to vector<8x512xf32>
    %432 = arith.addf %430, %431 : vector<8x512xf32>
    %433 = arith.addf %1, %432 : vector<8x512xf32>
    %cst_269 = arith.constant 0.000000e+00 : f32
    %434 = vector.broadcast %cst_269 : f32 to vector<8x512xf32>
    %435 = arith.maximumf %433, %434 : vector<8x512xf32>
    %c0_270 = arith.constant 0 : index
    %c0_271 = arith.constant 0 : index
    %c0_272 = arith.constant 0 : index
    %436 = vector.load %arg6[%c0_270, %c0_271, %c0_272] : memref<1x8x512xf32, #tpu.memory_space<vmem>>, vector<1x8x512xf32>
    %437 = vector.shape_cast %436 : vector<1x8x512xf32> to vector<8x512xf32>
    %438 = vector.shape_cast %435 : vector<8x512xf32> to vector<1x8x512xf32>
    tpu.vector_store %arg6[%c0_270, %c0_271, %c0_272], %438 {strides = array<i32>} : memref<1x8x512xf32, #tpu.memory_space<vmem>>, vector<1x8x512xf32>,
    return
  }
  func.func @transform_0(%arg0: i32) -> (i32, i32, i32) {
    %c0_i32 = arith.constant 0 : i32
    %c0_i32_0 = arith.constant 0 : i32
    %c0_i32_1 = arith.constant 0 : i32
    return %arg0, %c0_i32, %c0_i32_0 : i32, i32, i32
  }
  func.func @transform_1(%arg0: i32) -> (i32, i32, i32) {
    %c0_i32 = arith.constant 0 : i32
    %c0_i32_0 = arith.constant 0 : i32
    %c0_i32_1 = arith.constant 0 : i32
    %c0_i32_2 = arith.constant 0 : i32
    return %c0_i32, %c0_i32_0, %c0_i32_1 : i32, i32, i32
  }
  func.func @transform_2(%arg0: i32) -> (i32, i32) {
    %c0_i32 = arith.constant 0 : i32
    %c0_i32_0 = arith.constant 0 : i32
    %c0_i32_1 = arith.constant 0 : i32
    return %c0_i32, %c0_i32_0 : i32, i32
  }
  func.func @transform_3(%arg0: i32) -> (i32, i32) {
    %c0_i32 = arith.constant 0 : i32
    %c0_i32_0 = arith.constant 0 : i32
    %c0_i32_1 = arith.constant 0 : i32
    return %c0_i32, %c0_i32_0 : i32, i32
  }
  func.func @transform_4(%arg0: i32) -> (i32, i32, i32) {
    %c0_i32 = arith.constant 0 : i32
    %c0_i32_0 = arith.constant 0 : i32
    %c0_i32_1 = arith.constant 0 : i32
    %c0_i32_2 = arith.constant 0 : i32
    return %c0_i32, %c0_i32_0, %c0_i32_1 : i32, i32, i32
  }
  func.func @transform_5(%arg0: i32) -> (i32, i32, i32) {
    %c0_i32 = arith.constant 0 : i32
    %c0_i32_0 = arith.constant 0 : i32
    %c0_i32_1 = arith.constant 0 : i32
    return %arg0, %c0_i32, %c0_i32_0 : i32, i32, i32
  }
}

</mosaic_0001>

<llo_original>
// kernel: basic_block_3d.1
$region0: #{basic_block_3d.1}
  #allocation0 [shape = 'u32[]', space=smem, size = 0x4, offset = 0x4, fixed_abs, tag = 'smem constant byte address 0x4 - core index']
  #allocation1 [shape = 'u32[144,128]{1,0:T(1,128)}', space=vmem, size = 0x12000, scoped, tag = 'internal scratch']
  #allocation2 [shape = 'bf16[216,512]{1,0:T(8,128)(2,1)}', space=vmem, size = 0x36000, scoped, tag = 'scratch operand']
  %s0 = inlined_call_operand.vmem [shape: f32[2,8,512], index: 0, kind: input, shape index: {}]
  %s1 = inlined_call_operand.vmem [shape: f32[27,1,512], index: 1, kind: input, shape index: {}]
  %s2 = inlined_call_operand.vmem [shape: bf16[8,216], index: 2, kind: input, shape index: {}]
  %s3 = inlined_call_operand.vmem [shape: bf16[8,216], index: 3, kind: input, shape index: {}]
  %s4 = inlined_call_operand.vmem [shape: f32[2,8,2], index: 4, kind: input, shape index: {}]
  %s5 = inlined_call_operand.vmem [shape: f32[2,8,512], index: 5, kind: output, shape index: {}]
  %s6 = sld [smem:[#allocation0]]
  $region53: #{basic_block_3d.1} parent=0
    _
  %s8 = ssub.s32 1, %s6
  %s9 = scalar_select 0, %s8, %s6
  loop: start=0, step=1, limit=4
  $region2: #{basic_block_3d.1} parent=0 // loop_pre_header
    _
  $region3: #{basic_block_3d.1} parent=0 // loop_header
    %s11 = sphi 0, %s15
    %p12 = scmp.ge.s32.totalorder %s11, 4
    %s21 = sphi 0, %s23
    %s24 = sphi 0, %s21
    %s25 = sphi 0, %s24
    %s41 = sphi 0, %s25
    %s45 = sphi 0, %s45
    %s47 = sphi 0, %s45
    %s48 = sphi 0, %s47
    %s62 = sphi 0, %s48
    %s66 = sphi 0, %s66
    %s68 = sphi 0, %s66
    %s69 = sphi 0, %s68
    %s83 = sphi 0, %s69
    %s87 = sphi 0, %s87
    %s89 = sphi 0, %s87
    %s90 = sphi 0, %s89
    %s104 = sphi 0, %s90
    %s108 = sphi 0, %s108
    %s110 = sphi 0, %s108
    %s111 = sphi 0, %s110
    %s125 = sphi 0, %s111
    %s131 = sphi 0, %s133
    %s134 = sphi 0, %s131
    %s135 = sphi 0, %s134
    %s151 = sphi 0, %s135
  $region4: #{basic_block_3d.1} parent=0 // loop_header_branch
    %14 = sbr.rel (%p12) target = $region8
  $region5: #{basic_block_3d.1} parent=0 // loop_body
    %s16 = ssub.s32 %s11, 1
    %s17 = ssub.s32 %s11, 2
    %s18 = sadd.s32 %s11, 1
    %s19 = ssub.s32 %s11, %s18
    %p20 = scmp.eq.s32.totalorder %s19, 0
    %s22 = sadd.s32 %s21, 1
    %s23 = scalar_select %p20, %s21, %s22
    %p26 = pneg %p20
    %p27 = scmp.eq.s32.totalorder %s11, 1
    %p28 = por %p26, %p27
    %p29 = scmp.ne.s32.totalorder %s21, %s24
    %p30 = scmp.eq.s32.totalorder %s11, 0
    %p31 = por %p29, %p30
    %p32 = scmp.ne.s32.totalorder %s21, %s24
    %p33 = scmp.eq.s32.totalorder %s16, 1
    %p34 = por %p32, %p33
    %p35 = scmp.ne.s32.totalorder %s24, %s25
    %p36 = scmp.eq.s32.totalorder %s16, 0
    %p37 = por %p35, %p36
    %p38 = scmp.ne.s32.totalorder %s24, %s25
    %p39 = scmp.eq.s32.totalorder %s17, 1
    %p40 = por %p38, %p39
    %p42 = scmp.ne.s32.totalorder %s25, %s41
    %p43 = scmp.eq.s32.totalorder %s17, 0
    %p44 = por %p42, %p43
    %s46 = sadd.s32 %s45, 1
    %p49 = scmp.eq.s32.totalorder %s11, 1
    %p50 = scmp.ne.s32.totalorder %s45, %s47
    %p51 = scmp.eq.s32.totalorder %s11, 0
    %p52 = por %p50, %p51
    %p53 = scmp.ne.s32.totalorder %s45, %s47
    %p54 = scmp.eq.s32.totalorder %s16, 1
    %p55 = por %p53, %p54
    %p56 = scmp.ne.s32.totalorder %s47, %s48
    %p57 = scmp.eq.s32.totalorder %s16, 0
    %p58 = por %p56, %p57
    %p59 = scmp.ne.s32.totalorder %s47, %s48
    %p60 = scmp.eq.s32.totalorder %s17, 1
    %p61 = por %p59, %p60
    %p63 = scmp.ne.s32.totalorder %s48, %s62
    %p64 = scmp.eq.s32.totalorder %s17, 0
    %p65 = por %p63, %p64
    %s67 = sadd.s32 %s66, 1
    %p70 = scmp.eq.s32.totalorder %s11, 1
    %p71 = scmp.ne.s32.totalorder %s66, %s68
    %p72 = scmp.eq.s32.totalorder %s11, 0
    %p73 = por %p71, %p72
    %p74 = scmp.ne.s32.totalorder %s66, %s68
    %p75 = scmp.eq.s32.totalorder %s16, 1
    %p76 = por %p74, %p75
    %p77 = scmp.ne.s32.totalorder %s68, %s69
    %p78 = scmp.eq.s32.totalorder %s16, 0
    %p79 = por %p77, %p78
    %p80 = scmp.ne.s32.totalorder %s68, %s69
    %p81 = scmp.eq.s32.totalorder %s17, 1
    %p82 = por %p80, %p81
    %p84 = scmp.ne.s32.totalorder %s69, %s83
    %p85 = scmp.eq.s32.totalorder %s17, 0
    %p86 = por %p84, %p85
    %s88 = sadd.s32 %s87, 1
    %p91 = scmp.eq.s32.totalorder %s11, 1
    %p92 = scmp.ne.s32.totalorder %s87, %s89
    %p93 = scmp.eq.s32.totalorder %s11, 0
    %p94 = por %p92, %p93
    %p95 = scmp.ne.s32.totalorder %s87, %s89
    %p96 = scmp.eq.s32.totalorder %s16, 1
    %p97 = por %p95, %p96
    %p98 = scmp.ne.s32.totalorder %s89, %s90
    %p99 = scmp.eq.s32.totalorder %s16, 0
    %p100 = por %p98, %p99
    %p101 = scmp.ne.s32.totalorder %s89, %s90
    %p102 = scmp.eq.s32.totalorder %s17, 1
    %p103 = por %p101, %p102
    %p105 = scmp.ne.s32.totalorder %s90, %s104
    %p106 = scmp.eq.s32.totalorder %s17, 0
    %p107 = por %p105, %p106
    %s109 = sadd.s32 %s108, 1
    %p112 = scmp.eq.s32.totalorder %s11, 1
    %p113 = scmp.ne.s32.totalorder %s108, %s110
    %p114 = scmp.eq.s32.totalorder %s11, 0
    %p115 = por %p113, %p114
    %p116 = scmp.ne.s32.totalorder %s108, %s110
    %p117 = scmp.eq.s32.totalorder %s16, 1
    %p118 = por %p116, %p117
    %p119 = scmp.ne.s32.totalorder %s110, %s111
    %p120 = scmp.eq.s32.totalorder %s16, 0
    %p121 = por %p119, %p120
    %p122 = scmp.ne.s32.totalorder %s110, %s111
    %p123 = scmp.eq.s32.totalorder %s17, 1
    %p124 = por %p122, %p123
    %p126 = scmp.ne.s32.totalorder %s111, %s125
    %p127 = scmp.eq.s32.totalorder %s17, 0
    %p128 = por %p126, %p127
    %s129 = ssub.s32 %s11, %s18
    %p130 = scmp.eq.s32.totalorder %s129, 0
    %s132 = sadd.s32 %s131, 1
    %s133 = scalar_select %p130, %s131, %s132
    %p136 = pneg %p130
    %p137 = scmp.eq.s32.totalorder %s11, 1
    %p138 = por %p136, %p137
    %p139 = scmp.ne.s32.totalorder %s131, %s134
    %p140 = scmp.eq.s32.totalorder %s11, 0
    %p141 = por %p139, %p140
    %p142 = scmp.ne.s32.totalorder %s131, %s134
    %p143 = scmp.eq.s32.totalorder %s16, 1
    %p144 = por %p142, %p143
    %p145 = scmp.ne.s32.totalorder %s134, %s135
    %p146 = scmp.eq.s32.totalorder %s16, 0
    %p147 = por %p145, %p146
    %p148 = scmp.ne.s32.totalorder %s134, %s135
    %p149 = scmp.eq.s32.totalorder %s17, 1
    %p150 = por %p148, %p149
    %p152 = scmp.ne.s32.totalorder %s135, %s151
    %p153 = scmp.eq.s32.totalorder %s17, 0
    %p154 = por %p152, %p153
    %p155 = scmp.le.s32.totalorder 1, %s11
    %p156 = scmp.lt.s32.totalorder %s11, 3
    %p157 = pnand %p155, %p156
    %p158 = pneg %p157
    // Predicated region
    $region9: #{basic_block_3d.1} parent=5 // pred_check
      _
    $region10: #{basic_block_3d.1} parent=5 // pred_check_branch
      %160 = sbr.rel (%p157) target = $region12
    $region11: #{basic_block_3d.1} parent=5 // pred_region
      %s161 = ssub.s32 %s11, 1
      // Predicated region
      $region13: #{basic_block_3d.1} parent=11 // pred_check
        %p162 = pneg %p58
      $region14: #{basic_block_3d.1} parent=11 // pred_check_branch
        %164 = sbr.rel (%p162) target = $region16
      $region15: #{basic_block_3d.1} parent=11 // pred_region
        _
      $region16: #{basic_block_3d.1} parent=11 // pred_fallthru
        _
      // Predicated region
      $region17: #{basic_block_3d.1} parent=11 // pred_check
        %p165 = pneg %p79
      $region18: #{basic_block_3d.1} parent=11 // pred_check_branch
        %167 = sbr.rel (%p165) target = $region20
      $region19: #{basic_block_3d.1} parent=11 // pred_region
        _
      $region20: #{basic_block_3d.1} parent=11 // pred_fallthru
        _
      // Predicated region
      $region21: #{basic_block_3d.1} parent=11 // pred_check
        %p168 = pneg %p100
      $region22: #{basic_block_3d.1} parent=11 // pred_check_branch
        %170 = sbr.rel (%p168) target = $region24
      $region23: #{basic_block_3d.1} parent=11 // pred_region
        _
      $region24: #{basic_block_3d.1} parent=11 // pred_fallthru
        _
      // Predicated region
      $region25: #{basic_block_3d.1} parent=11 // pred_check
        %p171 = pneg %p121
      $region26: #{basic_block_3d.1} parent=11 // pred_check_branch
        %173 = sbr.rel (%p171) target = $region28
      $region27: #{basic_block_3d.1} parent=11 // pred_region
        _
      $region28: #{basic_block_3d.1} parent=11 // pred_fallthru
        _
    $region12: #{basic_block_3d.1} parent=5 // pred_fallthru
      _
    %p174 = scmp.lt.s32.totalorder %s11, 2
    // Predicated region
    $region29: #{basic_block_3d.1} parent=5 // pred_check
      %p175 = pneg %p174
    $region30: #{basic_block_3d.1} parent=5 // pred_check_branch
      %177 = sbr.rel (%p175) target = $region32
    $region31: #{basic_block_3d.1} parent=5 // pred_region
      // Predicated region
      $region33: #{basic_block_3d.1} parent=31 // pred_check
        %p178 = pneg %p31
      $region34: #{basic_block_3d.1} parent=31 // pred_check_branch
        %180 = sbr.rel (%p178) target = $region36
      $region35: #{basic_block_3d.1} parent=31 // pred_region
        %p181 = scmp.lt.s32.totalorder %s11, 1
        %s182 = scalar_select %p181, %s11, 1
        %s183 = smul.addr %s182, 4
        %s184 = smul.addr %s183, 8
        %s185 = scalar_lea.vmem %s0, %s184
      $region36: #{basic_block_3d.1} parent=31 // pred_fallthru
        _
    $region32: #{basic_block_3d.1} parent=5 // pred_fallthru
      _
    %p186 = scmp.le.s32.totalorder 1, %s11
    %p187 = scmp.lt.s32.totalorder %s11, 3
    %p188 = pnand %p186, %p187
    %p189 = pneg %p188
    // Predicated region
    $region37: #{basic_block_3d.1} parent=5 // pred_check
      _
    $region38: #{basic_block_3d.1} parent=5 // pred_check_branch
      %191 = sbr.rel (%p188) target = $region40
    $region39: #{basic_block_3d.1} parent=5 // pred_region
      %s192 = ssub.s32 %s11, 1
      %p193 = scmp.lt.s32.totalorder %s16, 1
      %s194 = scalar_select %p193, %s16, 1
      %s195 = smul.addr %s194, 4
      %s196 = smul.addr %s195, 8
      %s197 = scalar_lea.vmem %s0, %s196
      %p198 = pneg %p37
      %p199 = pneg %p34
      %p200 = pneg %p58
      %p201 = pneg %p55
      %p202 = pneg %p79
      %p203 = pneg %p76
      %p204 = pneg %p100
      %p205 = pneg %p97
      %p206 = pneg %p121
      %p207 = pneg %p118
      %p208 = pneg %p147
      %p209 = pneg %p144
      %p210 = scmp.lt.s32.totalorder %s16, 1
      %s211 = scalar_select %p210, %s16, 1
      %s212 = smul.addr %s211, 4
      %s213 = smul.addr %s212, 8
      %s214 = scalar_lea.vmem %s5, %s213
      %p215 = scmp.lt.s32.totalorder %s16, 1
      %s216 = scalar_select %p215, %s16, 1
      %s217 = smul.addr %s216, 4
      %s218 = smul.addr %s217, 8
      %s219 = scalar_lea.vmem %s0, %s218
      %p220 = scmp.lt.s32.totalorder %s16, 1
      %s221 = scalar_select %p220, %s16, 1
      %s222 = smul.addr %s221, 4
      %s223 = smul.addr %s222, 8
      %s224 = scalar_lea.vmem %s5, %s223
      %v226 = vld [vmem:[%s219] sm:$0xff]
      %v227 = vld [vmem:[%s219 + $0x8] sm:$0xff]
      %v228 = vld [vmem:[%s219 + $0x10] sm:$0xff]
      %v229 = vld [vmem:[%s219 + $0x18] sm:$0xff]
      %v230 = vld [vmem:[%s4] sm:$0xff]
      %v231 = vld [vmem:[%s4 + $0x8] sm:$0xff]
      %232 = vrot.lane.b32.xlu0 %v226, 73
      %v233 = vpop.permute.xlu0 %232
      %234 = vrot.lane.b32.xlu0 %v227, 73
      %v235 = vpop.permute.xlu0 %234
      %236 = vrot.lane.b32.xlu0 %v228, 73
      %v237 = vpop.permute.xlu0 %236
      %238 = vrot.lane.b32.xlu0 %v229, 73
      %v239 = vpop.permute.xlu0 %238
      %v240 = vlaneseq
      %v241 = vand.u32 %v240, 127
      %vm242 = vcmp.lt.s32.totalorder %v241, 73
      %v243 = vsel %vm242, %v237, %v239
      %v244 = vsel %vm242, %v235, %v237
      %v245 = vsel %vm242, %v233, %v235
      %v246 = vsel %vm242, %v239, %v233
      %v247 = vld [vmem:[%s1] sm:$0xf]
      %v249 = vlaneseq
      %v250 = vshrl.u32 %v249, 7
      %v251 = vsub.s32 0, %v250
      %v252 = vrot.slane %v247, %v251
      %v253 = vlaneseq
      %v254 = vshrl.u32 %v253, 7
      %v255 = vsub.s32 1, %v254
      %v256 = vrot.slane %v247, %v255
      %v257 = vlaneseq
      %v258 = vshrl.u32 %v257, 7
      %v259 = vsub.s32 2, %v258
      %v260 = vrot.slane %v247, %v259
      %v261 = vlaneseq
      %v262 = vshrl.u32 %v261, 7
      %v263 = vsub.s32 3, %v262
      %v264 = vrot.slane %v247, %v263
      %v269 = vmul.f32 %v246, %v252
      %v270 = vmul.f32 %v245, %v256
      %v271 = vmul.f32 %v244, %v260
      %v272 = vmul.f32 %v243, %v264
      %v273 = vpack.c.bf16 %v269, %v269
      %v274 = vpack.c.bf16 %v270, %v270
      %v275 = vpack.c.bf16 %v271, %v271
      %v276 = vpack.c.bf16 %v272, %v272
      %v281 = vunpack.c.l.b16 %v273
      %v282 = vunpack.c.l.b16 %v274
      %v283 = vunpack.c.l.b16 %v275
      %v284 = vunpack.c.l.b16 %v276
      %v285 = vpack.c.b16 %v282, %v281
      %v286 = vpack.c.b16 %v284, %v283
      %289 = vst [vmem:[#allocation2] sm:$0xff] %v285
      %290 = vst [vmem:[#allocation2 + $0x8] sm:$0xff] %v286
      %291 = vrot.lane.b32.xlu0 %v226, 72
      %v292 = vpop.permute.xlu0 %291
      %293 = vrot.lane.b32.xlu0 %v227, 72
      %v294 = vpop.permute.xlu0 %293
      %295 = vrot.lane.b32.xlu0 %v228, 72
      %v296 = vpop.permute.xlu0 %295
      %297 = vrot.lane.b32.xlu0 %v229, 72
      %v298 = vpop.permute.xlu0 %297
      %vm299 = vcmp.lt.s32.totalorder %v241, 72
      %v300 = vsel %vm299, %v296, %v298
      %v301 = vsel %vm299, %v294, %v296
      %v302 = vsel %vm299, %v292, %v294
      %v303 = vsel %vm299, %v298, %v292
      %s304 = scalar_lea.vmem %s1, 4
      %v305 = vld [vmem:[%s304] sm:$0xf]
      %v307 = vlaneseq
      %v308 = vshrl.u32 %v307, 7
      %v309 = vsub.s32 0, %v308
      %v310 = vrot.slane %v305, %v309
      %v311 = vlaneseq
      %v312 = vshrl.u32 %v311, 7
      %v313 = vsub.s32 1, %v312
      %v314 = vrot.slane %v305, %v313
      %v315 = vlaneseq
      %v316 = vshrl.u32 %v315, 7
      %v317 = vsub.s32 2, %v316
      %v318 = vrot.slane %v305, %v317
      %v319 = vlaneseq
      %v320 = vshrl.u32 %v319, 7
      %v321 = vsub.s32 3, %v320
      %v322 = vrot.slane %v305, %v321
      %v327 = vmul.f32 %v303, %v310
      %v328 = vmul.f32 %v302, %v314
      %v329 = vmul.f32 %v301, %v318
      %v330 = vmul.f32 %v300, %v322
      %v331 = vpack.c.bf16 %v327, %v327
      %v332 = vpack.c.bf16 %v328, %v328
      %v333 = vpack.c.bf16 %v329, %v329
      %v334 = vpack.c.bf16 %v330, %v330
      %v339 = vunpack.c.l.b16 %v331
      %v340 = vunpack.c.l.b16 %v332
      %v341 = vunpack.c.l.b16 %v333
      %v342 = vunpack.c.l.b16 %v334
      %v343 = vpack.c.b16 %v340, %v339
      %v344 = vpack.c.b16 %v342, %v341
      %347 = vst [vmem:[#allocation2 + $0x10] sm:$0xff] %v343
      %348 = vst [vmem:[#allocation2 + $0x18] sm:$0xff] %v344
      %349 = vrot.lane.b32.xlu0 %v226, 71
      %v350 = vpop.permute.xlu0 %349
      %351 = vrot.lane.b32.xlu0 %v227, 71
      %v352 = vpop.permute.xlu0 %351
      %353 = vrot.lane.b32.xlu0 %v228, 71
      %v354 = vpop.permute.xlu0 %353
      %355 = vrot.lane.b32.xlu0 %v229, 71
      %v356 = vpop.permute.xlu0 %355
      %vm357 = vcmp.lt.s32.totalorder %v241, 71
      %v358 = vsel %vm357, %v354, %v356
      %v359 = vsel %vm357, %v352, %v354
      %v360 = vsel %vm357, %v350, %v352
      %v361 = vsel %vm357, %v356, %v350
      %s362 = scalar_lea.vmem %s1, 8
      %v363 = vld [vmem:[%s362] sm:$0xf]
      %v365 = vlaneseq
      %v366 = vshrl.u32 %v365, 7
      %v367 = vsub.s32 0, %v366
      %v368 = vrot.slane %v363, %v367
      %v369 = vlaneseq
      %v370 = vshrl.u32 %v369, 7
      %v371 = vsub.s32 1, %v370
      %v372 = vrot.slane %v363, %v371
      %v373 = vlaneseq
      %v374 = vshrl.u32 %v373, 7
      %v375 = vsub.s32 2, %v374
      %v376 = vrot.slane %v363, %v375
      %v377 = vlaneseq
      %v378 = vshrl.u32 %v377, 7
      %v379 = vsub.s32 3, %v378
      %v380 = vrot.slane %v363, %v379
      %v385 = vmul.f32 %v361, %v368
      %v386 = vmul.f32 %v360, %v372
      %v387 = vmul.f32 %v359, %v376
      %v388 = vmul.f32 %v358, %v380
      %v389 = vpack.c.bf16 %v385, %v385
      %v390 = vpack.c.bf16 %v386, %v386
      %v391 = vpack.c.bf16 %v387, %v387
      %v392 = vpack.c.bf16 %v388, %v388
      %v397 = vunpack.c.l.b16 %v389
      %v398 = vunpack.c.l.b16 %v390
      %v399 = vunpack.c.l.b16 %v391
      %v400 = vunpack.c.l.b16 %v392
      %v401 = vpack.c.b16 %v398, %v397
      %v402 = vpack.c.b16 %v400, %v399
      %405 = vst [vmem:[#allocation2 + $0x20] sm:$0xff] %v401
      %406 = vst [vmem:[#allocation2 + $0x28] sm:$0xff] %v402
      %407 = vrot.lane.b32.xlu0 %v226, 65
      %v408 = vpop.permute.xlu0 %407
      %409 = vrot.lane.b32.xlu0 %v227, 65
      %v410 = vpop.permute.xlu0 %409
      %411 = vrot.lane.b32.xlu0 %v228, 65
      %v412 = vpop.permute.xlu0 %411
      %413 = vrot.lane.b32.xlu0 %v229, 65
      %v414 = vpop.permute.xlu0 %413
      %vm415 = vcmp.lt.s32.totalorder %v241, 65
      %v416 = vsel %vm415, %v412, %v414
      %v417 = vsel %vm415, %v410, %v412
      %v418 = vsel %vm415, %v408, %v410
      %v419 = vsel %vm415, %v414, %v408
      %s420 = scalar_lea.vmem %s1, 12
      %v421 = vld [vmem:[%s420] sm:$0xf]
      %v423 = vlaneseq
      %v424 = vshrl.u32 %v423, 7
      %v425 = vsub.s32 0, %v424
      %v426 = vrot.slane %v421, %v425
      %v427 = vlaneseq
      %v428 = vshrl.u32 %v427, 7
      %v429 = vsub.s32 1, %v428
      %v430 = vrot.slane %v421, %v429
      %v431 = vlaneseq
      %v432 = vshrl.u32 %v431, 7
      %v433 = vsub.s32 2, %v432
      %v434 = vrot.slane %v421, %v433
      %v435 = vlaneseq
      %v436 = vshrl.u32 %v435, 7
      %v437 = vsub.s32 3, %v436
      %v438 = vrot.slane %v421, %v437
      %v443 = vmul.f32 %v419, %v426
      %v444 = vmul.f32 %v418, %v430
      %v445 = vmul.f32 %v417, %v434
      %v446 = vmul.f32 %v416, %v438
      %v447 = vpack.c.bf16 %v443, %v443
      %v448 = vpack.c.bf16 %v444, %v444
      %v449 = vpack.c.bf16 %v445, %v445
      %v450 = vpack.c.bf16 %v446, %v446
      %v455 = vunpack.c.l.b16 %v447
      %v456 = vunpack.c.l.b16 %v448
      %v457 = vunpack.c.l.b16 %v449
      %v458 = vunpack.c.l.b16 %v450
      %v459 = vpack.c.b16 %v456, %v455
      %v460 = vpack.c.b16 %v458, %v457
      %463 = vst [vmem:[#allocation2 + $0x30] sm:$0xff] %v459
      %464 = vst [vmem:[#allocation2 + $0x38] sm:$0xff] %v460
      %465 = vrot.lane.b32.xlu0 %v226, 64
      %v466 = vpop.permute.xlu0 %465
      %467 = vrot.lane.b32.xlu0 %v227, 64
      %v468 = vpop.permute.xlu0 %467
      %469 = vrot.lane.b32.xlu0 %v228, 64
      %v470 = vpop.permute.xlu0 %469
      %471 = vrot.lane.b32.xlu0 %v229, 64
      %v472 = vpop.permute.xlu0 %471
      %vm473 = vcmp.lt.s32.totalorder %v241, 64
      %v474 = vsel %vm473, %v470, %v472
      %v475 = vsel %vm473, %v468, %v470
      %v476 = vsel %vm473, %v466, %v468
      %v477 = vsel %vm473, %v472, %v466
      %s478 = scalar_lea.vmem %s1, 16
      %v479 = vld [vmem:[%s478] sm:$0xf]
      %v481 = vlaneseq
      %v482 = vshrl.u32 %v481, 7
      %v483 = vsub.s32 0, %v482
      %v484 = vrot.slane %v479, %v483
      %v485 = vlaneseq
      %v486 = vshrl.u32 %v485, 7
      %v487 = vsub.s32 1, %v486
      %v488 = vrot.slane %v479, %v487
      %v489 = vlaneseq
      %v490 = vshrl.u32 %v489, 7
      %v491 = vsub.s32 2, %v490
      %v492 = vrot.slane %v479, %v491
      %v493 = vlaneseq
      %v494 = vshrl.u32 %v493, 7
      %v495 = vsub.s32 3, %v494
      %v496 = vrot.slane %v479, %v495
      %v501 = vmul.f32 %v477, %v484
      %v502 = vmul.f32 %v476, %v488
      %v503 = vmul.f32 %v475, %v492
      %v504 = vmul.f32 %v474, %v496
      %v505 = vpack.c.bf16 %v501, %v501
      %v506 = vpack.c.bf16 %v502, %v502
      %v507 = vpack.c.bf16 %v503, %v503
      %v508 = vpack.c.bf16 %v504, %v504
      %v513 = vunpack.c.l.b16 %v505
      %v514 = vunpack.c.l.b16 %v506
      %v515 = vunpack.c.l.b16 %v507
      %v516 = vunpack.c.l.b16 %v508
      %v517 = vpack.c.b16 %v514, %v513
      %v518 = vpack.c.b16 %v516, %v515
      %521 = vst [vmem:[#allocation2 + $0x40] sm:$0xff] %v517
      %522 = vst [vmem:[#allocation2 + $0x48] sm:$0xff] %v518
      %523 = vrot.lane.b32.xlu0 %v226, 63
      %v524 = vpop.permute.xlu0 %523
      %525 = vrot.lane.b32.xlu0 %v227, 63
      %v526 = vpop.permute.xlu0 %525
      %527 = vrot.lane.b32.xlu0 %v228, 63
      %v528 = vpop.permute.xlu0 %527
      %529 = vrot.lane.b32.xlu0 %v229, 63
      %v530 = vpop.permute.xlu0 %529
      %vm531 = vcmp.lt.s32.totalorder %v241, 63
      %v532 = vsel %vm531, %v528, %v530
      %v533 = vsel %vm531, %v526, %v528
      %v534 = vsel %vm531, %v524, %v526
      %v535 = vsel %vm531, %v530, %v524
      %s536 = scalar_lea.vmem %s1, 20
      %v537 = vld [vmem:[%s536] sm:$0xf]
      %v539 = vlaneseq
      %v540 = vshrl.u32 %v539, 7
      %v541 = vsub.s32 0, %v540
      %v542 = vrot.slane %v537, %v541
      %v543 = vlaneseq
      %v544 = vshrl.u32 %v543, 7
      %v545 = vsub.s32 1, %v544
      %v546 = vrot.slane %v537, %v545
      %v547 = vlaneseq
      %v548 = vshrl.u32 %v547, 7
      %v549 = vsub.s32 2, %v548
      %v550 = vrot.slane %v537, %v549
      %v551 = vlaneseq
      %v552 = vshrl.u32 %v551, 7
      %v553 = vsub.s32 3, %v552
      %v554 = vrot.slane %v537, %v553
      %v559 = vmul.f32 %v535, %v542
      %v560 = vmul.f32 %v534, %v546
      %v561 = vmul.f32 %v533, %v550
      %v562 = vmul.f32 %v532, %v554
      %v563 = vpack.c.bf16 %v559, %v559
      %v564 = vpack.c.bf16 %v560, %v560
      %v565 = vpack.c.bf16 %v561, %v561
      %v566 = vpack.c.bf16 %v562, %v562
      %v571 = vunpack.c.l.b16 %v563
      %v572 = vunpack.c.l.b16 %v564
      %v573 = vunpack.c.l.b16 %v565
      %v574 = vunpack.c.l.b16 %v566
      %v575 = vpack.c.b16 %v572, %v571
      %v576 = vpack.c.b16 %v574, %v573
      %579 = vst [vmem:[#allocation2 + $0x50] sm:$0xff] %v575
      %580 = vst [vmem:[#allocation2 + $0x58] sm:$0xff] %v576
      %581 = vrot.lane.b32.xlu0 %v226, 57
      %v582 = vpop.permute.xlu0 %581
      %583 = vrot.lane.b32.xlu0 %v227, 57
      %v584 = vpop.permute.xlu0 %583
      %585 = vrot.lane.b32.xlu0 %v228, 57
      %v586 = vpop.permute.xlu0 %585
      %587 = vrot.lane.b32.xlu0 %v229, 57
      %v588 = vpop.permute.xlu0 %587
      %vm589 = vcmp.lt.s32.totalorder %v241, 57
      %v590 = vsel %vm589, %v586, %v588
      %v591 = vsel %vm589, %v584, %v586
      %v592 = vsel %vm589, %v582, %v584
      %v593 = vsel %vm589, %v588, %v582
      %s594 = scalar_lea.vmem %s1, 24
      %v595 = vld [vmem:[%s594] sm:$0xf]
      %v597 = vlaneseq
      %v598 = vshrl.u32 %v597, 7
      %v599 = vsub.s32 0, %v598
      %v600 = vrot.slane %v595, %v599
      %v601 = vlaneseq
      %v602 = vshrl.u32 %v601, 7
      %v603 = vsub.s32 1, %v602
      %v604 = vrot.slane %v595, %v603
      %v605 = vlaneseq
      %v606 = vshrl.u32 %v605, 7
      %v607 = vsub.s32 2, %v606
      %v608 = vrot.slane %v595, %v607
      %v609 = vlaneseq
      %v610 = vshrl.u32 %v609, 7
      %v611 = vsub.s32 3, %v610
      %v612 = vrot.slane %v595, %v611
      %v617 = vmul.f32 %v593, %v600
      %v618 = vmul.f32 %v592, %v604
      %v619 = vmul.f32 %v591, %v608
      %v620 = vmul.f32 %v590, %v612
      %v621 = vpack.c.bf16 %v617, %v617
      %v622 = vpack.c.bf16 %v618, %v618
      %v623 = vpack.c.bf16 %v619, %v619
      %v624 = vpack.c.bf16 %v620, %v620
      %v629 = vunpack.c.l.b16 %v621
      %v630 = vunpack.c.l.b16 %v622
      %v631 = vunpack.c.l.b16 %v623
      %v632 = vunpack.c.l.b16 %v624
      %v633 = vpack.c.b16 %v630, %v629
      %v634 = vpack.c.b16 %v632, %v631
      %637 = vst [vmem:[#allocation2 + $0x60] sm:$0xff] %v633
      %638 = vst [vmem:[#allocation2 + $0x68] sm:$0xff] %v634
      %639 = vrot.lane.b32.xlu0 %v226, 56
      %v640 = vpop.permute.xlu0 %639
      %641 = vrot.lane.b32.xlu0 %v227, 56
      %v642 = vpop.permute.xlu0 %641
      %643 = vrot.lane.b32.xlu0 %v228, 56
      %v644 = vpop.permute.xlu0 %643
      %645 = vrot.lane.b32.xlu0 %v229, 56
      %v646 = vpop.permute.xlu0 %645
      %vm647 = vcmp.lt.s32.totalorder %v241, 56
      %v648 = vsel %vm647, %v644, %v646
      %v649 = vsel %vm647, %v642, %v644
      %v650 = vsel %vm647, %v640, %v642
      %v651 = vsel %vm647, %v646, %v640
      %s652 = scalar_lea.vmem %s1, 28
      %v653 = vld [vmem:[%s652] sm:$0xf]
      %v655 = vlaneseq
      %v656 = vshrl.u32 %v655, 7
      %v657 = vsub.s32 0, %v656
      %v658 = vrot.slane %v653, %v657
      %v659 = vlaneseq
      %v660 = vshrl.u32 %v659, 7
      %v661 = vsub.s32 1, %v660
      %v662 = vrot.slane %v653, %v661
      %v663 = vlaneseq
      %v664 = vshrl.u32 %v663, 7
      %v665 = vsub.s32 2, %v664
      %v666 = vrot.slane %v653, %v665
      %v667 = vlaneseq
      %v668 = vshrl.u32 %v667, 7
      %v669 = vsub.s32 3, %v668
      %v670 = vrot.slane %v653, %v669
      %v675 = vmul.f32 %v651, %v658
      %v676 = vmul.f32 %v650, %v662
      %v677 = vmul.f32 %v649, %v666
      %v678 = vmul.f32 %v648, %v670
      %v679 = vpack.c.bf16 %v675, %v675
      %v680 = vpack.c.bf16 %v676, %v676
      %v681 = vpack.c.bf16 %v677, %v677
      %v682 = vpack.c.bf16 %v678, %v678
      %v687 = vunpack.c.l.b16 %v679
      %v688 = vunpack.c.l.b16 %v680
      %v689 = vunpack.c.l.b16 %v681
      %v690 = vunpack.c.l.b16 %v682
      %v691 = vpack.c.b16 %v688, %v687
      %v692 = vpack.c.b16 %v690, %v689
      %695 = vst [vmem:[#allocation2 + $0x70] sm:$0xff] %v691
      %696 = vst [vmem:[#allocation2 + $0x78] sm:$0xff] %v692
      %697 = vrot.lane.b32.xlu0 %v226, 55
      %v698 = vpop.permute.xlu0 %697
      %699 = vrot.lane.b32.xlu0 %v227, 55
      %v700 = vpop.permute.xlu0 %699
      %701 = vrot.lane.b32.xlu0 %v228, 55
      %v702 = vpop.permute.xlu0 %701
      %703 = vrot.lane.b32.xlu0 %v229, 55
      %v704 = vpop.permute.xlu0 %703
      %vm705 = vcmp.lt.s32.totalorder %v241, 55
      %v706 = vsel %vm705, %v702, %v704
      %v707 = vsel %vm705, %v700, %v702
      %v708 = vsel %vm705, %v698, %v700
      %v709 = vsel %vm705, %v704, %v698
      %s710 = scalar_lea.vmem %s1, 32
      %v711 = vld [vmem:[%s710] sm:$0xf]
      %v713 = vlaneseq
      %v714 = vshrl.u32 %v713, 7
      %v715 = vsub.s32 0, %v714
      %v716 = vrot.slane %v711, %v715
      %v717 = vlaneseq
      %v718 = vshrl.u32 %v717, 7
      %v719 = vsub.s32 1, %v718
      %v720 = vrot.slane %v711, %v719
      %v721 = vlaneseq
      %v722 = vshrl.u32 %v721, 7
      %v723 = vsub.s32 2, %v722
      %v724 = vrot.slane %v711, %v723
      %v725 = vlaneseq
      %v726 = vshrl.u32 %v725, 7
      %v727 = vsub.s32 3, %v726
      %v728 = vrot.slane %v711, %v727
      %v733 = vmul.f32 %v709, %v716
      %v734 = vmul.f32 %v708, %v720
      %v735 = vmul.f32 %v707, %v724
      %v736 = vmul.f32 %v706, %v728
      %v737 = vpack.c.bf16 %v733, %v733
      %v738 = vpack.c.bf16 %v734, %v734
      %v739 = vpack.c.bf16 %v735, %v735
      %v740 = vpack.c.bf16 %v736, %v736
      %v745 = vunpack.c.l.b16 %v737
      %v746 = vunpack.c.l.b16 %v738
      %v747 = vunpack.c.l.b16 %v739
      %v748 = vunpack.c.l.b16 %v740
      %v749 = vpack.c.b16 %v746, %v745
      %v750 = vpack.c.b16 %v748, %v747
      %753 = vst [vmem:[#allocation2 + $0x80] sm:$0xff] %v749
      %754 = vst [vmem:[#allocation2 + $0x88] sm:$0xff] %v750
      %755 = vrot.lane.b32.xlu0 %v226, 9
      %v756 = vpop.permute.xlu0 %755
      %757 = vrot.lane.b32.xlu0 %v227, 9
      %v758 = vpop.permute.xlu0 %757
      %759 = vrot.lane.b32.xlu0 %v228, 9
      %v760 = vpop.permute.xlu0 %759
      %761 = vrot.lane.b32.xlu0 %v229, 9
      %v762 = vpop.permute.xlu0 %761
      %vm763 = vcmp.lt.s32.totalorder %v241, 9
      %v764 = vsel %vm763, %v760, %v762
      %v765 = vsel %vm763, %v758, %v760
      %v766 = vsel %vm763, %v756, %v758
      %v767 = vsel %vm763, %v762, %v756
      %s768 = scalar_lea.vmem %s1, 36
      %v769 = vld [vmem:[%s768] sm:$0xf]
      %v771 = vlaneseq
      %v772 = vshrl.u32 %v771, 7
      %v773 = vsub.s32 0, %v772
      %v774 = vrot.slane %v769, %v773
      %v775 = vlaneseq
      %v776 = vshrl.u32 %v775, 7
      %v777 = vsub.s32 1, %v776
      %v778 = vrot.slane %v769, %v777
      %v779 = vlaneseq
      %v780 = vshrl.u32 %v779, 7
      %v781 = vsub.s32 2, %v780
      %v782 = vrot.slane %v769, %v781
      %v783 = vlaneseq
      %v784 = vshrl.u32 %v783, 7
      %v785 = vsub.s32 3, %v784
      %v786 = vrot.slane %v769, %v785
      %v791 = vmul.f32 %v767, %v774
      %v792 = vmul.f32 %v766, %v778
      %v793 = vmul.f32 %v765, %v782
      %v794 = vmul.f32 %v764, %v786
      %v795 = vpack.c.bf16 %v791, %v791
      %v796 = vpack.c.bf16 %v792, %v792
      %v797 = vpack.c.bf16 %v793, %v793
      %v798 = vpack.c.bf16 %v794, %v794
      %v803 = vunpack.c.l.b16 %v795
      %v804 = vunpack.c.l.b16 %v796
      %v805 = vunpack.c.l.b16 %v797
      %v806 = vunpack.c.l.b16 %v798
      %v807 = vpack.c.b16 %v804, %v803
      %v808 = vpack.c.b16 %v806, %v805
      %811 = vst [vmem:[#allocation2 + $0x90] sm:$0xff] %v807
      %812 = vst [vmem:[#allocation2 + $0x98] sm:$0xff] %v808
      %813 = vrot.lane.b32.xlu0 %v226, 8
      %v814 = vpop.permute.xlu0 %813
      %815 = vrot.lane.b32.xlu0 %v227, 8
      %v816 = vpop.permute.xlu0 %815
      %817 = vrot.lane.b32.xlu0 %v228, 8
      %v818 = vpop.permute.xlu0 %817
      %819 = vrot.lane.b32.xlu0 %v229, 8
      %v820 = vpop.permute.xlu0 %819
      %vm821 = vcmp.lt.s32.totalorder %v241, 8
      %v822 = vsel %vm821, %v818, %v820
      %v823 = vsel %vm821, %v816, %v818
      %v824 = vsel %vm821, %v814, %v816
      %v825 = vsel %vm821, %v820, %v814
      %s826 = scalar_lea.vmem %s1, 40
      %v827 = vld [vmem:[%s826] sm:$0xf]
      %v829 = vlaneseq
      %v830 = vshrl.u32 %v829, 7
      %v831 = vsub.s32 0, %v830
      %v832 = vrot.slane %v827, %v831
      %v833 = vlaneseq
      %v834 = vshrl.u32 %v833, 7
      %v835 = vsub.s32 1, %v834
      %v836 = vrot.slane %v827, %v835
      %v837 = vlaneseq
      %v838 = vshrl.u32 %v837, 7
      %v839 = vsub.s32 2, %v838
      %v840 = vrot.slane %v827, %v839
      %v841 = vlaneseq
      %v842 = vshrl.u32 %v841, 7
      %v843 = vsub.s32 3, %v842
      %v844 = vrot.slane %v827, %v843
      %v849 = vmul.f32 %v825, %v832
      %v850 = vmul.f32 %v824, %v836
      %v851 = vmul.f32 %v823, %v840
      %v852 = vmul.f32 %v822, %v844
      %v853 = vpack.c.bf16 %v849, %v849
      %v854 = vpack.c.bf16 %v850, %v850
      %v855 = vpack.c.bf16 %v851, %v851
      %v856 = vpack.c.bf16 %v852, %v852
      %v861 = vunpack.c.l.b16 %v853
      %v862 = vunpack.c.l.b16 %v854
      %v863 = vunpack.c.l.b16 %v855
      %v864 = vunpack.c.l.b16 %v856
      %v865 = vpack.c.b16 %v862, %v861
      %v866 = vpack.c.b16 %v864, %v863
      %869 = vst [vmem:[#allocation2 + $0xa0] sm:$0xff] %v865
      %870 = vst [vmem:[#allocation2 + $0xa8] sm:$0xff] %v866
      %871 = vrot.lane.b32.xlu0 %v226, 7
      %v872 = vpop.permute.xlu0 %871
      %873 = vrot.lane.b32.xlu0 %v227, 7
      %v874 = vpop.permute.xlu0 %873
      %875 = vrot.lane.b32.xlu0 %v228, 7
      %v876 = vpop.permute.xlu0 %875
      %877 = vrot.lane.b32.xlu0 %v229, 7
      %v878 = vpop.permute.xlu0 %877
      %vm879 = vcmp.lt.s32.totalorder %v241, 7
      %v880 = vsel %vm879, %v876, %v878
      %v881 = vsel %vm879, %v874, %v876
      %v882 = vsel %vm879, %v872, %v874
      %v883 = vsel %vm879, %v878, %v872
      %s884 = scalar_lea.vmem %s1, 44
      %v885 = vld [vmem:[%s884] sm:$0xf]
      %v887 = vlaneseq
      %v888 = vshrl.u32 %v887, 7
      %v889 = vsub.s32 0, %v888
      %v890 = vrot.slane %v885, %v889
      %v891 = vlaneseq
      %v892 = vshrl.u32 %v891, 7
      %v893 = vsub.s32 1, %v892
      %v894 = vrot.slane %v885, %v893
      %v895 = vlaneseq
      %v896 = vshrl.u32 %v895, 7
      %v897 = vsub.s32 2, %v896
      %v898 = vrot.slane %v885, %v897
      %v899 = vlaneseq
      %v900 = vshrl.u32 %v899, 7
      %v901 = vsub.s32 3, %v900
      %v902 = vrot.slane %v885, %v901
      %v907 = vmul.f32 %v883, %v890
      %v908 = vmul.f32 %v882, %v894
      %v909 = vmul.f32 %v881, %v898
      %v910 = vmul.f32 %v880, %v902
      %v911 = vpack.c.bf16 %v907, %v907
      %v912 = vpack.c.bf16 %v908, %v908
      %v913 = vpack.c.bf16 %v909, %v909
      %v914 = vpack.c.bf16 %v910, %v910
      %v919 = vunpack.c.l.b16 %v911
      %v920 = vunpack.c.l.b16 %v912
      %v921 = vunpack.c.l.b16 %v913
      %v922 = vunpack.c.l.b16 %v914
      %v923 = vpack.c.b16 %v920, %v919
      %v924 = vpack.c.b16 %v922, %v921
      %927 = vst [vmem:[#allocation2 + $0xb0] sm:$0xff] %v923
      %928 = vst [vmem:[#allocation2 + $0xb8] sm:$0xff] %v924
      %929 = vrot.lane.b32.xlu0 %v226, 1
      %v930 = vpop.permute.xlu0 %929
      %931 = vrot.lane.b32.xlu0 %v227, 1
      %v932 = vpop.permute.xlu0 %931
      %933 = vrot.lane.b32.xlu0 %v228, 1
      %v934 = vpop.permute.xlu0 %933
      %935 = vrot.lane.b32.xlu0 %v229, 1
      %v936 = vpop.permute.xlu0 %935
      %vm937 = vcmp.lt.s32.totalorder %v241, 1
      %v938 = vsel %vm937, %v934, %v936
      %v939 = vsel %vm937, %v932, %v934
      %v940 = vsel %vm937, %v930, %v932
      %v941 = vsel %vm937, %v936, %v930
      %s942 = scalar_lea.vmem %s1, 48
      %v943 = vld [vmem:[%s942] sm:$0xf]
      %v945 = vlaneseq
      %v946 = vshrl.u32 %v945, 7
      %v947 = vsub.s32 0, %v946
      %v948 = vrot.slane %v943, %v947
      %v949 = vlaneseq
      %v950 = vshrl.u32 %v949, 7
      %v951 = vsub.s32 1, %v950
      %v952 = vrot.slane %v943, %v951
      %v953 = vlaneseq
      %v954 = vshrl.u32 %v953, 7
      %v955 = vsub.s32 2, %v954
      %v956 = vrot.slane %v943, %v955
      %v957 = vlaneseq
      %v958 = vshrl.u32 %v957, 7
      %v959 = vsub.s32 3, %v958
      %v960 = vrot.slane %v943, %v959
      %v965 = vmul.f32 %v941, %v948
      %v966 = vmul.f32 %v940, %v952
      %v967 = vmul.f32 %v939, %v956
      %v968 = vmul.f32 %v938, %v960
      %v969 = vpack.c.bf16 %v965, %v965
      %v970 = vpack.c.bf16 %v966, %v966
      %v971 = vpack.c.bf16 %v967, %v967
      %v972 = vpack.c.bf16 %v968, %v968
      %v977 = vunpack.c.l.b16 %v969
      %v978 = vunpack.c.l.b16 %v970
      %v979 = vunpack.c.l.b16 %v971
      %v980 = vunpack.c.l.b16 %v972
      %v981 = vpack.c.b16 %v978, %v977
      %v982 = vpack.c.b16 %v980, %v979
      %985 = vst [vmem:[#allocation2 + $0xc0] sm:$0xff] %v981
      %986 = vst [vmem:[#allocation2 + $0xc8] sm:$0xff] %v982
      %v987 = vpack.c.bf16 %v226, %v226
      %v988 = vpack.c.bf16 %v227, %v227
      %v989 = vpack.c.bf16 %v228, %v228
      %v990 = vpack.c.bf16 %v229, %v229
      %v995 = vunpack.c.l.b16 %v987
      %v996 = vunpack.c.l.b16 %v988
      %v997 = vunpack.c.l.b16 %v989
      %v998 = vunpack.c.l.b16 %v990
      %v999 = vpack.c.b16 %v996, %v995
      %v1000 = vpack.c.b16 %v998, %v997
      %1003 = vst [vmem:[#allocation2 + $0xd0] sm:$0xff] %v999
      %1004 = vst [vmem:[#allocation2 + $0xd8] sm:$0xff] %v1000
      %1005 = vrot.lane.b32.xlu0 %v226, 127
      %v1006 = vpop.permute.xlu0 %1005
      %1007 = vrot.lane.b32.xlu0 %v227, 127
      %v1008 = vpop.permute.xlu0 %1007
      %1009 = vrot.lane.b32.xlu0 %v228, 127
      %v1010 = vpop.permute.xlu0 %1009
      %1011 = vrot.lane.b32.xlu0 %v229, 127
      %v1012 = vpop.permute.xlu0 %1011
      %vm1013 = vcmp.lt.s32.totalorder %v241, 127
      %v1014 = vsel %vm1013, %v1010, %v1012
      %v1015 = vsel %vm1013, %v1008, %v1010
      %v1016 = vsel %vm1013, %v1006, %v1008
      %v1017 = vsel %vm1013, %v1012, %v1006
      %s1018 = scalar_lea.vmem %s1, 56
      %v1019 = vld [vmem:[%s1018] sm:$0xf]
      %v1021 = vlaneseq
      %v1022 = vshrl.u32 %v1021, 7
      %v1023 = vsub.s32 0, %v1022
      %v1024 = vrot.slane %v1019, %v1023
      %v1025 = vlaneseq
      %v1026 = vshrl.u32 %v1025, 7
      %v1027 = vsub.s32 1, %v1026
      %v1028 = vrot.slane %v1019, %v1027
      %v1029 = vlaneseq
      %v1030 = vshrl.u32 %v1029, 7
      %v1031 = vsub.s32 2, %v1030
      %v1032 = vrot.slane %v1019, %v1031
      %v1033 = vlaneseq
      %v1034 = vshrl.u32 %v1033, 7
      %v1035 = vsub.s32 3, %v1034
      %v1036 = vrot.slane %v1019, %v1035
      %v1041 = vmul.f32 %v1016, %v1024
      %v1042 = vmul.f32 %v1015, %v1028
      %v1043 = vmul.f32 %v1014, %v1032
      %v1044 = vmul.f32 %v1017, %v1036
      %v1045 = vpack.c.bf16 %v1041, %v1041
      %v1046 = vpack.c.bf16 %v1042, %v1042
      %v1047 = vpack.c.bf16 %v1043, %v1043
      %v1048 = vpack.c.bf16 %v1044, %v1044
      %v1053 = vunpack.c.l.b16 %v1045
      %v1054 = vunpack.c.l.b16 %v1046
      %v1055 = vunpack.c.l.b16 %v1047
      %v1056 = vunpack.c.l.b16 %v1048
      %v1057 = vpack.c.b16 %v1054, %v1053
      %v1058 = vpack.c.b16 %v1056, %v1055
      %1061 = vst [vmem:[#allocation2 + $0xe0] sm:$0xff] %v1057
      %1062 = vst [vmem:[#allocation2 + $0xe8] sm:$0xff] %v1058
      %1063 = vrot.lane.b32.xlu0 %v226, 121
      %v1064 = vpop.permute.xlu0 %1063
      %1065 = vrot.lane.b32.xlu0 %v227, 121
      %v1066 = vpop.permute.xlu0 %1065
      %1067 = vrot.lane.b32.xlu0 %v228, 121
      %v1068 = vpop.permute.xlu0 %1067
      %1069 = vrot.lane.b32.xlu0 %v229, 121
      %v1070 = vpop.permute.xlu0 %1069
      %vm1071 = vcmp.lt.s32.totalorder %v241, 121
      %v1072 = vsel %vm1071, %v1068, %v1070
      %v1073 = vsel %vm1071, %v1066, %v1068
      %v1074 = vsel %vm1071, %v1064, %v1066
      %v1075 = vsel %vm1071, %v1070, %v1064
      %s1076 = scalar_lea.vmem %s1, 60
      %v1077 = vld [vmem:[%s1076] sm:$0xf]
      %v1079 = vlaneseq
      %v1080 = vshrl.u32 %v1079, 7
      %v1081 = vsub.s32 0, %v1080
      %v1082 = vrot.slane %v1077, %v1081
      %v1083 = vlaneseq
      %v1084 = vshrl.u32 %v1083, 7
      %v1085 = vsub.s32 1, %v1084
      %v1086 = vrot.slane %v1077, %v1085
      %v1087 = vlaneseq
      %v1088 = vshrl.u32 %v1087, 7
      %v1089 = vsub.s32 2, %v1088
      %v1090 = vrot.slane %v1077, %v1089
      %v1091 = vlaneseq
      %v1092 = vshrl.u32 %v1091, 7
      %v1093 = vsub.s32 3, %v1092
      %v1094 = vrot.slane %v1077, %v1093
      %v1099 = vmul.f32 %v1074, %v1082
      %v1100 = vmul.f32 %v1073, %v1086
      %v1101 = vmul.f32 %v1072, %v1090
      %v1102 = vmul.f32 %v1075, %v1094
      %v1103 = vpack.c.bf16 %v1099, %v1099
      %v1104 = vpack.c.bf16 %v1100, %v1100
      %v1105 = vpack.c.bf16 %v1101, %v1101
      %v1106 = vpack.c.bf16 %v1102, %v1102
      %v1111 = vunpack.c.l.b16 %v1103
      %v1112 = vunpack.c.l.b16 %v1104
      %v1113 = vunpack.c.l.b16 %v1105
      %v1114 = vunpack.c.l.b16 %v1106
      %v1115 = vpack.c.b16 %v1112, %v1111
      %v1116 = vpack.c.b16 %v1114, %v1113
      %1119 = vst [vmem:[#allocation2 + $0xf0] sm:$0xff] %v1115
      %1120 = vst [vmem:[#allocation2 + $0xf8] sm:$0xff] %v1116
      %1121 = vrot.lane.b32.xlu0 %v226, 120
      %v1122 = vpop.permute.xlu0 %1121
      %1123 = vrot.lane.b32.xlu0 %v227, 120
      %v1124 = vpop.permute.xlu0 %1123
      %1125 = vrot.lane.b32.xlu0 %v228, 120
      %v1126 = vpop.permute.xlu0 %1125
      %1127 = vrot.lane.b32.xlu0 %v229, 120
      %v1128 = vpop.permute.xlu0 %1127
      %vm1129 = vcmp.lt.s32.totalorder %v241, 120
      %v1130 = vsel %vm1129, %v1126, %v1128
      %v1131 = vsel %vm1129, %v1124, %v1126
      %v1132 = vsel %vm1129, %v1122, %v1124
      %v1133 = vsel %vm1129, %v1128, %v1122
      %s1134 = scalar_lea.vmem %s1, 64
      %v1135 = vld [vmem:[%s1134] sm:$0xf]
      %v1137 = vlaneseq
      %v1138 = vshrl.u32 %v1137, 7
      %v1139 = vsub.s32 0, %v1138
      %v1140 = vrot.slane %v1135, %v1139
      %v1141 = vlaneseq
      %v1142 = vshrl.u32 %v1141, 7
      %v1143 = vsub.s32 1, %v1142
      %v1144 = vrot.slane %v1135, %v1143
      %v1145 = vlaneseq
      %v1146 = vshrl.u32 %v1145, 7
      %v1147 = vsub.s32 2, %v1146
      %v1148 = vrot.slane %v1135, %v1147
      %v1149 = vlaneseq
      %v1150 = vshrl.u32 %v1149, 7
      %v1151 = vsub.s32 3, %v1150
      %v1152 = vrot.slane %v1135, %v1151
      %v1157 = vmul.f32 %v1132, %v1140
      %v1158 = vmul.f32 %v1131, %v1144
      %v1159 = vmul.f32 %v1130, %v1148
      %v1160 = vmul.f32 %v1133, %v1152
      %v1161 = vpack.c.bf16 %v1157, %v1157
      %v1162 = vpack.c.bf16 %v1158, %v1158
      %v1163 = vpack.c.bf16 %v1159, %v1159
      %v1164 = vpack.c.bf16 %v1160, %v1160
      %v1169 = vunpack.c.l.b16 %v1161
      %v1170 = vunpack.c.l.b16 %v1162
      %v1171 = vunpack.c.l.b16 %v1163
      %v1172 = vunpack.c.l.b16 %v1164
      %v1173 = vpack.c.b16 %v1170, %v1169
      %v1174 = vpack.c.b16 %v1172, %v1171
      %1177 = vst [vmem:[#allocation2 + $0x100] sm:$0xff] %v1173
      %1178 = vst [vmem:[#allocation2 + $0x108] sm:$0xff] %v1174
      %1179 = vrot.lane.b32.xlu0 %v226, 119
      %v1180 = vpop.permute.xlu0 %1179
      %1181 = vrot.lane.b32.xlu0 %v227, 119
      %v1182 = vpop.permute.xlu0 %1181
      %1183 = vrot.lane.b32.xlu0 %v228, 119
      %v1184 = vpop.permute.xlu0 %1183
      %1185 = vrot.lane.b32.xlu0 %v229, 119
      %v1186 = vpop.permute.xlu0 %1185
      %vm1187 = vcmp.lt.s32.totalorder %v241, 119
      %v1188 = vsel %vm1187, %v1184, %v1186
      %v1189 = vsel %vm1187, %v1182, %v1184
      %v1190 = vsel %vm1187, %v1180, %v1182
      %v1191 = vsel %vm1187, %v1186, %v1180
      %s1192 = scalar_lea.vmem %s1, 68
      %v1193 = vld [vmem:[%s1192] sm:$0xf]
      %v1195 = vlaneseq
      %v1196 = vshrl.u32 %v1195, 7
      %v1197 = vsub.s32 0, %v1196
      %v1198 = vrot.slane %v1193, %v1197
      %v1199 = vlaneseq
      %v1200 = vshrl.u32 %v1199, 7
      %v1201 = vsub.s32 1, %v1200
      %v1202 = vrot.slane %v1193, %v1201
      %v1203 = vlaneseq
      %v1204 = vshrl.u32 %v1203, 7
      %v1205 = vsub.s32 2, %v1204
      %v1206 = vrot.slane %v1193, %v1205
      %v1207 = vlaneseq
      %v1208 = vshrl.u32 %v1207, 7
      %v1209 = vsub.s32 3, %v1208
      %v1210 = vrot.slane %v1193, %v1209
      %v1215 = vmul.f32 %v1190, %v1198
      %v1216 = vmul.f32 %v1189, %v1202
      %v1217 = vmul.f32 %v1188, %v1206
      %v1218 = vmul.f32 %v1191, %v1210
      %v1219 = vpack.c.bf16 %v1215, %v1215
      %v1220 = vpack.c.bf16 %v1216, %v1216
      %v1221 = vpack.c.bf16 %v1217, %v1217
      %v1222 = vpack.c.bf16 %v1218, %v1218
      %v1227 = vunpack.c.l.b16 %v1219
      %v1228 = vunpack.c.l.b16 %v1220
      %v1229 = vunpack.c.l.b16 %v1221
      %v1230 = vunpack.c.l.b16 %v1222
      %v1231 = vpack.c.b16 %v1228, %v1227
      %v1232 = vpack.c.b16 %v1230, %v1229
      %1235 = vst [vmem:[#allocation2 + $0x110] sm:$0xff] %v1231
      %1236 = vst [vmem:[#allocation2 + $0x118] sm:$0xff] %v1232
      %s1237 = scalar_lea.vmem %s1, 72
      %v1238 = vld [vmem:[%s1237] sm:$0xf]
      %v1240 = vlaneseq
      %v1241 = vshrl.u32 %v1240, 7
      %v1242 = vsub.s32 0, %v1241
      %v1243 = vrot.slane %v1238, %v1242
      %v1244 = vlaneseq
      %v1245 = vshrl.u32 %v1244, 7
      %v1246 = vsub.s32 1, %v1245
      %v1247 = vrot.slane %v1238, %v1246
      %v1248 = vlaneseq
      %v1249 = vshrl.u32 %v1248, 7
      %v1250 = vsub.s32 2, %v1249
      %v1251 = vrot.slane %v1238, %v1250
      %v1252 = vlaneseq
      %v1253 = vshrl.u32 %v1252, 7
      %v1254 = vsub.s32 3, %v1253
      %v1255 = vrot.slane %v1238, %v1254
      %v1260 = vmul.f32 %v245, %v1243
      %v1261 = vmul.f32 %v244, %v1247
      %v1262 = vmul.f32 %v243, %v1251
      %v1263 = vmul.f32 %v246, %v1255
      %v1264 = vpack.c.bf16 %v1260, %v1260
      %v1265 = vpack.c.bf16 %v1261, %v1261
      %v1266 = vpack.c.bf16 %v1262, %v1262
      %v1267 = vpack.c.bf16 %v1263, %v1263
      %v1272 = vunpack.c.l.b16 %v1264
      %v1273 = vunpack.c.l.b16 %v1265
      %v1274 = vunpack.c.l.b16 %v1266
      %v1275 = vunpack.c.l.b16 %v1267
      %v1276 = vpack.c.b16 %v1273, %v1272
      %v1277 = vpack.c.b16 %v1275, %v1274
      %1280 = vst [vmem:[#allocation2 + $0x120] sm:$0xff] %v1276
      %1281 = vst [vmem:[#allocation2 + $0x128] sm:$0xff] %v1277
      %s1282 = scalar_lea.vmem %s1, 76
      %v1283 = vld [vmem:[%s1282] sm:$0xf]
      %v1285 = vlaneseq
      %v1286 = vshrl.u32 %v1285, 7
      %v1287 = vsub.s32 0, %v1286
      %v1288 = vrot.slane %v1283, %v1287
      %v1289 = vlaneseq
      %v1290 = vshrl.u32 %v1289, 7
      %v1291 = vsub.s32 1, %v1290
      %v1292 = vrot.slane %v1283, %v1291
      %v1293 = vlaneseq
      %v1294 = vshrl.u32 %v1293, 7
      %v1295 = vsub.s32 2, %v1294
      %v1296 = vrot.slane %v1283, %v1295
      %v1297 = vlaneseq
      %v1298 = vshrl.u32 %v1297, 7
      %v1299 = vsub.s32 3, %v1298
      %v1300 = vrot.slane %v1283, %v1299
      %v1305 = vmul.f32 %v302, %v1288
      %v1306 = vmul.f32 %v301, %v1292
      %v1307 = vmul.f32 %v300, %v1296
      %v1308 = vmul.f32 %v303, %v1300
      %v1309 = vpack.c.bf16 %v1305, %v1305
      %v1310 = vpack.c.bf16 %v1306, %v1306
      %v1311 = vpack.c.bf16 %v1307, %v1307
      %v1312 = vpack.c.bf16 %v1308, %v1308
      %v1317 = vunpack.c.l.b16 %v1309
      %v1318 = vunpack.c.l.b16 %v1310
      %v1319 = vunpack.c.l.b16 %v1311
      %v1320 = vunpack.c.l.b16 %v1312
      %v1321 = vpack.c.b16 %v1318, %v1317
      %v1322 = vpack.c.b16 %v1320, %v1319
      %1325 = vst [vmem:[#allocation2 + $0x130] sm:$0xff] %v1321
      %1326 = vst [vmem:[#allocation2 + $0x138] sm:$0xff] %v1322
      %s1327 = scalar_lea.vmem %s1, 80
      %v1328 = vld [vmem:[%s1327] sm:$0xf]
      %v1330 = vlaneseq
      %v1331 = vshrl.u32 %v1330, 7
      %v1332 = vsub.s32 0, %v1331
      %v1333 = vrot.slane %v1328, %v1332
      %v1334 = vlaneseq
      %v1335 = vshrl.u32 %v1334, 7
      %v1336 = vsub.s32 1, %v1335
      %v1337 = vrot.slane %v1328, %v1336
      %v1338 = vlaneseq
      %v1339 = vshrl.u32 %v1338, 7
      %v1340 = vsub.s32 2, %v1339
      %v1341 = vrot.slane %v1328, %v1340
      %v1342 = vlaneseq
      %v1343 = vshrl.u32 %v1342, 7
      %v1344 = vsub.s32 3, %v1343
      %v1345 = vrot.slane %v1328, %v1344
      %v1350 = vmul.f32 %v360, %v1333
      %v1351 = vmul.f32 %v359, %v1337
      %v1352 = vmul.f32 %v358, %v1341
      %v1353 = vmul.f32 %v361, %v1345
      %v1354 = vpack.c.bf16 %v1350, %v1350
      %v1355 = vpack.c.bf16 %v1351, %v1351
      %v1356 = vpack.c.bf16 %v1352, %v1352
      %v1357 = vpack.c.bf16 %v1353, %v1353
      %v1362 = vunpack.c.l.b16 %v1354
      %v1363 = vunpack.c.l.b16 %v1355
      %v1364 = vunpack.c.l.b16 %v1356
      %v1365 = vunpack.c.l.b16 %v1357
      %v1366 = vpack.c.b16 %v1363, %v1362
      %v1367 = vpack.c.b16 %v1365, %v1364
      %1370 = vst [vmem:[#allocation2 + $0x140] sm:$0xff] %v1366
      %1371 = vst [vmem:[#allocation2 + $0x148] sm:$0xff] %v1367
      %s1372 = scalar_lea.vmem %s1, 84
      %v1373 = vld [vmem:[%s1372] sm:$0xf]
      %v1375 = vlaneseq
      %v1376 = vshrl.u32 %v1375, 7
      %v1377 = vsub.s32 0, %v1376
      %v1378 = vrot.slane %v1373, %v1377
      %v1379 = vlaneseq
      %v1380 = vshrl.u32 %v1379, 7
      %v1381 = vsub.s32 1, %v1380
      %v1382 = vrot.slane %v1373, %v1381
      %v1383 = vlaneseq
      %v1384 = vshrl.u32 %v1383, 7
      %v1385 = vsub.s32 2, %v1384
      %v1386 = vrot.slane %v1373, %v1385
      %v1387 = vlaneseq
      %v1388 = vshrl.u32 %v1387, 7
      %v1389 = vsub.s32 3, %v1388
      %v1390 = vrot.slane %v1373, %v1389
      %v1395 = vmul.f32 %v418, %v1378
      %v1396 = vmul.f32 %v417, %v1382
      %v1397 = vmul.f32 %v416, %v1386
      %v1398 = vmul.f32 %v419, %v1390
      %v1399 = vpack.c.bf16 %v1395, %v1395
      %v1400 = vpack.c.bf16 %v1396, %v1396
      %v1401 = vpack.c.bf16 %v1397, %v1397
      %v1402 = vpack.c.bf16 %v1398, %v1398
      %v1407 = vunpack.c.l.b16 %v1399
      %v1408 = vunpack.c.l.b16 %v1400
      %v1409 = vunpack.c.l.b16 %v1401
      %v1410 = vunpack.c.l.b16 %v1402
      %v1411 = vpack.c.b16 %v1408, %v1407
      %v1412 = vpack.c.b16 %v1410, %v1409
      %1415 = vst [vmem:[#allocation2 + $0x150] sm:$0xff] %v1411
      %1416 = vst [vmem:[#allocation2 + $0x158] sm:$0xff] %v1412
      %s1417 = scalar_lea.vmem %s1, 88
      %v1418 = vld [vmem:[%s1417] sm:$0xf]
      %v1420 = vlaneseq
      %v1421 = vshrl.u32 %v1420, 7
      %v1422 = vsub.s32 0, %v1421
      %v1423 = vrot.slane %v1418, %v1422
      %v1424 = vlaneseq
      %v1425 = vshrl.u32 %v1424, 7
      %v1426 = vsub.s32 1, %v1425
      %v1427 = vrot.slane %v1418, %v1426
      %v1428 = vlaneseq
      %v1429 = vshrl.u32 %v1428, 7
      %v1430 = vsub.s32 2, %v1429
      %v1431 = vrot.slane %v1418, %v1430
      %v1432 = vlaneseq
      %v1433 = vshrl.u32 %v1432, 7
      %v1434 = vsub.s32 3, %v1433
      %v1435 = vrot.slane %v1418, %v1434
      %v1440 = vmul.f32 %v476, %v1423
      %v1441 = vmul.f32 %v475, %v1427
      %v1442 = vmul.f32 %v474, %v1431
      %v1443 = vmul.f32 %v477, %v1435
      %v1444 = vpack.c.bf16 %v1440, %v1440
      %v1445 = vpack.c.bf16 %v1441, %v1441
      %v1446 = vpack.c.bf16 %v1442, %v1442
      %v1447 = vpack.c.bf16 %v1443, %v1443
      %v1452 = vunpack.c.l.b16 %v1444
      %v1453 = vunpack.c.l.b16 %v1445
      %v1454 = vunpack.c.l.b16 %v1446
      %v1455 = vunpack.c.l.b16 %v1447
      %v1456 = vpack.c.b16 %v1453, %v1452
      %v1457 = vpack.c.b16 %v1455, %v1454
      %1460 = vst [vmem:[#allocation2 + $0x160] sm:$0xff] %v1456
      %1461 = vst [vmem:[#allocation2 + $0x168] sm:$0xff] %v1457
      %s1462 = scalar_lea.vmem %s1, 92
      %v1463 = vld [vmem:[%s1462] sm:$0xf]
      %v1465 = vlaneseq
      %v1466 = vshrl.u32 %v1465, 7
      %v1467 = vsub.s32 0, %v1466
      %v1468 = vrot.slane %v1463, %v1467
      %v1469 = vlaneseq
      %v1470 = vshrl.u32 %v1469, 7
      %v1471 = vsub.s32 1, %v1470
      %v1472 = vrot.slane %v1463, %v1471
      %v1473 = vlaneseq
      %v1474 = vshrl.u32 %v1473, 7
      %v1475 = vsub.s32 2, %v1474
      %v1476 = vrot.slane %v1463, %v1475
      %v1477 = vlaneseq
      %v1478 = vshrl.u32 %v1477, 7
      %v1479 = vsub.s32 3, %v1478
      %v1480 = vrot.slane %v1463, %v1479
      %v1485 = vmul.f32 %v534, %v1468
      %v1486 = vmul.f32 %v533, %v1472
      %v1487 = vmul.f32 %v532, %v1476
      %v1488 = vmul.f32 %v535, %v1480
      %v1489 = vpack.c.bf16 %v1485, %v1485
      %v1490 = vpack.c.bf16 %v1486, %v1486
      %v1491 = vpack.c.bf16 %v1487, %v1487
      %v1492 = vpack.c.bf16 %v1488, %v1488
      %v1497 = vunpack.c.l.b16 %v1489
      %v1498 = vunpack.c.l.b16 %v1490
      %v1499 = vunpack.c.l.b16 %v1491
      %v1500 = vunpack.c.l.b16 %v1492
      %v1501 = vpack.c.b16 %v1498, %v1497
      %v1502 = vpack.c.b16 %v1500, %v1499
      %1505 = vst [vmem:[#allocation2 + $0x170] sm:$0xff] %v1501
      %1506 = vst [vmem:[#allocation2 + $0x178] sm:$0xff] %v1502
      %s1507 = scalar_lea.vmem %s1, 96
      %v1508 = vld [vmem:[%s1507] sm:$0xf]
      %v1510 = vlaneseq
      %v1511 = vshrl.u32 %v1510, 7
      %v1512 = vsub.s32 0, %v1511
      %v1513 = vrot.slane %v1508, %v1512
      %v1514 = vlaneseq
      %v1515 = vshrl.u32 %v1514, 7
      %v1516 = vsub.s32 1, %v1515
      %v1517 = vrot.slane %v1508, %v1516
      %v1518 = vlaneseq
      %v1519 = vshrl.u32 %v1518, 7
      %v1520 = vsub.s32 2, %v1519
      %v1521 = vrot.slane %v1508, %v1520
      %v1522 = vlaneseq
      %v1523 = vshrl.u32 %v1522, 7
      %v1524 = vsub.s32 3, %v1523
      %v1525 = vrot.slane %v1508, %v1524
      %v1530 = vmul.f32 %v592, %v1513
      %v1531 = vmul.f32 %v591, %v1517
      %v1532 = vmul.f32 %v590, %v1521
      %v1533 = vmul.f32 %v593, %v1525
      %v1534 = vpack.c.bf16 %v1530, %v1530
      %v1535 = vpack.c.bf16 %v1531, %v1531
      %v1536 = vpack.c.bf16 %v1532, %v1532
      %v1537 = vpack.c.bf16 %v1533, %v1533
      %v1542 = vunpack.c.l.b16 %v1534
      %v1543 = vunpack.c.l.b16 %v1535
      %v1544 = vunpack.c.l.b16 %v1536
      %v1545 = vunpack.c.l.b16 %v1537
      %v1546 = vpack.c.b16 %v1543, %v1542
      %v1547 = vpack.c.b16 %v1545, %v1544
      %1550 = vst [vmem:[#allocation2 + $0x180] sm:$0xff] %v1546
      %1551 = vst [vmem:[#allocation2 + $0x188] sm:$0xff] %v1547
      %s1552 = scalar_lea.vmem %s1, 100
      %v1553 = vld [vmem:[%s1552] sm:$0xf]
      %v1555 = vlaneseq
      %v1556 = vshrl.u32 %v1555, 7
      %v1557 = vsub.s32 0, %v1556
      %v1558 = vrot.slane %v1553, %v1557
      %v1559 = vlaneseq
      %v1560 = vshrl.u32 %v1559, 7
      %v1561 = vsub.s32 1, %v1560
      %v1562 = vrot.slane %v1553, %v1561
      %v1563 = vlaneseq
      %v1564 = vshrl.u32 %v1563, 7
      %v1565 = vsub.s32 2, %v1564
      %v1566 = vrot.slane %v1553, %v1565
      %v1567 = vlaneseq
      %v1568 = vshrl.u32 %v1567, 7
      %v1569 = vsub.s32 3, %v1568
      %v1570 = vrot.slane %v1553, %v1569
      %v1575 = vmul.f32 %v650, %v1558
      %v1576 = vmul.f32 %v649, %v1562
      %v1577 = vmul.f32 %v648, %v1566
      %v1578 = vmul.f32 %v651, %v1570
      %v1579 = vpack.c.bf16 %v1575, %v1575
      %v1580 = vpack.c.bf16 %v1576, %v1576
      %v1581 = vpack.c.bf16 %v1577, %v1577
      %v1582 = vpack.c.bf16 %v1578, %v1578
      %v1587 = vunpack.c.l.b16 %v1579
      %v1588 = vunpack.c.l.b16 %v1580
      %v1589 = vunpack.c.l.b16 %v1581
      %v1590 = vunpack.c.l.b16 %v1582
      %v1591 = vpack.c.b16 %v1588, %v1587
      %v1592 = vpack.c.b16 %v1590, %v1589
      %1595 = vst [vmem:[#allocation2 + $0x190] sm:$0xff] %v1591
      %1596 = vst [vmem:[#allocation2 + $0x198] sm:$0xff] %v1592
      %s1597 = scalar_lea.vmem %s1, 104
      %v1598 = vld [vmem:[%s1597] sm:$0xf]
      %v1600 = vlaneseq
      %v1601 = vshrl.u32 %v1600, 7
      %v1602 = vsub.s32 0, %v1601
      %v1603 = vrot.slane %v1598, %v1602
      %v1604 = vlaneseq
      %v1605 = vshrl.u32 %v1604, 7
      %v1606 = vsub.s32 1, %v1605
      %v1607 = vrot.slane %v1598, %v1606
      %v1608 = vlaneseq
      %v1609 = vshrl.u32 %v1608, 7
      %v1610 = vsub.s32 2, %v1609
      %v1611 = vrot.slane %v1598, %v1610
      %v1612 = vlaneseq
      %v1613 = vshrl.u32 %v1612, 7
      %v1614 = vsub.s32 3, %v1613
      %v1615 = vrot.slane %v1598, %v1614
      %v1620 = vmul.f32 %v708, %v1603
      %v1621 = vmul.f32 %v707, %v1607
      %v1622 = vmul.f32 %v706, %v1611
      %v1623 = vmul.f32 %v709, %v1615
      %v1624 = vpack.c.bf16 %v1620, %v1620
      %v1625 = vpack.c.bf16 %v1621, %v1621
      %v1626 = vpack.c.bf16 %v1622, %v1622
      %v1627 = vpack.c.bf16 %v1623, %v1623
      %v1632 = vunpack.c.l.b16 %v1624
      %v1633 = vunpack.c.l.b16 %v1625
      %v1634 = vunpack.c.l.b16 %v1626
      %v1635 = vunpack.c.l.b16 %v1627
      %v1636 = vpack.c.b16 %v1633, %v1632
      %v1637 = vpack.c.b16 %v1635, %v1634
      %1640 = vst [vmem:[#allocation2 + $0x1a0] sm:$0xff] %v1636
      %1641 = vst [vmem:[#allocation2 + $0x1a8] sm:$0xff] %v1637
      %v1642 = vld [vmem:[%s2] sm:$0xff]
      %v1643 = vld [vmem:[#allocation2] sm:$0xff]
      %v1644 = vld [vmem:[#allocation2 + $0x8] sm:$0xff]
      %v1645 = vld [vmem:[#allocation2 + $0x10] sm:$0xff]
      %v1646 = vld [vmem:[#allocation2 + $0x18] sm:$0xff]
      %v1647 = vld [vmem:[#allocation2 + $0x20] sm:$0xff]
      %v1648 = vld [vmem:[#allocation2 + $0x28] sm:$0xff]
      %v1649 = vld [vmem:[#allocation2 + $0x30] sm:$0xff]
      %v1650 = vld [vmem:[#allocation2 + $0x38] sm:$0xff]
      %v1651 = vld [vmem:[#allocation2 + $0x40] sm:$0xff]
      %v1652 = vld [vmem:[#allocation2 + $0x48] sm:$0xff]
      %v1653 = vld [vmem:[#allocation2 + $0x50] sm:$0xff]
      %v1654 = vld [vmem:[#allocation2 + $0x58] sm:$0xff]
      %v1655 = vld [vmem:[#allocation2 + $0x60] sm:$0xff]
      %v1656 = vld [vmem:[#allocation2 + $0x68] sm:$0xff]
      %v1657 = vld [vmem:[#allocation2 + $0x70] sm:$0xff]
      %v1658 = vld [vmem:[#allocation2 + $0x78] sm:$0xff]
      %v1659 = vld [vmem:[#allocation2 + $0x80] sm:$0xff]
      %v1660 = vld [vmem:[#allocation2 + $0x88] sm:$0xff]
      %v1661 = vld [vmem:[#allocation2 + $0x90] sm:$0xff]
      %v1662 = vld [vmem:[#allocation2 + $0x98] sm:$0xff]
      %v1663 = vld [vmem:[#allocation2 + $0xa0] sm:$0xff]
      %v1664 = vld [vmem:[#allocation2 + $0xa8] sm:$0xff]
      %v1665 = vld [vmem:[#allocation2 + $0xb0] sm:$0xff]
      %v1666 = vld [vmem:[#allocation2 + $0xb8] sm:$0xff]
      %v1667 = vld [vmem:[#allocation2 + $0xc0] sm:$0xff]
      %v1668 = vld [vmem:[#allocation2 + $0xc8] sm:$0xff]
      %v1669 = vld [vmem:[#allocation2 + $0xd0] sm:$0xff]
      %v1670 = vld [vmem:[#allocation2 + $0xd8] sm:$0xff]
      %v1671 = vld [vmem:[#allocation2 + $0xe0] sm:$0xff]
      %v1672 = vld [vmem:[#allocation2 + $0xe8] sm:$0xff]
      %v1673 = vld [vmem:[#allocation2 + $0xf0] sm:$0xff]
      %v1674 = vld [vmem:[#allocation2 + $0xf8] sm:$0xff]
      %v1675 = vld [vmem:[#allocation2 + $0x100] sm:$0xff]
      %v1676 = vld [vmem:[#allocation2 + $0x108] sm:$0xff]
      %v1677 = vld [vmem:[#allocation2 + $0x110] sm:$0xff]
      %v1678 = vld [vmem:[#allocation2 + $0x118] sm:$0xff]
      %v1679 = vld [vmem:[#allocation2 + $0x120] sm:$0xff]
      %v1680 = vld [vmem:[#allocation2 + $0x128] sm:$0xff]
      %v1681 = vld [vmem:[#allocation2 + $0x130] sm:$0xff]
      %v1682 = vld [vmem:[#allocation2 + $0x138] sm:$0xff]
      %v1683 = vld [vmem:[#allocation2 + $0x140] sm:$0xff]
      %v1684 = vld [vmem:[#allocation2 + $0x148] sm:$0xff]
      %v1685 = vld [vmem:[#allocation2 + $0x150] sm:$0xff]
      %v1686 = vld [vmem:[#allocation2 + $0x158] sm:$0xff]
      %v1687 = vld [vmem:[#allocation2 + $0x160] sm:$0xff]
      %v1688 = vld [vmem:[#allocation2 + $0x168] sm:$0xff]
      %v1689 = vld [vmem:[#allocation2 + $0x170] sm:$0xff]
      %v1690 = vld [vmem:[#allocation2 + $0x178] sm:$0xff]
      %v1691 = vld [vmem:[#allocation2 + $0x180] sm:$0xff]
      %v1692 = vld [vmem:[#allocation2 + $0x188] sm:$0xff]
      %v1693 = vld [vmem:[#allocation2 + $0x190] sm:$0xff]
      %v1694 = vld [vmem:[#allocation2 + $0x198] sm:$0xff]
      %v1695 = vld [vmem:[#allocation2 + $0x1a0] sm:$0xff]
      %v1696 = vld [vmem:[#allocation2 + $0x1a8] sm:$0xff]
      %v1698 = vunpack.c.l.b16 %v1642
      %v1699 = vunpack.c.h.b16 %v1642
      %v1700 = vpack.c.b16 %v1698, %v1698
      %v1701 = vpack.c.b16 %v1699, %v1699
      %v1757 = vunpack.c.l.b16 %v1643
      %v1758 = vunpack.c.h.b16 %v1643
      %v1759 = vunpack.c.l.b16 %v1644
      %v1760 = vunpack.c.h.b16 %v1644
      %v1761 = vunpack.c.l.b16 %v1645
      %v1762 = vunpack.c.h.b16 %v1645
      %v1763 = vunpack.c.l.b16 %v1646
      %v1764 = vunpack.c.h.b16 %v1646
      %v1765 = vunpack.c.l.b16 %v1647
      %v1766 = vunpack.c.h.b16 %v1647
      %v1767 = vunpack.c.l.b16 %v1648
      %v1768 = vunpack.c.h.b16 %v1648
      %v1769 = vunpack.c.l.b16 %v1649
      %v1770 = vunpack.c.h.b16 %v1649
      %v1771 = vunpack.c.l.b16 %v1650
      %v1772 = vunpack.c.h.b16 %v1650
      %v1773 = vunpack.c.l.b16 %v1651
      %v1774 = vunpack.c.h.b16 %v1651
      %v1775 = vunpack.c.l.b16 %v1652
      %v1776 = vunpack.c.h.b16 %v1652
      %v1777 = vunpack.c.l.b16 %v1653
      %v1778 = vunpack.c.h.b16 %v1653
      %v1779 = vunpack.c.l.b16 %v1654
      %v1780 = vunpack.c.h.b16 %v1654
      %v1781 = vunpack.c.l.b16 %v1655
      %v1782 = vunpack.c.h.b16 %v1655
      %v1783 = vunpack.c.l.b16 %v1656
      %v1784 = vunpack.c.h.b16 %v1656
      %v1785 = vunpack.c.l.b16 %v1657
      %v1786 = vunpack.c.h.b16 %v1657
      %v1787 = vunpack.c.l.b16 %v1658
      %v1788 = vunpack.c.h.b16 %v1658
      %v1789 = vunpack.c.l.b16 %v1659
      %v1790 = vunpack.c.h.b16 %v1659
      %v1791 = vunpack.c.l.b16 %v1660
      %v1792 = vunpack.c.h.b16 %v1660
      %v1793 = vunpack.c.l.b16 %v1661
      %v1794 = vunpack.c.h.b16 %v1661
      %v1795 = vunpack.c.l.b16 %v1662
      %v1796 = vunpack.c.h.b16 %v1662
      %v1797 = vunpack.c.l.b16 %v1663
      %v1798 = vunpack.c.h.b16 %v1663
      %v1799 = vunpack.c.l.b16 %v1664
      %v1800 = vunpack.c.h.b16 %v1664
      %v1801 = vunpack.c.l.b16 %v1665
      %v1802 = vunpack.c.h.b16 %v1665
      %v1803 = vunpack.c.l.b16 %v1666
      %v1804 = vunpack.c.h.b16 %v1666
      %v1805 = vunpack.c.l.b16 %v1667
      %v1806 = vunpack.c.h.b16 %v1667
      %v1807 = vunpack.c.l.b16 %v1668
      %v1808 = vunpack.c.h.b16 %v1668
      %v1809 = vunpack.c.l.b16 %v1669
      %v1810 = vunpack.c.h.b16 %v1669
      %v1811 = vunpack.c.l.b16 %v1670
      %v1812 = vunpack.c.h.b16 %v1670
      %v1813 = vunpack.c.l.b16 %v1671
      %v1814 = vunpack.c.h.b16 %v1671
      %v1815 = vunpack.c.l.b16 %v1672
      %v1816 = vunpack.c.h.b16 %v1672
      %v1817 = vunpack.c.l.b16 %v1673
      %v1818 = vunpack.c.h.b16 %v1673
      %v1819 = vunpack.c.l.b16 %v1674
      %v1820 = vunpack.c.h.b16 %v1674
      %v1821 = vunpack.c.l.b16 %v1675
      %v1822 = vunpack.c.h.b16 %v1675
      %v1823 = vunpack.c.l.b16 %v1676
      %v1824 = vunpack.c.h.b16 %v1676
      %v1825 = vunpack.c.l.b16 %v1677
      %v1826 = vunpack.c.h.b16 %v1677
      %v1827 = vunpack.c.l.b16 %v1678
      %v1828 = vunpack.c.h.b16 %v1678
      %v1829 = vunpack.c.l.b16 %v1679
      %v1830 = vunpack.c.h.b16 %v1679
      %v1831 = vunpack.c.l.b16 %v1680
      %v1832 = vunpack.c.h.b16 %v1680
      %v1833 = vunpack.c.l.b16 %v1681
      %v1834 = vunpack.c.h.b16 %v1681
      %v1835 = vunpack.c.l.b16 %v1682
      %v1836 = vunpack.c.h.b16 %v1682
      %v1837 = vunpack.c.l.b16 %v1683
      %v1838 = vunpack.c.h.b16 %v1683
      %v1839 = vunpack.c.l.b16 %v1684
      %v1840 = vunpack.c.h.b16 %v1684
      %v1841 = vunpack.c.l.b16 %v1685
      %v1842 = vunpack.c.h.b16 %v1685
      %v1843 = vunpack.c.l.b16 %v1686
      %v1844 = vunpack.c.h.b16 %v1686
      %v1845 = vunpack.c.l.b16 %v1687
      %v1846 = vunpack.c.h.b16 %v1687
      %v1847 = vunpack.c.l.b16 %v1688
      %v1848 = vunpack.c.h.b16 %v1688
      %v1849 = vunpack.c.l.b16 %v1689
      %v1850 = vunpack.c.h.b16 %v1689
      %v1851 = vunpack.c.l.b16 %v1690
      %v1852 = vunpack.c.h.b16 %v1690
      %v1853 = vunpack.c.l.b16 %v1691
      %v1854 = vunpack.c.h.b16 %v1691
      %v1855 = vunpack.c.l.b16 %v1692
      %v1856 = vunpack.c.h.b16 %v1692
      %v1857 = vunpack.c.l.b16 %v1693
      %v1858 = vunpack.c.h.b16 %v1693
      %v1859 = vunpack.c.l.b16 %v1694
      %v1860 = vunpack.c.h.b16 %v1694
      %v1861 = vunpack.c.l.b16 %v1695
      %v1862 = vunpack.c.h.b16 %v1695
      %v1863 = vunpack.c.l.b16 %v1696
      %v1864 = vunpack.c.h.b16 %v1696
      %v1865 = vpack.c.b16 %v1761, %v1757
      %v1866 = vpack.c.b16 %v1762, %v1758
      %v1867 = vpack.c.b16 %v1763, %v1759
      %v1868 = vpack.c.b16 %v1764, %v1760
      %v1869 = vpack.c.b16 %v1769, %v1765
      %v1870 = vpack.c.b16 %v1770, %v1766
      %v1871 = vpack.c.b16 %v1771, %v1767
      %v1872 = vpack.c.b16 %v1772, %v1768
      %v1873 = vpack.c.b16 %v1777, %v1773
      %v1874 = vpack.c.b16 %v1778, %v1774
      %v1875 = vpack.c.b16 %v1779, %v1775
      %v1876 = vpack.c.b16 %v1780, %v1776
      %v1877 = vpack.c.b16 %v1785, %v1781
      %v1878 = vpack.c.b16 %v1786, %v1782
      %v1879 = vpack.c.b16 %v1787, %v1783
      %v1880 = vpack.c.b16 %v1788, %v1784
      %v1881 = vpack.c.b16 %v1793, %v1789
      %v1882 = vpack.c.b16 %v1794, %v1790
      %v1883 = vpack.c.b16 %v1795, %v1791
      %v1884 = vpack.c.b16 %v1796, %v1792
      %v1885 = vpack.c.b16 %v1801, %v1797
      %v1886 = vpack.c.b16 %v1802, %v1798
      %v1887 = vpack.c.b16 %v1803, %v1799
      %v1888 = vpack.c.b16 %v1804, %v1800
      %v1889 = vpack.c.b16 %v1809, %v1805
      %v1890 = vpack.c.b16 %v1810, %v1806
      %v1891 = vpack.c.b16 %v1811, %v1807
      %v1892 = vpack.c.b16 %v1812, %v1808
      %v1893 = vpack.c.b16 %v1817, %v1813
      %v1894 = vpack.c.b16 %v1818, %v1814
      %v1895 = vpack.c.b16 %v1819, %v1815
      %v1896 = vpack.c.b16 %v1820, %v1816
      %v1897 = vpack.c.b16 %v1825, %v1821
      %v1898 = vpack.c.b16 %v1826, %v1822
      %v1899 = vpack.c.b16 %v1827, %v1823
      %v1900 = vpack.c.b16 %v1828, %v1824
      %v1901 = vpack.c.b16 %v1833, %v1829
      %v1902 = vpack.c.b16 %v1834, %v1830
      %v1903 = vpack.c.b16 %v1835, %v1831
      %v1904 = vpack.c.b16 %v1836, %v1832
      %v1905 = vpack.c.b16 %v1841, %v1837
      %v1906 = vpack.c.b16 %v1842, %v1838
      %v1907 = vpack.c.b16 %v1843, %v1839
      %v1908 = vpack.c.b16 %v1844, %v1840
      %v1909 = vpack.c.b16 %v1849, %v1845
      %v1910 = vpack.c.b16 %v1850, %v1846
      %v1911 = vpack.c.b16 %v1851, %v1847
      %v1912 = vpack.c.b16 %v1852, %v1848
      %v1913 = vpack.c.b16 %v1857, %v1853
      %v1914 = vpack.c.b16 %v1858, %v1854
      %v1915 = vpack.c.b16 %v1859, %v1855
      %v1916 = vpack.c.b16 %v1860, %v1856
      %v1917 = vpack.c.b16 %v1861, %v1861
      %v1918 = vpack.c.b16 %v1862, %v1862
      %v1919 = vpack.c.b16 %v1863, %v1863
      %v1920 = vpack.c.b16 %v1864, %v1864
      %vm1973 = vcmask 719872
      %v1975 = vsel %vm1973, %v1701, 0
      %vm1977 = vcmask 1043456
      %v1979 = vsel %vm1977, %v1917, 0
      %v1982 = vsel %vm1977, %v1918, 0
      %v1985 = vsel %vm1977, %v1919, 0
      %v1988 = vsel %vm1977, %v1920, 0
      %1990 = vmatprep.subr.bf16.mxu0 %v1866
      %1991 = vmatpush1.bf16.msra.mxu0 %v1865
      %1992 = vmatprep.subr.bf16.mxu0 %v1870
      %1993 = vmatpush1.bf16.msra.mxu0 %v1869
      %1994 = vmatprep.subr.bf16.mxu0 %v1874
      %1995 = vmatpush1.bf16.msra.mxu0 %v1873
      %1996 = vmatprep.subr.bf16.mxu0 %v1878
      %1997 = vmatpush1.bf16.msra.mxu0 %v1877
      %1998 = vmatprep.subr.bf16.mxu0 %v1882
      %1999 = vmatpush1.bf16.msra.mxu0 %v1881
      %2000 = vmatprep.subr.bf16.mxu0 %v1886
      %2001 = vmatpush1.bf16.msra.mxu0 %v1885
      %2002 = vmatprep.subr.bf16.mxu0 %v1890
      %2003 = vmatpush1.bf16.msra.mxu0 %v1889
      %2004 = vmatprep.subr.bf16.mxu0 %v1894
      %2005 = vmatpush1.bf16.msra.mxu0 %v1893
      %2006 = vmatprep.subr.bf16.mxu0 %v1898
      %2007 = vmatpush1.bf16.msra.mxu0 %v1897
      %2008 = vmatprep.subr.bf16.mxu0 %v1902
      %2009 = vmatpush1.bf16.msra.mxu0 %v1901
      %2010 = vmatprep.subr.bf16.mxu0 %v1906
      %2011 = vmatpush1.bf16.msra.mxu0 %v1905
      %2012 = vmatprep.subr.bf16.mxu0 %v1910
      %2013 = vmatpush1.bf16.msra.mxu0 %v1909
      %2014 = vmatprep.subr.bf16.mxu0 %v1914
      %2015 = vmatpush1.bf16.msra.mxu0 %v1913
      %2016 = vmatprep.subr.bf16.mxu0 %v1982
      %2017 = vmatpush1.bf16.msra.mxu0 %v1979
      %2018 = vmatprep.subr.bf16.mxu0 0
      %2019 = vmatpush1.bf16.msra.mxu0 0
      %2020 = vmatprep.subr.bf16.mxu0 0
      %2021 = vmatpush1.bf16.msra.mxu0 0
      %2022 = vmatprep.mubr.bf16.mxu0 %v1975
      %2023 = vmatmul.mubr.bf16.gmra.mrb[0].mxu0 %v1700
      %v2024 = vpop.f32.mrb[0].mxu0
      %v2025 = vadd.f32 0.0, %v2024
      %v2026 = vpop.f32.mrb[0].mxu0
      %v2027 = vadd.f32 0.0, %v2026
      %v2028 = vpop.f32.mrb[0].mxu0
      %v2029 = vpop.f32.mrb[0].mxu0
      %2030 = vdwg.mxu0
      %2031 = vmatprep.subr.bf16.mxu0 %v1868
      %2032 = vmatpush1.bf16.msra.mxu0 %v1867
      %2033 = vmatprep.subr.bf16.mxu0 %v1872
      %2034 = vmatpush1.bf16.msra.mxu0 %v1871
      %2035 = vmatprep.subr.bf16.mxu0 %v1876
      %2036 = vmatpush1.bf16.msra.mxu0 %v1875
      %2037 = vmatprep.subr.bf16.mxu0 %v1880
      %2038 = vmatpush1.bf16.msra.mxu0 %v1879
      %2039 = vmatprep.subr.bf16.mxu0 %v1884
      %2040 = vmatpush1.bf16.msra.mxu0 %v1883
      %2041 = vmatprep.subr.bf16.mxu0 %v1888
      %2042 = vmatpush1.bf16.msra.mxu0 %v1887
      %2043 = vmatprep.subr.bf16.mxu0 %v1892
      %2044 = vmatpush1.bf16.msra.mxu0 %v1891
      %2045 = vmatprep.subr.bf16.mxu0 %v1896
      %2046 = vmatpush1.bf16.msra.mxu0 %v1895
      %2047 = vmatprep.subr.bf16.mxu0 %v1900
      %2048 = vmatpush1.bf16.msra.mxu0 %v1899
      %2049 = vmatprep.subr.bf16.mxu0 %v1904
      %2050 = vmatpush1.bf16.msra.mxu0 %v1903
      %2051 = vmatprep.subr.bf16.mxu0 %v1908
      %2052 = vmatpush1.bf16.msra.mxu0 %v1907
      %2053 = vmatprep.subr.bf16.mxu0 %v1912
      %2054 = vmatpush1.bf16.msra.mxu0 %v1911
      %2055 = vmatprep.subr.bf16.mxu0 %v1916
      %2056 = vmatpush1.bf16.msra.mxu0 %v1915
      %2057 = vmatprep.subr.bf16.mxu0 %v1988
      %2058 = vmatpush1.bf16.msra.mxu0 %v1985
      %2059 = vmatprep.subr.bf16.mxu0 0
      %2060 = vmatpush1.bf16.msra.mxu0 0
      %2061 = vmatprep.subr.bf16.mxu0 0
      %2062 = vmatpush1.bf16.msra.mxu0 0
      %2063 = vmatprep.mubr.bf16.mxu0 %v1975
      %2064 = vmatmul.mubr.bf16.gmra.mrb[0].mxu0 %v1700
      %v2065 = vpop.f32.mrb[0].mxu0
      %v2066 = vadd.f32 0.0, %v2065
      %v2067 = vpop.f32.mrb[0].mxu0
      %v2068 = vadd.f32 0.0, %v2067
      %v2069 = vpop.f32.mrb[0].mxu0
      %v2070 = vpop.f32.mrb[0].mxu0
      %2071 = vdwg.mxu0
      %v2072 = vadd.f32 %v2025, %v2027
      %v2073 = vadd.f32 %v2072, %v2066
      %v2074 = vadd.f32 %v2073, %v2068
      %2075 = vadd.xlane.f32.xlu0 %v2074
      %v2076 = vpop.xlane.xlu0 %2075
      %v2077 = vmul.f32 %v2076, 0.001953125
      %v2078 = vmul.f32 %v2025, %v2025
      %v2079 = vmul.f32 %v2027, %v2027
      %v2080 = vmul.f32 %v2066, %v2066
      %v2081 = vmul.f32 %v2068, %v2068
      %v2082 = vadd.f32 %v2078, %v2079
      %v2083 = vadd.f32 %v2082, %v2080
      %v2084 = vadd.f32 %v2083, %v2081
      %2085 = vadd.xlane.f32.xlu0 %v2084
      %v2086 = vpop.xlane.xlu0 %2085
      %v2087 = vmul.f32 %v2086, 0.001953125
      %v2088 = vmul.f32 %v2077, %v2077
      %v2089 = vsub.f32 %v2087, %v2088
      %v2090 = vmax.f32 %v2089, 0.0
      %v2091 = vadd.f32 %v2090, 1e-05
      %v2092 = vrsqrt.pop %v2091
      %v2093 = vmul.f32 %v230, %v2092
      %v2094 = vmul.f32 %v2077, %v2093
      %2096 = vrot.lane.b32.xlu0 %v2094, 1
      %v2097 = vpop.permute.xlu0 %2096
      %v2099 = vsub.f32 %v230, %v2097
      %2101 = vset.pattern.permute.xlu0 0
      %2102 = vperm.xlu0 %2101, %v2093
      %v2103 = vpop.permute.xlu0 %2102
      %v2105 = vmul.f32 %v2025, %v2103
      %v2106 = vmul.f32 %v2027, %v2103
      %v2107 = vmul.f32 %v2066, %v2103
      %v2108 = vmul.f32 %v2068, %v2103
      %2110 = vset.pattern.permute.xlu0 1
      %2111 = vperm.xlu0 %2110, %v2099
      %v2112 = vpop.permute.xlu0 %2111
      %v2114 = vadd.f32 %v2105, %v2112
      %v2115 = vadd.f32 %v2106, %v2112
      %v2116 = vadd.f32 %v2107, %v2112
      %v2117 = vadd.f32 %v2108, %v2112
      %v2118 = vmax.f32 %v2114, 0.0
      %v2119 = vmax.f32 %v2115, 0.0
      %v2120 = vmax.f32 %v2116, 0.0
      %v2121 = vmax.f32 %v2117, 0.0
      %2122 = vrot.lane.b32.xlu0 %v2118, 73
      %v2123 = vpop.permute.xlu0 %2122
      %2124 = vrot.lane.b32.xlu0 %v2119, 73
      %v2125 = vpop.permute.xlu0 %2124
      %2126 = vrot.lane.b32.xlu0 %v2120, 73
      %v2127 = vpop.permute.xlu0 %2126
      %2128 = vrot.lane.b32.xlu0 %v2121, 73
      %v2129 = vpop.permute.xlu0 %2128
      %v2130 = vsel %vm242, %v2127, %v2129
      %v2131 = vsel %vm242, %v2125, %v2127
      %v2132 = vsel %vm242, %v2123, %v2125
      %v2133 = vsel %vm242, %v2129, %v2123
      %v2134 = vld [vmem:[%s1] sm:$0xf]
      %v2136 = vlaneseq
      %v2137 = vshrl.u32 %v2136, 7
      %v2138 = vsub.s32 0, %v2137
      %v2139 = vrot.slane %v2134, %v2138
      %v2140 = vlaneseq
      %v2141 = vshrl.u32 %v2140, 7
      %v2142 = vsub.s32 1, %v2141
      %v2143 = vrot.slane %v2134, %v2142
      %v2144 = vlaneseq
      %v2145 = vshrl.u32 %v2144, 7
      %v2146 = vsub.s32 2, %v2145
      %v2147 = vrot.slane %v2134, %v2146
      %v2148 = vlaneseq
      %v2149 = vshrl.u32 %v2148, 7
      %v2150 = vsub.s32 3, %v2149
      %v2151 = vrot.slane %v2134, %v2150
      %v2156 = vmul.f32 %v2133, %v2139
      %v2157 = vmul.f32 %v2132, %v2143
      %v2158 = vmul.f32 %v2131, %v2147
      %v2159 = vmul.f32 %v2130, %v2151
      %v2160 = vpack.c.bf16 %v2156, %v2156
      %v2161 = vpack.c.bf16 %v2157, %v2157
      %v2162 = vpack.c.bf16 %v2158, %v2158
      %v2163 = vpack.c.bf16 %v2159, %v2159
      %v2168 = vunpack.c.l.b16 %v2160
      %v2169 = vunpack.c.l.b16 %v2161
      %v2170 = vunpack.c.l.b16 %v2162
      %v2171 = vunpack.c.l.b16 %v2163
      %v2172 = vpack.c.b16 %v2169, %v2168
      %v2173 = vpack.c.b16 %v2171, %v2170
      %2176 = vst [vmem:[#allocation2] sm:$0xff] %v2172
      %2177 = vst [vmem:[#allocation2 + $0x8] sm:$0xff] %v2173
      %2178 = vrot.lane.b32.xlu0 %v2118, 72
      %v2179 = vpop.permute.xlu0 %2178
      %2180 = vrot.lane.b32.xlu0 %v2119, 72
      %v2181 = vpop.permute.xlu0 %2180
      %2182 = vrot.lane.b32.xlu0 %v2120, 72
      %v2183 = vpop.permute.xlu0 %2182
      %2184 = vrot.lane.b32.xlu0 %v2121, 72
      %v2185 = vpop.permute.xlu0 %2184
      %v2186 = vsel %vm299, %v2183, %v2185
      %v2187 = vsel %vm299, %v2181, %v2183
      %v2188 = vsel %vm299, %v2179, %v2181
      %v2189 = vsel %vm299, %v2185, %v2179
      %v2190 = vld [vmem:[%s304] sm:$0xf]
      %v2192 = vlaneseq
      %v2193 = vshrl.u32 %v2192, 7
      %v2194 = vsub.s32 0, %v2193
      %v2195 = vrot.slane %v2190, %v2194
      %v2196 = vlaneseq
      %v2197 = vshrl.u32 %v2196, 7
      %v2198 = vsub.s32 1, %v2197
      %v2199 = vrot.slane %v2190, %v2198
      %v2200 = vlaneseq
      %v2201 = vshrl.u32 %v2200, 7
      %v2202 = vsub.s32 2, %v2201
      %v2203 = vrot.slane %v2190, %v2202
      %v2204 = vlaneseq
      %v2205 = vshrl.u32 %v2204, 7
      %v2206 = vsub.s32 3, %v2205
      %v2207 = vrot.slane %v2190, %v2206
      %v2212 = vmul.f32 %v2189, %v2195
      %v2213 = vmul.f32 %v2188, %v2199
      %v2214 = vmul.f32 %v2187, %v2203
      %v2215 = vmul.f32 %v2186, %v2207
      %v2216 = vpack.c.bf16 %v2212, %v2212
      %v2217 = vpack.c.bf16 %v2213, %v2213
      %v2218 = vpack.c.bf16 %v2214, %v2214
      %v2219 = vpack.c.bf16 %v2215, %v2215
      %v2224 = vunpack.c.l.b16 %v2216
      %v2225 = vunpack.c.l.b16 %v2217
      %v2226 = vunpack.c.l.b16 %v2218
      %v2227 = vunpack.c.l.b16 %v2219
      %v2228 = vpack.c.b16 %v2225, %v2224
      %v2229 = vpack.c.b16 %v2227, %v2226
      %2232 = vst [vmem:[#allocation2 + $0x10] sm:$0xff] %v2228
      %2233 = vst [vmem:[#allocation2 + $0x18] sm:$0xff] %v2229
      %2234 = vrot.lane.b32.xlu0 %v2118, 71
      %v2235 = vpop.permute.xlu0 %2234
      %2236 = vrot.lane.b32.xlu0 %v2119, 71
      %v2237 = vpop.permute.xlu0 %2236
      %2238 = vrot.lane.b32.xlu0 %v2120, 71
      %v2239 = vpop.permute.xlu0 %2238
      %2240 = vrot.lane.b32.xlu0 %v2121, 71
      %v2241 = vpop.permute.xlu0 %2240
      %v2242 = vsel %vm357, %v2239, %v2241
      %v2243 = vsel %vm357, %v2237, %v2239
      %v2244 = vsel %vm357, %v2235, %v2237
      %v2245 = vsel %vm357, %v2241, %v2235
      %v2246 = vld [vmem:[%s362] sm:$0xf]
      %v2248 = vlaneseq
      %v2249 = vshrl.u32 %v2248, 7
      %v2250 = vsub.s32 0, %v2249
      %v2251 = vrot.slane %v2246, %v2250
      %v2252 = vlaneseq
      %v2253 = vshrl.u32 %v2252, 7
      %v2254 = vsub.s32 1, %v2253
      %v2255 = vrot.slane %v2246, %v2254
      %v2256 = vlaneseq
      %v2257 = vshrl.u32 %v2256, 7
      %v2258 = vsub.s32 2, %v2257
      %v2259 = vrot.slane %v2246, %v2258
      %v2260 = vlaneseq
      %v2261 = vshrl.u32 %v2260, 7
      %v2262 = vsub.s32 3, %v2261
      %v2263 = vrot.slane %v2246, %v2262
      %v2268 = vmul.f32 %v2245, %v2251
      %v2269 = vmul.f32 %v2244, %v2255
      %v2270 = vmul.f32 %v2243, %v2259
      %v2271 = vmul.f32 %v2242, %v2263
      %v2272 = vpack.c.bf16 %v2268, %v2268
      %v2273 = vpack.c.bf16 %v2269, %v2269
      %v2274 = vpack.c.bf16 %v2270, %v2270
      %v2275 = vpack.c.bf16 %v2271, %v2271
      %v2280 = vunpack.c.l.b16 %v2272
      %v2281 = vunpack.c.l.b16 %v2273
      %v2282 = vunpack.c.l.b16 %v2274
      %v2283 = vunpack.c.l.b16 %v2275
      %v2284 = vpack.c.b16 %v2281, %v2280
      %v2285 = vpack.c.b16 %v2283, %v2282
      %2288 = vst [vmem:[#allocation2 + $0x20] sm:$0xff] %v2284
      %2289 = vst [vmem:[#allocation2 + $0x28] sm:$0xff] %v2285
      %2290 = vrot.lane.b32.xlu0 %v2118, 65
      %v2291 = vpop.permute.xlu0 %2290
      %2292 = vrot.lane.b32.xlu0 %v2119, 65
      %v2293 = vpop.permute.xlu0 %2292
      %2294 = vrot.lane.b32.xlu0 %v2120, 65
      %v2295 = vpop.permute.xlu0 %2294
      %2296 = vrot.lane.b32.xlu0 %v2121, 65
      %v2297 = vpop.permute.xlu0 %2296
      %v2298 = vsel %vm415, %v2295, %v2297
      %v2299 = vsel %vm415, %v2293, %v2295
      %v2300 = vsel %vm415, %v2291, %v2293
      %v2301 = vsel %vm415, %v2297, %v2291
      %v2302 = vld [vmem:[%s420] sm:$0xf]
      %v2304 = vlaneseq
      %v2305 = vshrl.u32 %v2304, 7
      %v2306 = vsub.s32 0, %v2305
      %v2307 = vrot.slane %v2302, %v2306
      %v2308 = vlaneseq
      %v2309 = vshrl.u32 %v2308, 7
      %v2310 = vsub.s32 1, %v2309
      %v2311 = vrot.slane %v2302, %v2310
      %v2312 = vlaneseq
      %v2313 = vshrl.u32 %v2312, 7
      %v2314 = vsub.s32 2, %v2313
      %v2315 = vrot.slane %v2302, %v2314
      %v2316 = vlaneseq
      %v2317 = vshrl.u32 %v2316, 7
      %v2318 = vsub.s32 3, %v2317
      %v2319 = vrot.slane %v2302, %v2318
      %v2324 = vmul.f32 %v2301, %v2307
      %v2325 = vmul.f32 %v2300, %v2311
      %v2326 = vmul.f32 %v2299, %v2315
      %v2327 = vmul.f32 %v2298, %v2319
      %v2328 = vpack.c.bf16 %v2324, %v2324
      %v2329 = vpack.c.bf16 %v2325, %v2325
      %v2330 = vpack.c.bf16 %v2326, %v2326
      %v2331 = vpack.c.bf16 %v2327, %v2327
      %v2336 = vunpack.c.l.b16 %v2328
      %v2337 = vunpack.c.l.b16 %v2329
      %v2338 = vunpack.c.l.b16 %v2330
      %v2339 = vunpack.c.l.b16 %v2331
      %v2340 = vpack.c.b16 %v2337, %v2336
      %v2341 = vpack.c.b16 %v2339, %v2338
      %2344 = vst [vmem:[#allocation2 + $0x30] sm:$0xff] %v2340
      %2345 = vst [vmem:[#allocation2 + $0x38] sm:$0xff] %v2341
      %2346 = vrot.lane.b32.xlu0 %v2118, 64
      %v2347 = vpop.permute.xlu0 %2346
      %2348 = vrot.lane.b32.xlu0 %v2119, 64
      %v2349 = vpop.permute.xlu0 %2348
      %2350 = vrot.lane.b32.xlu0 %v2120, 64
      %v2351 = vpop.permute.xlu0 %2350
      %2352 = vrot.lane.b32.xlu0 %v2121, 64
      %v2353 = vpop.permute.xlu0 %2352
      %v2354 = vsel %vm473, %v2351, %v2353
      %v2355 = vsel %vm473, %v2349, %v2351
      %v2356 = vsel %vm473, %v2347, %v2349
      %v2357 = vsel %vm473, %v2353, %v2347
      %v2358 = vld [vmem:[%s478] sm:$0xf]
      %v2360 = vlaneseq
      %v2361 = vshrl.u32 %v2360, 7
      %v2362 = vsub.s32 0, %v2361
      %v2363 = vrot.slane %v2358, %v2362
      %v2364 = vlaneseq
      %v2365 = vshrl.u32 %v2364, 7
      %v2366 = vsub.s32 1, %v2365
      %v2367 = vrot.slane %v2358, %v2366
      %v2368 = vlaneseq
      %v2369 = vshrl.u32 %v2368, 7
      %v2370 = vsub.s32 2, %v2369
      %v2371 = vrot.slane %v2358, %v2370
      %v2372 = vlaneseq
      %v2373 = vshrl.u32 %v2372, 7
      %v2374 = vsub.s32 3, %v2373
      %v2375 = vrot.slane %v2358, %v2374
      %v2380 = vmul.f32 %v2357, %v2363
      %v2381 = vmul.f32 %v2356, %v2367
      %v2382 = vmul.f32 %v2355, %v2371
      %v2383 = vmul.f32 %v2354, %v2375
      %v2384 = vpack.c.bf16 %v2380, %v2380
      %v2385 = vpack.c.bf16 %v2381, %v2381
      %v2386 = vpack.c.bf16 %v2382, %v2382
      %v2387 = vpack.c.bf16 %v2383, %v2383
      %v2392 = vunpack.c.l.b16 %v2384
      %v2393 = vunpack.c.l.b16 %v2385
      %v2394 = vunpack.c.l.b16 %v2386
      %v2395 = vunpack.c.l.b16 %v2387
      %v2396 = vpack.c.b16 %v2393, %v2392
      %v2397 = vpack.c.b16 %v2395, %v2394
      %2400 = vst [vmem:[#allocation2 + $0x40] sm:$0xff] %v2396
      %2401 = vst [vmem:[#allocation2 + $0x48] sm:$0xff] %v2397
      %2402 = vrot.lane.b32.xlu0 %v2118, 63
      %v2403 = vpop.permute.xlu0 %2402
      %2404 = vrot.lane.b32.xlu0 %v2119, 63
      %v2405 = vpop.permute.xlu0 %2404
      %2406 = vrot.lane.b32.xlu0 %v2120, 63
      %v2407 = vpop.permute.xlu0 %2406
      %2408 = vrot.lane.b32.xlu0 %v2121, 63
      %v2409 = vpop.permute.xlu0 %2408
      %v2410 = vsel %vm531, %v2407, %v2409
      %v2411 = vsel %vm531, %v2405, %v2407
      %v2412 = vsel %vm531, %v2403, %v2405
      %v2413 = vsel %vm531, %v2409, %v2403
      %v2414 = vld [vmem:[%s536] sm:$0xf]
      %v2416 = vlaneseq
      %v2417 = vshrl.u32 %v2416, 7
      %v2418 = vsub.s32 0, %v2417
      %v2419 = vrot.slane %v2414, %v2418
      %v2420 = vlaneseq
      %v2421 = vshrl.u32 %v2420, 7
      %v2422 = vsub.s32 1, %v2421
      %v2423 = vrot.slane %v2414, %v2422
      %v2424 = vlaneseq
      %v2425 = vshrl.u32 %v2424, 7
      %v2426 = vsub.s32 2, %v2425
      %v2427 = vrot.slane %v2414, %v2426
      %v2428 = vlaneseq
      %v2429 = vshrl.u32 %v2428, 7
      %v2430 = vsub.s32 3, %v2429
      %v2431 = vrot.slane %v2414, %v2430
      %v2436 = vmul.f32 %v2413, %v2419
      %v2437 = vmul.f32 %v2412, %v2423
      %v2438 = vmul.f32 %v2411, %v2427
      %v2439 = vmul.f32 %v2410, %v2431
      %v2440 = vpack.c.bf16 %v2436, %v2436
      %v2441 = vpack.c.bf16 %v2437, %v2437
      %v2442 = vpack.c.bf16 %v2438, %v2438
      %v2443 = vpack.c.bf16 %v2439, %v2439
      %v2448 = vunpack.c.l.b16 %v2440
      %v2449 = vunpack.c.l.b16 %v2441
      %v2450 = vunpack.c.l.b16 %v2442
      %v2451 = vunpack.c.l.b16 %v2443
      %v2452 = vpack.c.b16 %v2449, %v2448
      %v2453 = vpack.c.b16 %v2451, %v2450
      %2456 = vst [vmem:[#allocation2 + $0x50] sm:$0xff] %v2452
      %2457 = vst [vmem:[#allocation2 + $0x58] sm:$0xff] %v2453
      %2458 = vrot.lane.b32.xlu0 %v2118, 57
      %v2459 = vpop.permute.xlu0 %2458
      %2460 = vrot.lane.b32.xlu0 %v2119, 57
      %v2461 = vpop.permute.xlu0 %2460
      %2462 = vrot.lane.b32.xlu0 %v2120, 57
      %v2463 = vpop.permute.xlu0 %2462
      %2464 = vrot.lane.b32.xlu0 %v2121, 57
      %v2465 = vpop.permute.xlu0 %2464
      %v2466 = vsel %vm589, %v2463, %v2465
      %v2467 = vsel %vm589, %v2461, %v2463
      %v2468 = vsel %vm589, %v2459, %v2461
      %v2469 = vsel %vm589, %v2465, %v2459
      %v2470 = vld [vmem:[%s594] sm:$0xf]
      %v2472 = vlaneseq
      %v2473 = vshrl.u32 %v2472, 7
      %v2474 = vsub.s32 0, %v2473
      %v2475 = vrot.slane %v2470, %v2474
      %v2476 = vlaneseq
      %v2477 = vshrl.u32 %v2476, 7
      %v2478 = vsub.s32 1, %v2477
      %v2479 = vrot.slane %v2470, %v2478
      %v2480 = vlaneseq
      %v2481 = vshrl.u32 %v2480, 7
      %v2482 = vsub.s32 2, %v2481
      %v2483 = vrot.slane %v2470, %v2482
      %v2484 = vlaneseq
      %v2485 = vshrl.u32 %v2484, 7
      %v2486 = vsub.s32 3, %v2485
      %v2487 = vrot.slane %v2470, %v2486
      %v2492 = vmul.f32 %v2469, %v2475
      %v2493 = vmul.f32 %v2468, %v2479
      %v2494 = vmul.f32 %v2467, %v2483
      %v2495 = vmul.f32 %v2466, %v2487
      %v2496 = vpack.c.bf16 %v2492, %v2492
      %v2497 = vpack.c.bf16 %v2493, %v2493
      %v2498 = vpack.c.bf16 %v2494, %v2494
      %v2499 = vpack.c.bf16 %v2495, %v2495
      %v2504 = vunpack.c.l.b16 %v2496
      %v2505 = vunpack.c.l.b16 %v2497
      %v2506 = vunpack.c.l.b16 %v2498
      %v2507 = vunpack.c.l.b16 %v2499
      %v2508 = vpack.c.b16 %v2505, %v2504
      %v2509 = vpack.c.b16 %v2507, %v2506
      %2512 = vst [vmem:[#allocation2 + $0x60] sm:$0xff] %v2508
      %2513 = vst [vmem:[#allocation2 + $0x68] sm:$0xff] %v2509
      %2514 = vrot.lane.b32.xlu0 %v2118, 56
      %v2515 = vpop.permute.xlu0 %2514
      %2516 = vrot.lane.b32.xlu0 %v2119, 56
      %v2517 = vpop.permute.xlu0 %2516
      %2518 = vrot.lane.b32.xlu0 %v2120, 56
      %v2519 = vpop.permute.xlu0 %2518
      %2520 = vrot.lane.b32.xlu0 %v2121, 56
      %v2521 = vpop.permute.xlu0 %2520
      %v2522 = vsel %vm647, %v2519, %v2521
      %v2523 = vsel %vm647, %v2517, %v2519
      %v2524 = vsel %vm647, %v2515, %v2517
      %v2525 = vsel %vm647, %v2521, %v2515
      %v2526 = vld [vmem:[%s652] sm:$0xf]
      %v2528 = vlaneseq
      %v2529 = vshrl.u32 %v2528, 7
      %v2530 = vsub.s32 0, %v2529
      %v2531 = vrot.slane %v2526, %v2530
      %v2532 = vlaneseq
      %v2533 = vshrl.u32 %v2532, 7
      %v2534 = vsub.s32 1, %v2533
      %v2535 = vrot.slane %v2526, %v2534
      %v2536 = vlaneseq
      %v2537 = vshrl.u32 %v2536, 7
      %v2538 = vsub.s32 2, %v2537
      %v2539 = vrot.slane %v2526, %v2538
      %v2540 = vlaneseq
      %v2541 = vshrl.u32 %v2540, 7
      %v2542 = vsub.s32 3, %v2541
      %v2543 = vrot.slane %v2526, %v2542
      %v2548 = vmul.f32 %v2525, %v2531
      %v2549 = vmul.f32 %v2524, %v2535
      %v2550 = vmul.f32 %v2523, %v2539
      %v2551 = vmul.f32 %v2522, %v2543
      %v2552 = vpack.c.bf16 %v2548, %v2548
      %v2553 = vpack.c.bf16 %v2549, %v2549
      %v2554 = vpack.c.bf16 %v2550, %v2550
      %v2555 = vpack.c.bf16 %v2551, %v2551
      %v2560 = vunpack.c.l.b16 %v2552
      %v2561 = vunpack.c.l.b16 %v2553
      %v2562 = vunpack.c.l.b16 %v2554
      %v2563 = vunpack.c.l.b16 %v2555
      %v2564 = vpack.c.b16 %v2561, %v2560
      %v2565 = vpack.c.b16 %v2563, %v2562
      %2568 = vst [vmem:[#allocation2 + $0x70] sm:$0xff] %v2564
      %2569 = vst [vmem:[#allocation2 + $0x78] sm:$0xff] %v2565
      %2570 = vrot.lane.b32.xlu0 %v2118, 55
      %v2571 = vpop.permute.xlu0 %2570
      %2572 = vrot.lane.b32.xlu0 %v2119, 55
      %v2573 = vpop.permute.xlu0 %2572
      %2574 = vrot.lane.b32.xlu0 %v2120, 55
      %v2575 = vpop.permute.xlu0 %2574
      %2576 = vrot.lane.b32.xlu0 %v2121, 55
      %v2577 = vpop.permute.xlu0 %2576
      %v2578 = vsel %vm705, %v2575, %v2577
      %v2579 = vsel %vm705, %v2573, %v2575
      %v2580 = vsel %vm705, %v2571, %v2573
      %v2581 = vsel %vm705, %v2577, %v2571
      %v2582 = vld [vmem:[%s710] sm:$0xf]
      %v2584 = vlaneseq
      %v2585 = vshrl.u32 %v2584, 7
      %v2586 = vsub.s32 0, %v2585
      %v2587 = vrot.slane %v2582, %v2586
      %v2588 = vlaneseq
      %v2589 = vshrl.u32 %v2588, 7
      %v2590 = vsub.s32 1, %v2589
      %v2591 = vrot.slane %v2582, %v2590
      %v2592 = vlaneseq
      %v2593 = vshrl.u32 %v2592, 7
      %v2594 = vsub.s32 2, %v2593
      %v2595 = vrot.slane %v2582, %v2594
      %v2596 = vlaneseq
      %v2597 = vshrl.u32 %v2596, 7
      %v2598 = vsub.s32 3, %v2597
      %v2599 = vrot.slane %v2582, %v2598
      %v2604 = vmul.f32 %v2581, %v2587
      %v2605 = vmul.f32 %v2580, %v2591
      %v2606 = vmul.f32 %v2579, %v2595
      %v2607 = vmul.f32 %v2578, %v2599
      %v2608 = vpack.c.bf16 %v2604, %v2604
      %v2609 = vpack.c.bf16 %v2605, %v2605
      %v2610 = vpack.c.bf16 %v2606, %v2606
      %v2611 = vpack.c.bf16 %v2607, %v2607
      %v2616 = vunpack.c.l.b16 %v2608
      %v2617 = vunpack.c.l.b16 %v2609
      %v2618 = vunpack.c.l.b16 %v2610
      %v2619 = vunpack.c.l.b16 %v2611
      %v2620 = vpack.c.b16 %v2617, %v2616
      %v2621 = vpack.c.b16 %v2619, %v2618
      %2624 = vst [vmem:[#allocation2 + $0x80] sm:$0xff] %v2620
      %2625 = vst [vmem:[#allocation2 + $0x88] sm:$0xff] %v2621
      %2626 = vrot.lane.b32.xlu0 %v2118, 9
      %v2627 = vpop.permute.xlu0 %2626
      %2628 = vrot.lane.b32.xlu0 %v2119, 9
      %v2629 = vpop.permute.xlu0 %2628
      %2630 = vrot.lane.b32.xlu0 %v2120, 9
      %v2631 = vpop.permute.xlu0 %2630
      %2632 = vrot.lane.b32.xlu0 %v2121, 9
      %v2633 = vpop.permute.xlu0 %2632
      %v2634 = vsel %vm763, %v2631, %v2633
      %v2635 = vsel %vm763, %v2629, %v2631
      %v2636 = vsel %vm763, %v2627, %v2629
      %v2637 = vsel %vm763, %v2633, %v2627
      %v2638 = vld [vmem:[%s768] sm:$0xf]
      %v2640 = vlaneseq
      %v2641 = vshrl.u32 %v2640, 7
      %v2642 = vsub.s32 0, %v2641
      %v2643 = vrot.slane %v2638, %v2642
      %v2644 = vlaneseq
      %v2645 = vshrl.u32 %v2644, 7
      %v2646 = vsub.s32 1, %v2645
      %v2647 = vrot.slane %v2638, %v2646
      %v2648 = vlaneseq
      %v2649 = vshrl.u32 %v2648, 7
      %v2650 = vsub.s32 2, %v2649
      %v2651 = vrot.slane %v2638, %v2650
      %v2652 = vlaneseq
      %v2653 = vshrl.u32 %v2652, 7
      %v2654 = vsub.s32 3, %v2653
      %v2655 = vrot.slane %v2638, %v2654
      %v2660 = vmul.f32 %v2637, %v2643
      %v2661 = vmul.f32 %v2636, %v2647
      %v2662 = vmul.f32 %v2635, %v2651
      %v2663 = vmul.f32 %v2634, %v2655
      %v2664 = vpack.c.bf16 %v2660, %v2660
      %v2665 = vpack.c.bf16 %v2661, %v2661
      %v2666 = vpack.c.bf16 %v2662, %v2662
      %v2667 = vpack.c.bf16 %v2663, %v2663
      %v2672 = vunpack.c.l.b16 %v2664
      %v2673 = vunpack.c.l.b16 %v2665
      %v2674 = vunpack.c.l.b16 %v2666
      %v2675 = vunpack.c.l.b16 %v2667
      %v2676 = vpack.c.b16 %v2673, %v2672
      %v2677 = vpack.c.b16 %v2675, %v2674
      %2680 = vst [vmem:[#allocation2 + $0x90] sm:$0xff] %v2676
      %2681 = vst [vmem:[#allocation2 + $0x98] sm:$0xff] %v2677
      %2682 = vrot.lane.b32.xlu0 %v2118, 8
      %v2683 = vpop.permute.xlu0 %2682
      %2684 = vrot.lane.b32.xlu0 %v2119, 8
      %v2685 = vpop.permute.xlu0 %2684
      %2686 = vrot.lane.b32.xlu0 %v2120, 8
      %v2687 = vpop.permute.xlu0 %2686
      %2688 = vrot.lane.b32.xlu0 %v2121, 8
      %v2689 = vpop.permute.xlu0 %2688
      %v2690 = vsel %vm821, %v2687, %v2689
      %v2691 = vsel %vm821, %v2685, %v2687
      %v2692 = vsel %vm821, %v2683, %v2685
      %v2693 = vsel %vm821, %v2689, %v2683
      %v2694 = vld [vmem:[%s826] sm:$0xf]
      %v2696 = vlaneseq
      %v2697 = vshrl.u32 %v2696, 7
      %v2698 = vsub.s32 0, %v2697
      %v2699 = vrot.slane %v2694, %v2698
      %v2700 = vlaneseq
      %v2701 = vshrl.u32 %v2700, 7
      %v2702 = vsub.s32 1, %v2701
      %v2703 = vrot.slane %v2694, %v2702
      %v2704 = vlaneseq
      %v2705 = vshrl.u32 %v2704, 7
      %v2706 = vsub.s32 2, %v2705
      %v2707 = vrot.slane %v2694, %v2706
      %v2708 = vlaneseq
      %v2709 = vshrl.u32 %v2708, 7
      %v2710 = vsub.s32 3, %v2709
      %v2711 = vrot.slane %v2694, %v2710
      %v2716 = vmul.f32 %v2693, %v2699
      %v2717 = vmul.f32 %v2692, %v2703
      %v2718 = vmul.f32 %v2691, %v2707
      %v2719 = vmul.f32 %v2690, %v2711
      %v2720 = vpack.c.bf16 %v2716, %v2716
      %v2721 = vpack.c.bf16 %v2717, %v2717
      %v2722 = vpack.c.bf16 %v2718, %v2718
      %v2723 = vpack.c.bf16 %v2719, %v2719
      %v2728 = vunpack.c.l.b16 %v2720
      %v2729 = vunpack.c.l.b16 %v2721
      %v2730 = vunpack.c.l.b16 %v2722
      %v2731 = vunpack.c.l.b16 %v2723
      %v2732 = vpack.c.b16 %v2729, %v2728
      %v2733 = vpack.c.b16 %v2731, %v2730
      %2736 = vst [vmem:[#allocation2 + $0xa0] sm:$0xff] %v2732
      %2737 = vst [vmem:[#allocation2 + $0xa8] sm:$0xff] %v2733
      %2738 = vrot.lane.b32.xlu0 %v2118, 7
      %v2739 = vpop.permute.xlu0 %2738
      %2740 = vrot.lane.b32.xlu0 %v2119, 7
      %v2741 = vpop.permute.xlu0 %2740
      %2742 = vrot.lane.b32.xlu0 %v2120, 7
      %v2743 = vpop.permute.xlu0 %2742
      %2744 = vrot.lane.b32.xlu0 %v2121, 7
      %v2745 = vpop.permute.xlu0 %2744
      %v2746 = vsel %vm879, %v2743, %v2745
      %v2747 = vsel %vm879, %v2741, %v2743
      %v2748 = vsel %vm879, %v2739, %v2741
      %v2749 = vsel %vm879, %v2745, %v2739
      %v2750 = vld [vmem:[%s884] sm:$0xf]
      %v2752 = vlaneseq
      %v2753 = vshrl.u32 %v2752, 7
      %v2754 = vsub.s32 0, %v2753
      %v2755 = vrot.slane %v2750, %v2754
      %v2756 = vlaneseq
      %v2757 = vshrl.u32 %v2756, 7
      %v2758 = vsub.s32 1, %v2757
      %v2759 = vrot.slane %v2750, %v2758
      %v2760 = vlaneseq
      %v2761 = vshrl.u32 %v2760, 7
      %v2762 = vsub.s32 2, %v2761
      %v2763 = vrot.slane %v2750, %v2762
      %v2764 = vlaneseq
      %v2765 = vshrl.u32 %v2764, 7
      %v2766 = vsub.s32 3, %v2765
      %v2767 = vrot.slane %v2750, %v2766
      %v2772 = vmul.f32 %v2749, %v2755
      %v2773 = vmul.f32 %v2748, %v2759
      %v2774 = vmul.f32 %v2747, %v2763
      %v2775 = vmul.f32 %v2746, %v2767
      %v2776 = vpack.c.bf16 %v2772, %v2772
      %v2777 = vpack.c.bf16 %v2773, %v2773
      %v2778 = vpack.c.bf16 %v2774, %v2774
      %v2779 = vpack.c.bf16 %v2775, %v2775
      %v2784 = vunpack.c.l.b16 %v2776
      %v2785 = vunpack.c.l.b16 %v2777
      %v2786 = vunpack.c.l.b16 %v2778
      %v2787 = vunpack.c.l.b16 %v2779
      %v2788 = vpack.c.b16 %v2785, %v2784
      %v2789 = vpack.c.b16 %v2787, %v2786
      %2792 = vst [vmem:[#allocation2 + $0xb0] sm:$0xff] %v2788
      %2793 = vst [vmem:[#allocation2 + $0xb8] sm:$0xff] %v2789
      %2794 = vrot.lane.b32.xlu0 %v2118, 1
      %v2795 = vpop.permute.xlu0 %2794
      %2796 = vrot.lane.b32.xlu0 %v2119, 1
      %v2797 = vpop.permute.xlu0 %2796
      %2798 = vrot.lane.b32.xlu0 %v2120, 1
      %v2799 = vpop.permute.xlu0 %2798
      %2800 = vrot.lane.b32.xlu0 %v2121, 1
      %v2801 = vpop.permute.xlu0 %2800
      %v2802 = vsel %vm937, %v2799, %v2801
      %v2803 = vsel %vm937, %v2797, %v2799
      %v2804 = vsel %vm937, %v2795, %v2797
      %v2805 = vsel %vm937, %v2801, %v2795
      %v2806 = vld [vmem:[%s942] sm:$0xf]
      %v2808 = vlaneseq
      %v2809 = vshrl.u32 %v2808, 7
      %v2810 = vsub.s32 0, %v2809
      %v2811 = vrot.slane %v2806, %v2810
      %v2812 = vlaneseq
      %v2813 = vshrl.u32 %v2812, 7
      %v2814 = vsub.s32 1, %v2813
      %v2815 = vrot.slane %v2806, %v2814
      %v2816 = vlaneseq
      %v2817 = vshrl.u32 %v2816, 7
      %v2818 = vsub.s32 2, %v2817
      %v2819 = vrot.slane %v2806, %v2818
      %v2820 = vlaneseq
      %v2821 = vshrl.u32 %v2820, 7
      %v2822 = vsub.s32 3, %v2821
      %v2823 = vrot.slane %v2806, %v2822
      %v2828 = vmul.f32 %v2805, %v2811
      %v2829 = vmul.f32 %v2804, %v2815
      %v2830 = vmul.f32 %v2803, %v2819
      %v2831 = vmul.f32 %v2802, %v2823
      %v2832 = vpack.c.bf16 %v2828, %v2828
      %v2833 = vpack.c.bf16 %v2829, %v2829
      %v2834 = vpack.c.bf16 %v2830, %v2830
      %v2835 = vpack.c.bf16 %v2831, %v2831
      %v2840 = vunpack.c.l.b16 %v2832
      %v2841 = vunpack.c.l.b16 %v2833
      %v2842 = vunpack.c.l.b16 %v2834
      %v2843 = vunpack.c.l.b16 %v2835
      %v2844 = vpack.c.b16 %v2841, %v2840
      %v2845 = vpack.c.b16 %v2843, %v2842
      %2848 = vst [vmem:[#allocation2 + $0xc0] sm:$0xff] %v2844
      %2849 = vst [vmem:[#allocation2 + $0xc8] sm:$0xff] %v2845
      %v2850 = vpack.c.bf16 %v2118, %v2118
      %v2851 = vpack.c.bf16 %v2119, %v2119
      %v2852 = vpack.c.bf16 %v2120, %v2120
      %v2853 = vpack.c.bf16 %v2121, %v2121
      %v2858 = vunpack.c.l.b16 %v2850
      %v2859 = vunpack.c.l.b16 %v2851
      %v2860 = vunpack.c.l.b16 %v2852
      %v2861 = vunpack.c.l.b16 %v2853
      %v2862 = vpack.c.b16 %v2859, %v2858
      %v2863 = vpack.c.b16 %v2861, %v2860
      %2866 = vst [vmem:[#allocation2 + $0xd0] sm:$0xff] %v2862
      %2867 = vst [vmem:[#allocation2 + $0xd8] sm:$0xff] %v2863
      %2868 = vrot.lane.b32.xlu0 %v2118, 127
      %v2869 = vpop.permute.xlu0 %2868
      %2870 = vrot.lane.b32.xlu0 %v2119, 127
      %v2871 = vpop.permute.xlu0 %2870
      %2872 = vrot.lane.b32.xlu0 %v2120, 127
      %v2873 = vpop.permute.xlu0 %2872
      %2874 = vrot.lane.b32.xlu0 %v2121, 127
      %v2875 = vpop.permute.xlu0 %2874
      %v2876 = vsel %vm1013, %v2873, %v2875
      %v2877 = vsel %vm1013, %v2871, %v2873
      %v2878 = vsel %vm1013, %v2869, %v2871
      %v2879 = vsel %vm1013, %v2875, %v2869
      %v2880 = vld [vmem:[%s1018] sm:$0xf]
      %v2882 = vlaneseq
      %v2883 = vshrl.u32 %v2882, 7
      %v2884 = vsub.s32 0, %v2883
      %v2885 = vrot.slane %v2880, %v2884
      %v2886 = vlaneseq
      %v2887 = vshrl.u32 %v2886, 7
      %v2888 = vsub.s32 1, %v2887
      %v2889 = vrot.slane %v2880, %v2888
      %v2890 = vlaneseq
      %v2891 = vshrl.u32 %v2890, 7
      %v2892 = vsub.s32 2, %v2891
      %v2893 = vrot.slane %v2880, %v2892
      %v2894 = vlaneseq
      %v2895 = vshrl.u32 %v2894, 7
      %v2896 = vsub.s32 3, %v2895
      %v2897 = vrot.slane %v2880, %v2896
      %v2902 = vmul.f32 %v2878, %v2885
      %v2903 = vmul.f32 %v2877, %v2889
      %v2904 = vmul.f32 %v2876, %v2893
      %v2905 = vmul.f32 %v2879, %v2897
      %v2906 = vpack.c.bf16 %v2902, %v2902
      %v2907 = vpack.c.bf16 %v2903, %v2903
      %v2908 = vpack.c.bf16 %v2904, %v2904
      %v2909 = vpack.c.bf16 %v2905, %v2905
      %v2914 = vunpack.c.l.b16 %v2906
      %v2915 = vunpack.c.l.b16 %v2907
      %v2916 = vunpack.c.l.b16 %v2908
      %v2917 = vunpack.c.l.b16 %v2909
      %v2918 = vpack.c.b16 %v2915, %v2914
      %v2919 = vpack.c.b16 %v2917, %v2916
      %2922 = vst [vmem:[#allocation2 + $0xe0] sm:$0xff] %v2918
      %2923 = vst [vmem:[#allocation2 + $0xe8] sm:$0xff] %v2919
      %2924 = vrot.lane.b32.xlu0 %v2118, 121
      %v2925 = vpop.permute.xlu0 %2924
      %2926 = vrot.lane.b32.xlu0 %v2119, 121
      %v2927 = vpop.permute.xlu0 %2926
      %2928 = vrot.lane.b32.xlu0 %v2120, 121
      %v2929 = vpop.permute.xlu0 %2928
      %2930 = vrot.lane.b32.xlu0 %v2121, 121
      %v2931 = vpop.permute.xlu0 %2930
      %v2932 = vsel %vm1071, %v2929, %v2931
      %v2933 = vsel %vm1071, %v2927, %v2929
      %v2934 = vsel %vm1071, %v2925, %v2927
      %v2935 = vsel %vm1071, %v2931, %v2925
      %v2936 = vld [vmem:[%s1076] sm:$0xf]
      %v2938 = vlaneseq
      %v2939 = vshrl.u32 %v2938, 7
      %v2940 = vsub.s32 0, %v2939
      %v2941 = vrot.slane %v2936, %v2940
      %v2942 = vlaneseq
      %v2943 = vshrl.u32 %v2942, 7
      %v2944 = vsub.s32 1, %v2943
      %v2945 = vrot.slane %v2936, %v2944
      %v2946 = vlaneseq
      %v2947 = vshrl.u32 %v2946, 7
      %v2948 = vsub.s32 2, %v2947
      %v2949 = vrot.slane %v2936, %v2948
      %v2950 = vlaneseq
      %v2951 = vshrl.u32 %v2950, 7
      %v2952 = vsub.s32 3, %v2951
      %v2953 = vrot.slane %v2936, %v2952
      %v2958 = vmul.f32 %v2934, %v2941
      %v2959 = vmul.f32 %v2933, %v2945
      %v2960 = vmul.f32 %v2932, %v2949
      %v2961 = vmul.f32 %v2935, %v2953
      %v2962 = vpack.c.bf16 %v2958, %v2958
      %v2963 = vpack.c.bf16 %v2959, %v2959
      %v2964 = vpack.c.bf16 %v2960, %v2960
      %v2965 = vpack.c.bf16 %v2961, %v2961
      %v2970 = vunpack.c.l.b16 %v2962
      %v2971 = vunpack.c.l.b16 %v2963
      %v2972 = vunpack.c.l.b16 %v2964
      %v2973 = vunpack.c.l.b16 %v2965
      %v2974 = vpack.c.b16 %v2971, %v2970
      %v2975 = vpack.c.b16 %v2973, %v2972
      %2978 = vst [vmem:[#allocation2 + $0xf0] sm:$0xff] %v2974
      %2979 = vst [vmem:[#allocation2 + $0xf8] sm:$0xff] %v2975
      %2980 = vrot.lane.b32.xlu0 %v2118, 120
      %v2981 = vpop.permute.xlu0 %2980
      %2982 = vrot.lane.b32.xlu0 %v2119, 120
      %v2983 = vpop.permute.xlu0 %2982
      %2984 = vrot.lane.b32.xlu0 %v2120, 120
      %v2985 = vpop.permute.xlu0 %2984
      %2986 = vrot.lane.b32.xlu0 %v2121, 120
      %v2987 = vpop.permute.xlu0 %2986
      %v2988 = vsel %vm1129, %v2985, %v2987
      %v2989 = vsel %vm1129, %v2983, %v2985
      %v2990 = vsel %vm1129, %v2981, %v2983
      %v2991 = vsel %vm1129, %v2987, %v2981
      %v2992 = vld [vmem:[%s1134] sm:$0xf]
      %v2994 = vlaneseq
      %v2995 = vshrl.u32 %v2994, 7
      %v2996 = vsub.s32 0, %v2995
      %v2997 = vrot.slane %v2992, %v2996
      %v2998 = vlaneseq
      %v2999 = vshrl.u32 %v2998, 7
      %v3000 = vsub.s32 1, %v2999
      %v3001 = vrot.slane %v2992, %v3000
      %v3002 = vlaneseq
      %v3003 = vshrl.u32 %v3002, 7
      %v3004 = vsub.s32 2, %v3003
      %v3005 = vrot.slane %v2992, %v3004
      %v3006 = vlaneseq
      %v3007 = vshrl.u32 %v3006, 7
      %v3008 = vsub.s32 3, %v3007
      %v3009 = vrot.slane %v2992, %v3008
      %v3014 = vmul.f32 %v2990, %v2997
      %v3015 = vmul.f32 %v2989, %v3001
      %v3016 = vmul.f32 %v2988, %v3005
      %v3017 = vmul.f32 %v2991, %v3009
      %v3018 = vpack.c.bf16 %v3014, %v3014
      %v3019 = vpack.c.bf16 %v3015, %v3015
      %v3020 = vpack.c.bf16 %v3016, %v3016
      %v3021 = vpack.c.bf16 %v3017, %v3017
      %v3026 = vunpack.c.l.b16 %v3018
      %v3027 = vunpack.c.l.b16 %v3019
      %v3028 = vunpack.c.l.b16 %v3020
      %v3029 = vunpack.c.l.b16 %v3021
      %v3030 = vpack.c.b16 %v3027, %v3026
      %v3031 = vpack.c.b16 %v3029, %v3028
      %3034 = vst [vmem:[#allocation2 + $0x100] sm:$0xff] %v3030
      %3035 = vst [vmem:[#allocation2 + $0x108] sm:$0xff] %v3031
      %3036 = vrot.lane.b32.xlu0 %v2118, 119
      %v3037 = vpop.permute.xlu0 %3036
      %3038 = vrot.lane.b32.xlu0 %v2119, 119
      %v3039 = vpop.permute.xlu0 %3038
      %3040 = vrot.lane.b32.xlu0 %v2120, 119
      %v3041 = vpop.permute.xlu0 %3040
      %3042 = vrot.lane.b32.xlu0 %v2121, 119
      %v3043 = vpop.permute.xlu0 %3042
      %v3044 = vsel %vm1187, %v3041, %v3043
      %v3045 = vsel %vm1187, %v3039, %v3041
      %v3046 = vsel %vm1187, %v3037, %v3039
      %v3047 = vsel %vm1187, %v3043, %v3037
      %v3048 = vld [vmem:[%s1192] sm:$0xf]
      %v3050 = vlaneseq
      %v3051 = vshrl.u32 %v3050, 7
      %v3052 = vsub.s32 0, %v3051
      %v3053 = vrot.slane %v3048, %v3052
      %v3054 = vlaneseq
      %v3055 = vshrl.u32 %v3054, 7
      %v3056 = vsub.s32 1, %v3055
      %v3057 = vrot.slane %v3048, %v3056
      %v3058 = vlaneseq
      %v3059 = vshrl.u32 %v3058, 7
      %v3060 = vsub.s32 2, %v3059
      %v3061 = vrot.slane %v3048, %v3060
      %v3062 = vlaneseq
      %v3063 = vshrl.u32 %v3062, 7
      %v3064 = vsub.s32 3, %v3063
      %v3065 = vrot.slane %v3048, %v3064
      %v3070 = vmul.f32 %v3046, %v3053
      %v3071 = vmul.f32 %v3045, %v3057
      %v3072 = vmul.f32 %v3044, %v3061
      %v3073 = vmul.f32 %v3047, %v3065
      %v3074 = vpack.c.bf16 %v3070, %v3070
      %v3075 = vpack.c.bf16 %v3071, %v3071
      %v3076 = vpack.c.bf16 %v3072, %v3072
      %v3077 = vpack.c.bf16 %v3073, %v3073
      %v3082 = vunpack.c.l.b16 %v3074
      %v3083 = vunpack.c.l.b16 %v3075
      %v3084 = vunpack.c.l.b16 %v3076
      %v3085 = vunpack.c.l.b16 %v3077
      %v3086 = vpack.c.b16 %v3083, %v3082
      %v3087 = vpack.c.b16 %v3085, %v3084
      %3090 = vst [vmem:[#allocation2 + $0x110] sm:$0xff] %v3086
      %3091 = vst [vmem:[#allocation2 + $0x118] sm:$0xff] %v3087
      %v3092 = vld [vmem:[%s1237] sm:$0xf]
      %v3094 = vlaneseq
      %v3095 = vshrl.u32 %v3094, 7
      %v3096 = vsub.s32 0, %v3095
      %v3097 = vrot.slane %v3092, %v3096
      %v3098 = vlaneseq
      %v3099 = vshrl.u32 %v3098, 7
      %v3100 = vsub.s32 1, %v3099
      %v3101 = vrot.slane %v3092, %v3100
      %v3102 = vlaneseq
      %v3103 = vshrl.u32 %v3102, 7
      %v3104 = vsub.s32 2, %v3103
      %v3105 = vrot.slane %v3092, %v3104
      %v3106 = vlaneseq
      %v3107 = vshrl.u32 %v3106, 7
      %v3108 = vsub.s32 3, %v3107
      %v3109 = vrot.slane %v3092, %v3108
      %v3114 = vmul.f32 %v2132, %v3097
      %v3115 = vmul.f32 %v2131, %v3101
      %v3116 = vmul.f32 %v2130, %v3105
      %v3117 = vmul.f32 %v2133, %v3109
      %v3118 = vpack.c.bf16 %v3114, %v3114
      %v3119 = vpack.c.bf16 %v3115, %v3115
      %v3120 = vpack.c.bf16 %v3116, %v3116
      %v3121 = vpack.c.bf16 %v3117, %v3117
      %v3126 = vunpack.c.l.b16 %v3118
      %v3127 = vunpack.c.l.b16 %v3119
      %v3128 = vunpack.c.l.b16 %v3120
      %v3129 = vunpack.c.l.b16 %v3121
      %v3130 = vpack.c.b16 %v3127, %v3126
      %v3131 = vpack.c.b16 %v3129, %v3128
      %3134 = vst [vmem:[#allocation2 + $0x120] sm:$0xff] %v3130
      %3135 = vst [vmem:[#allocation2 + $0x128] sm:$0xff] %v3131
      %v3136 = vld [vmem:[%s1282] sm:$0xf]
      %v3138 = vlaneseq
      %v3139 = vshrl.u32 %v3138, 7
      %v3140 = vsub.s32 0, %v3139
      %v3141 = vrot.slane %v3136, %v3140
      %v3142 = vlaneseq
      %v3143 = vshrl.u32 %v3142, 7
      %v3144 = vsub.s32 1, %v3143
      %v3145 = vrot.slane %v3136, %v3144
      %v3146 = vlaneseq
      %v3147 = vshrl.u32 %v3146, 7
      %v3148 = vsub.s32 2, %v3147
      %v3149 = vrot.slane %v3136, %v3148
      %v3150 = vlaneseq
      %v3151 = vshrl.u32 %v3150, 7
      %v3152 = vsub.s32 3, %v3151
      %v3153 = vrot.slane %v3136, %v3152
      %v3158 = vmul.f32 %v2188, %v3141
      %v3159 = vmul.f32 %v2187, %v3145
      %v3160 = vmul.f32 %v2186, %v3149
      %v3161 = vmul.f32 %v2189, %v3153
      %v3162 = vpack.c.bf16 %v3158, %v3158
      %v3163 = vpack.c.bf16 %v3159, %v3159
      %v3164 = vpack.c.bf16 %v3160, %v3160
      %v3165 = vpack.c.bf16 %v3161, %v3161
      %v3170 = vunpack.c.l.b16 %v3162
      %v3171 = vunpack.c.l.b16 %v3163
      %v3172 = vunpack.c.l.b16 %v3164
      %v3173 = vunpack.c.l.b16 %v3165
      %v3174 = vpack.c.b16 %v3171, %v3170
      %v3175 = vpack.c.b16 %v3173, %v3172
      %3178 = vst [vmem:[#allocation2 + $0x130] sm:$0xff] %v3174
      %3179 = vst [vmem:[#allocation2 + $0x138] sm:$0xff] %v3175
      %v3180 = vld [vmem:[%s1327] sm:$0xf]
      %v3182 = vlaneseq
      %v3183 = vshrl.u32 %v3182, 7
      %v3184 = vsub.s32 0, %v3183
      %v3185 = vrot.slane %v3180, %v3184
      %v3186 = vlaneseq
      %v3187 = vshrl.u32 %v3186, 7
      %v3188 = vsub.s32 1, %v3187
      %v3189 = vrot.slane %v3180, %v3188
      %v3190 = vlaneseq
      %v3191 = vshrl.u32 %v3190, 7
      %v3192 = vsub.s32 2, %v3191
      %v3193 = vrot.slane %v3180, %v3192
      %v3194 = vlaneseq
      %v3195 = vshrl.u32 %v3194, 7
      %v3196 = vsub.s32 3, %v3195
      %v3197 = vrot.slane %v3180, %v3196
      %v3202 = vmul.f32 %v2244, %v3185
      %v3203 = vmul.f32 %v2243, %v3189
      %v3204 = vmul.f32 %v2242, %v3193
      %v3205 = vmul.f32 %v2245, %v3197
      %v3206 = vpack.c.bf16 %v3202, %v3202
      %v3207 = vpack.c.bf16 %v3203, %v3203
      %v3208 = vpack.c.bf16 %v3204, %v3204
      %v3209 = vpack.c.bf16 %v3205, %v3205
      %v3214 = vunpack.c.l.b16 %v3206
      %v3215 = vunpack.c.l.b16 %v3207
      %v3216 = vunpack.c.l.b16 %v3208
      %v3217 = vunpack.c.l.b16 %v3209
      %v3218 = vpack.c.b16 %v3215, %v3214
      %v3219 = vpack.c.b16 %v3217, %v3216
      %3222 = vst [vmem:[#allocation2 + $0x140] sm:$0xff] %v3218
      %3223 = vst [vmem:[#allocation2 + $0x148] sm:$0xff] %v3219
      %v3224 = vld [vmem:[%s1372] sm:$0xf]
      %v3226 = vlaneseq
      %v3227 = vshrl.u32 %v3226, 7
      %v3228 = vsub.s32 0, %v3227
      %v3229 = vrot.slane %v3224, %v3228
      %v3230 = vlaneseq
      %v3231 = vshrl.u32 %v3230, 7
      %v3232 = vsub.s32 1, %v3231
      %v3233 = vrot.slane %v3224, %v3232
      %v3234 = vlaneseq
      %v3235 = vshrl.u32 %v3234, 7
      %v3236 = vsub.s32 2, %v3235
      %v3237 = vrot.slane %v3224, %v3236
      %v3238 = vlaneseq
      %v3239 = vshrl.u32 %v3238, 7
      %v3240 = vsub.s32 3, %v3239
      %v3241 = vrot.slane %v3224, %v3240
      %v3246 = vmul.f32 %v2300, %v3229
      %v3247 = vmul.f32 %v2299, %v3233
      %v3248 = vmul.f32 %v2298, %v3237
      %v3249 = vmul.f32 %v2301, %v3241
      %v3250 = vpack.c.bf16 %v3246, %v3246
      %v3251 = vpack.c.bf16 %v3247, %v3247
      %v3252 = vpack.c.bf16 %v3248, %v3248
      %v3253 = vpack.c.bf16 %v3249, %v3249
      %v3258 = vunpack.c.l.b16 %v3250
      %v3259 = vunpack.c.l.b16 %v3251
      %v3260 = vunpack.c.l.b16 %v3252
      %v3261 = vunpack.c.l.b16 %v3253
      %v3262 = vpack.c.b16 %v3259, %v3258
      %v3263 = vpack.c.b16 %v3261, %v3260
      %3266 = vst [vmem:[#allocation2 + $0x150] sm:$0xff] %v3262
      %3267 = vst [vmem:[#allocation2 + $0x158] sm:$0xff] %v3263
      %v3268 = vld [vmem:[%s1417] sm:$0xf]
      %v3270 = vlaneseq
      %v3271 = vshrl.u32 %v3270, 7
      %v3272 = vsub.s32 0, %v3271
      %v3273 = vrot.slane %v3268, %v3272
      %v3274 = vlaneseq
      %v3275 = vshrl.u32 %v3274, 7
      %v3276 = vsub.s32 1, %v3275
      %v3277 = vrot.slane %v3268, %v3276
      %v3278 = vlaneseq
      %v3279 = vshrl.u32 %v3278, 7
      %v3280 = vsub.s32 2, %v3279
      %v3281 = vrot.slane %v3268, %v3280
      %v3282 = vlaneseq
      %v3283 = vshrl.u32 %v3282, 7
      %v3284 = vsub.s32 3, %v3283
      %v3285 = vrot.slane %v3268, %v3284
      %v3290 = vmul.f32 %v2356, %v3273
      %v3291 = vmul.f32 %v2355, %v3277
      %v3292 = vmul.f32 %v2354, %v3281
      %v3293 = vmul.f32 %v2357, %v3285
      %v3294 = vpack.c.bf16 %v3290, %v3290
      %v3295 = vpack.c.bf16 %v3291, %v3291
      %v3296 = vpack.c.bf16 %v3292, %v3292
      %v3297 = vpack.c.bf16 %v3293, %v3293
      %v3302 = vunpack.c.l.b16 %v3294
      %v3303 = vunpack.c.l.b16 %v3295
      %v3304 = vunpack.c.l.b16 %v3296
      %v3305 = vunpack.c.l.b16 %v3297
      %v3306 = vpack.c.b16 %v3303, %v3302
      %v3307 = vpack.c.b16 %v3305, %v3304
      %3310 = vst [vmem:[#allocation2 + $0x160] sm:$0xff] %v3306
      %3311 = vst [vmem:[#allocation2 + $0x168] sm:$0xff] %v3307
      %v3312 = vld [vmem:[%s1462] sm:$0xf]
      %v3314 = vlaneseq
      %v3315 = vshrl.u32 %v3314, 7
      %v3316 = vsub.s32 0, %v3315
      %v3317 = vrot.slane %v3312, %v3316
      %v3318 = vlaneseq
      %v3319 = vshrl.u32 %v3318, 7
      %v3320 = vsub.s32 1, %v3319
      %v3321 = vrot.slane %v3312, %v3320
      %v3322 = vlaneseq
      %v3323 = vshrl.u32 %v3322, 7
      %v3324 = vsub.s32 2, %v3323
      %v3325 = vrot.slane %v3312, %v3324
      %v3326 = vlaneseq
      %v3327 = vshrl.u32 %v3326, 7
      %v3328 = vsub.s32 3, %v3327
      %v3329 = vrot.slane %v3312, %v3328
      %v3334 = vmul.f32 %v2412, %v3317
      %v3335 = vmul.f32 %v2411, %v3321
      %v3336 = vmul.f32 %v2410, %v3325
      %v3337 = vmul.f32 %v2413, %v3329
      %v3338 = vpack.c.bf16 %v3334, %v3334
      %v3339 = vpack.c.bf16 %v3335, %v3335
      %v3340 = vpack.c.bf16 %v3336, %v3336
      %v3341 = vpack.c.bf16 %v3337, %v3337
      %v3346 = vunpack.c.l.b16 %v3338
      %v3347 = vunpack.c.l.b16 %v3339
      %v3348 = vunpack.c.l.b16 %v3340
      %v3349 = vunpack.c.l.b16 %v3341
      %v3350 = vpack.c.b16 %v3347, %v3346
      %v3351 = vpack.c.b16 %v3349, %v3348
      %3354 = vst [vmem:[#allocation2 + $0x170] sm:$0xff] %v3350
      %3355 = vst [vmem:[#allocation2 + $0x178] sm:$0xff] %v3351
      %v3356 = vld [vmem:[%s1507] sm:$0xf]
      %v3358 = vlaneseq
      %v3359 = vshrl.u32 %v3358, 7
      %v3360 = vsub.s32 0, %v3359
      %v3361 = vrot.slane %v3356, %v3360
      %v3362 = vlaneseq
      %v3363 = vshrl.u32 %v3362, 7
      %v3364 = vsub.s32 1, %v3363
      %v3365 = vrot.slane %v3356, %v3364
      %v3366 = vlaneseq
      %v3367 = vshrl.u32 %v3366, 7
      %v3368 = vsub.s32 2, %v3367
      %v3369 = vrot.slane %v3356, %v3368
      %v3370 = vlaneseq
      %v3371 = vshrl.u32 %v3370, 7
      %v3372 = vsub.s32 3, %v3371
      %v3373 = vrot.slane %v3356, %v3372
      %v3378 = vmul.f32 %v2468, %v3361
      %v3379 = vmul.f32 %v2467, %v3365
      %v3380 = vmul.f32 %v2466, %v3369
      %v3381 = vmul.f32 %v2469, %v3373
      %v3382 = vpack.c.bf16 %v3378, %v3378
      %v3383 = vpack.c.bf16 %v3379, %v3379
      %v3384 = vpack.c.bf16 %v3380, %v3380
      %v3385 = vpack.c.bf16 %v3381, %v3381
      %v3390 = vunpack.c.l.b16 %v3382
      %v3391 = vunpack.c.l.b16 %v3383
      %v3392 = vunpack.c.l.b16 %v3384
      %v3393 = vunpack.c.l.b16 %v3385
      %v3394 = vpack.c.b16 %v3391, %v3390
      %v3395 = vpack.c.b16 %v3393, %v3392
      %3398 = vst [vmem:[#allocation2 + $0x180] sm:$0xff] %v3394
      %3399 = vst [vmem:[#allocation2 + $0x188] sm:$0xff] %v3395
      %v3400 = vld [vmem:[%s1552] sm:$0xf]
      %v3402 = vlaneseq
      %v3403 = vshrl.u32 %v3402, 7
      %v3404 = vsub.s32 0, %v3403
      %v3405 = vrot.slane %v3400, %v3404
      %v3406 = vlaneseq
      %v3407 = vshrl.u32 %v3406, 7
      %v3408 = vsub.s32 1, %v3407
      %v3409 = vrot.slane %v3400, %v3408
      %v3410 = vlaneseq
      %v3411 = vshrl.u32 %v3410, 7
      %v3412 = vsub.s32 2, %v3411
      %v3413 = vrot.slane %v3400, %v3412
      %v3414 = vlaneseq
      %v3415 = vshrl.u32 %v3414, 7
      %v3416 = vsub.s32 3, %v3415
      %v3417 = vrot.slane %v3400, %v3416
      %v3422 = vmul.f32 %v2524, %v3405
      %v3423 = vmul.f32 %v2523, %v3409
      %v3424 = vmul.f32 %v2522, %v3413
      %v3425 = vmul.f32 %v2525, %v3417
      %v3426 = vpack.c.bf16 %v3422, %v3422
      %v3427 = vpack.c.bf16 %v3423, %v3423
      %v3428 = vpack.c.bf16 %v3424, %v3424
      %v3429 = vpack.c.bf16 %v3425, %v3425
      %v3434 = vunpack.c.l.b16 %v3426
      %v3435 = vunpack.c.l.b16 %v3427
      %v3436 = vunpack.c.l.b16 %v3428
      %v3437 = vunpack.c.l.b16 %v3429
      %v3438 = vpack.c.b16 %v3435, %v3434
      %v3439 = vpack.c.b16 %v3437, %v3436
      %3442 = vst [vmem:[#allocation2 + $0x190] sm:$0xff] %v3438
      %3443 = vst [vmem:[#allocation2 + $0x198] sm:$0xff] %v3439
      %v3444 = vld [vmem:[%s1597] sm:$0xf]
      %v3446 = vlaneseq
      %v3447 = vshrl.u32 %v3446, 7
      %v3448 = vsub.s32 0, %v3447
      %v3449 = vrot.slane %v3444, %v3448
      %v3450 = vlaneseq
      %v3451 = vshrl.u32 %v3450, 7
      %v3452 = vsub.s32 1, %v3451
      %v3453 = vrot.slane %v3444, %v3452
      %v3454 = vlaneseq
      %v3455 = vshrl.u32 %v3454, 7
      %v3456 = vsub.s32 2, %v3455
      %v3457 = vrot.slane %v3444, %v3456
      %v3458 = vlaneseq
      %v3459 = vshrl.u32 %v3458, 7
      %v3460 = vsub.s32 3, %v3459
      %v3461 = vrot.slane %v3444, %v3460
      %v3466 = vmul.f32 %v2580, %v3449
      %v3467 = vmul.f32 %v2579, %v3453
      %v3468 = vmul.f32 %v2578, %v3457
      %v3469 = vmul.f32 %v2581, %v3461
      %v3470 = vpack.c.bf16 %v3466, %v3466
      %v3471 = vpack.c.bf16 %v3467, %v3467
      %v3472 = vpack.c.bf16 %v3468, %v3468
      %v3473 = vpack.c.bf16 %v3469, %v3469
      %v3478 = vunpack.c.l.b16 %v3470
      %v3479 = vunpack.c.l.b16 %v3471
      %v3480 = vunpack.c.l.b16 %v3472
      %v3481 = vunpack.c.l.b16 %v3473
      %v3482 = vpack.c.b16 %v3479, %v3478
      %v3483 = vpack.c.b16 %v3481, %v3480
      %3486 = vst [vmem:[#allocation2 + $0x1a0] sm:$0xff] %v3482
      %3487 = vst [vmem:[#allocation2 + $0x1a8] sm:$0xff] %v3483
      %v3488 = vld [vmem:[%s3] sm:$0xff]
      %v3489 = vld [vmem:[#allocation2] sm:$0xff]
      %v3490 = vld [vmem:[#allocation2 + $0x8] sm:$0xff]
      %v3491 = vld [vmem:[#allocation2 + $0x10] sm:$0xff]
      %v3492 = vld [vmem:[#allocation2 + $0x18] sm:$0xff]
      %v3493 = vld [vmem:[#allocation2 + $0x20] sm:$0xff]
      %v3494 = vld [vmem:[#allocation2 + $0x28] sm:$0xff]
      %v3495 = vld [vmem:[#allocation2 + $0x30] sm:$0xff]
      %v3496 = vld [vmem:[#allocation2 + $0x38] sm:$0xff]
      %v3497 = vld [vmem:[#allocation2 + $0x40] sm:$0xff]
      %v3498 = vld [vmem:[#allocation2 + $0x48] sm:$0xff]
      %v3499 = vld [vmem:[#allocation2 + $0x50] sm:$0xff]
      %v3500 = vld [vmem:[#allocation2 + $0x58] sm:$0xff]
      %v3501 = vld [vmem:[#allocation2 + $0x60] sm:$0xff]
      %v3502 = vld [vmem:[#allocation2 + $0x68] sm:$0xff]
      %v3503 = vld [vmem:[#allocation2 + $0x70] sm:$0xff]
      %v3504 = vld [vmem:[#allocation2 + $0x78] sm:$0xff]
      %v3505 = vld [vmem:[#allocation2 + $0x80] sm:$0xff]
      %v3506 = vld [vmem:[#allocation2 + $0x88] sm:$0xff]
      %v3507 = vld [vmem:[#allocation2 + $0x90] sm:$0xff]
      %v3508 = vld [vmem:[#allocation2 + $0x98] sm:$0xff]
      %v3509 = vld [vmem:[#allocation2 + $0xa0] sm:$0xff]
      %v3510 = vld [vmem:[#allocation2 + $0xa8] sm:$0xff]
      %v3511 = vld [vmem:[#allocation2 + $0xb0] sm:$0xff]
      %v3512 = vld [vmem:[#allocation2 + $0xb8] sm:$0xff]
      %v3513 = vld [vmem:[#allocation2 + $0xc0] sm:$0xff]
      %v3514 = vld [vmem:[#allocation2 + $0xc8] sm:$0xff]
      %v3515 = vld [vmem:[#allocation2 + $0xd0] sm:$0xff]
      %v3516 = vld [vmem:[#allocation2 + $0xd8] sm:$0xff]
      %v3517 = vld [vmem:[#allocation2 + $0xe0] sm:$0xff]
      %v3518 = vld [vmem:[#allocation2 + $0xe8] sm:$0xff]
      %v3519 = vld [vmem:[#allocation2 + $0xf0] sm:$0xff]
      %v3520 = vld [vmem:[#allocation2 + $0xf8] sm:$0xff]
      %v3521 = vld [vmem:[#allocation2 + $0x100] sm:$0xff]
      %v3522 = vld [vmem:[#allocation2 + $0x108] sm:$0xff]
      %v3523 = vld [vmem:[#allocation2 + $0x110] sm:$0xff]
      %v3524 = vld [vmem:[#allocation2 + $0x118] sm:$0xff]
      %v3525 = vld [vmem:[#allocation2 + $0x120] sm:$0xff]
      %v3526 = vld [vmem:[#allocation2 + $0x128] sm:$0xff]
      %v3527 = vld [vmem:[#allocation2 + $0x130] sm:$0xff]
      %v3528 = vld [vmem:[#allocation2 + $0x138] sm:$0xff]
      %v3529 = vld [vmem:[#allocation2 + $0x140] sm:$0xff]
      %v3530 = vld [vmem:[#allocation2 + $0x148] sm:$0xff]
      %v3531 = vld [vmem:[#allocation2 + $0x150] sm:$0xff]
      %v3532 = vld [vmem:[#allocation2 + $0x158] sm:$0xff]
      %v3533 = vld [vmem:[#allocation2 + $0x160] sm:$0xff]
      %v3534 = vld [vmem:[#allocation2 + $0x168] sm:$0xff]
      %v3535 = vld [vmem:[#allocation2 + $0x170] sm:$0xff]
      %v3536 = vld [vmem:[#allocation2 + $0x178] sm:$0xff]
      %v3537 = vld [vmem:[#allocation2 + $0x180] sm:$0xff]
      %v3538 = vld [vmem:[#allocation2 + $0x188] sm:$0xff]
      %v3539 = vld [vmem:[#allocation2 + $0x190] sm:$0xff]
      %v3540 = vld [vmem:[#allocation2 + $0x198] sm:$0xff]
      %v3541 = vld [vmem:[#allocation2 + $0x1a0] sm:$0xff]
      %v3542 = vld [vmem:[#allocation2 + $0x1a8] sm:$0xff]
      %v3544 = vunpack.c.l.b16 %v3488
      %v3545 = vunpack.c.h.b16 %v3488
      %v3546 = vpack.c.b16 %v3544, %v3544
      %v3547 = vpack.c.b16 %v3545, %v3545
      %v3603 = vunpack.c.l.b16 %v3489
      %v3604 = vunpack.c.h.b16 %v3489
      %v3605 = vunpack.c.l.b16 %v3490
      %v3606 = vunpack.c.h.b16 %v3490
      %v3607 = vunpack.c.l.b16 %v3491
      %v3608 = vunpack.c.h.b16 %v3491
      %v3609 = vunpack.c.l.b16 %v3492
      %v3610 = vunpack.c.h.b16 %v3492
      %v3611 = vunpack.c.l.b16 %v3493
      %v3612 = vunpack.c.h.b16 %v3493
      %v3613 = vunpack.c.l.b16 %v3494
      %v3614 = vunpack.c.h.b16 %v3494
      %v3615 = vunpack.c.l.b16 %v3495
      %v3616 = vunpack.c.h.b16 %v3495
      %v3617 = vunpack.c.l.b16 %v3496
      %v3618 = vunpack.c.h.b16 %v3496
      %v3619 = vunpack.c.l.b16 %v3497
      %v3620 = vunpack.c.h.b16 %v3497
      %v3621 = vunpack.c.l.b16 %v3498
      %v3622 = vunpack.c.h.b16 %v3498
      %v3623 = vunpack.c.l.b16 %v3499
      %v3624 = vunpack.c.h.b16 %v3499
      %v3625 = vunpack.c.l.b16 %v3500
      %v3626 = vunpack.c.h.b16 %v3500
      %v3627 = vunpack.c.l.b16 %v3501
      %v3628 = vunpack.c.h.b16 %v3501
      %v3629 = vunpack.c.l.b16 %v3502
      %v3630 = vunpack.c.h.b16 %v3502
      %v3631 = vunpack.c.l.b16 %v3503
      %v3632 = vunpack.c.h.b16 %v3503
      %v3633 = vunpack.c.l.b16 %v3504
      %v3634 = vunpack.c.h.b16 %v3504
      %v3635 = vunpack.c.l.b16 %v3505
      %v3636 = vunpack.c.h.b16 %v3505
      %v3637 = vunpack.c.l.b16 %v3506
      %v3638 = vunpack.c.h.b16 %v3506
      %v3639 = vunpack.c.l.b16 %v3507
      %v3640 = vunpack.c.h.b16 %v3507
      %v3641 = vunpack.c.l.b16 %v3508
      %v3642 = vunpack.c.h.b16 %v3508
      %v3643 = vunpack.c.l.b16 %v3509
      %v3644 = vunpack.c.h.b16 %v3509
      %v3645 = vunpack.c.l.b16 %v3510
      %v3646 = vunpack.c.h.b16 %v3510
      %v3647 = vunpack.c.l.b16 %v3511
      %v3648 = vunpack.c.h.b16 %v3511
      %v3649 = vunpack.c.l.b16 %v3512
      %v3650 = vunpack.c.h.b16 %v3512
      %v3651 = vunpack.c.l.b16 %v3513
      %v3652 = vunpack.c.h.b16 %v3513
      %v3653 = vunpack.c.l.b16 %v3514
      %v3654 = vunpack.c.h.b16 %v3514
      %v3655 = vunpack.c.l.b16 %v3515
      %v3656 = vunpack.c.h.b16 %v3515
      %v3657 = vunpack.c.l.b16 %v3516
      %v3658 = vunpack.c.h.b16 %v3516
      %v3659 = vunpack.c.l.b16 %v3517
      %v3660 = vunpack.c.h.b16 %v3517
      %v3661 = vunpack.c.l.b16 %v3518
      %v3662 = vunpack.c.h.b16 %v3518
      %v3663 = vunpack.c.l.b16 %v3519
      %v3664 = vunpack.c.h.b16 %v3519
      %v3665 = vunpack.c.l.b16 %v3520
      %v3666 = vunpack.c.h.b16 %v3520
      %v3667 = vunpack.c.l.b16 %v3521
      %v3668 = vunpack.c.h.b16 %v3521
      %v3669 = vunpack.c.l.b16 %v3522
      %v3670 = vunpack.c.h.b16 %v3522
      %v3671 = vunpack.c.l.b16 %v3523
      %v3672 = vunpack.c.h.b16 %v3523
      %v3673 = vunpack.c.l.b16 %v3524
      %v3674 = vunpack.c.h.b16 %v3524
      %v3675 = vunpack.c.l.b16 %v3525
      %v3676 = vunpack.c.h.b16 %v3525
      %v3677 = vunpack.c.l.b16 %v3526
      %v3678 = vunpack.c.h.b16 %v3526
      %v3679 = vunpack.c.l.b16 %v3527
      %v3680 = vunpack.c.h.b16 %v3527
      %v3681 = vunpack.c.l.b16 %v3528
      %v3682 = vunpack.c.h.b16 %v3528
      %v3683 = vunpack.c.l.b16 %v3529
      %v3684 = vunpack.c.h.b16 %v3529
      %v3685 = vunpack.c.l.b16 %v3530
      %v3686 = vunpack.c.h.b16 %v3530
      %v3687 = vunpack.c.l.b16 %v3531
      %v3688 = vunpack.c.h.b16 %v3531
      %v3689 = vunpack.c.l.b16 %v3532
      %v3690 = vunpack.c.h.b16 %v3532
      %v3691 = vunpack.c.l.b16 %v3533
      %v3692 = vunpack.c.h.b16 %v3533
      %v3693 = vunpack.c.l.b16 %v3534
      %v3694 = vunpack.c.h.b16 %v3534
      %v3695 = vunpack.c.l.b16 %v3535
      %v3696 = vunpack.c.h.b16 %v3535
      %v3697 = vunpack.c.l.b16 %v3536
      %v3698 = vunpack.c.h.b16 %v3536
      %v3699 = vunpack.c.l.b16 %v3537
      %v3700 = vunpack.c.h.b16 %v3537
      %v3701 = vunpack.c.l.b16 %v3538
      %v3702 = vunpack.c.h.b16 %v3538
      %v3703 = vunpack.c.l.b16 %v3539
      %v3704 = vunpack.c.h.b16 %v3539
      %v3705 = vunpack.c.l.b16 %v3540
      %v3706 = vunpack.c.h.b16 %v3540
      %v3707 = vunpack.c.l.b16 %v3541
      %v3708 = vunpack.c.h.b16 %v3541
      %v3709 = vunpack.c.l.b16 %v3542
      %v3710 = vunpack.c.h.b16 %v3542
      %v3711 = vpack.c.b16 %v3607, %v3603
      %v3712 = vpack.c.b16 %v3608, %v3604
      %v3713 = vpack.c.b16 %v3609, %v3605
      %v3714 = vpack.c.b16 %v3610, %v3606
      %v3715 = vpack.c.b16 %v3615, %v3611
      %v3716 = vpack.c.b16 %v3616, %v3612
      %v3717 = vpack.c.b16 %v3617, %v3613
      %v3718 = vpack.c.b16 %v3618, %v3614
      %v3719 = vpack.c.b16 %v3623, %v3619
      %v3720 = vpack.c.b16 %v3624, %v3620
      %v3721 = vpack.c.b16 %v3625, %v3621
      %v3722 = vpack.c.b16 %v3626, %v3622
      %v3723 = vpack.c.b16 %v3631, %v3627
      %v3724 = vpack.c.b16 %v3632, %v3628
      %v3725 = vpack.c.b16 %v3633, %v3629
      %v3726 = vpack.c.b16 %v3634, %v3630
      %v3727 = vpack.c.b16 %v3639, %v3635
      %v3728 = vpack.c.b16 %v3640, %v3636
      %v3729 = vpack.c.b16 %v3641, %v3637
      %v3730 = vpack.c.b16 %v3642, %v3638
      %v3731 = vpack.c.b16 %v3647, %v3643
      %v3732 = vpack.c.b16 %v3648, %v3644
      %v3733 = vpack.c.b16 %v3649, %v3645
      %v3734 = vpack.c.b16 %v3650, %v3646
      %v3735 = vpack.c.b16 %v3655, %v3651
      %v3736 = vpack.c.b16 %v3656, %v3652
      %v3737 = vpack.c.b16 %v3657, %v3653
      %v3738 = vpack.c.b16 %v3658, %v3654
      %v3739 = vpack.c.b16 %v3663, %v3659
      %v3740 = vpack.c.b16 %v3664, %v3660
      %v3741 = vpack.c.b16 %v3665, %v3661
      %v3742 = vpack.c.b16 %v3666, %v3662
      %v3743 = vpack.c.b16 %v3671, %v3667
      %v3744 = vpack.c.b16 %v3672, %v3668
      %v3745 = vpack.c.b16 %v3673, %v3669
      %v3746 = vpack.c.b16 %v3674, %v3670
      %v3747 = vpack.c.b16 %v3679, %v3675
      %v3748 = vpack.c.b16 %v3680, %v3676
      %v3749 = vpack.c.b16 %v3681, %v3677
      %v3750 = vpack.c.b16 %v3682, %v3678
      %v3751 = vpack.c.b16 %v3687, %v3683
      %v3752 = vpack.c.b16 %v3688, %v3684
      %v3753 = vpack.c.b16 %v3689, %v3685
      %v3754 = vpack.c.b16 %v3690, %v3686
      %v3755 = vpack.c.b16 %v3695, %v3691
      %v3756 = vpack.c.b16 %v3696, %v3692
      %v3757 = vpack.c.b16 %v3697, %v3693
      %v3758 = vpack.c.b16 %v3698, %v3694
      %v3759 = vpack.c.b16 %v3703, %v3699
      %v3760 = vpack.c.b16 %v3704, %v3700
      %v3761 = vpack.c.b16 %v3705, %v3701
      %v3762 = vpack.c.b16 %v3706, %v3702
      %v3763 = vpack.c.b16 %v3707, %v3707
      %v3764 = vpack.c.b16 %v3708, %v3708
      %v3765 = vpack.c.b16 %v3709, %v3709
      %v3766 = vpack.c.b16 %v3710, %v3710
      %v3820 = vsel %vm1973, %v3547, 0
      %v3823 = vsel %vm1977, %v3763, 0
      %v3826 = vsel %vm1977, %v3764, 0
      %v3829 = vsel %vm1977, %v3765, 0
      %v3832 = vsel %vm1977, %v3766, 0
      %3834 = vmatprep.subr.bf16.mxu0 %v3712
      %3835 = vmatpush1.bf16.msra.mxu0 %v3711
      %3836 = vmatprep.subr.bf16.mxu0 %v3716
      %3837 = vmatpush1.bf16.msra.mxu0 %v3715
      %3838 = vmatprep.subr.bf16.mxu0 %v3720
      %3839 = vmatpush1.bf16.msra.mxu0 %v3719
      %3840 = vmatprep.subr.bf16.mxu0 %v3724
      %3841 = vmatpush1.bf16.msra.mxu0 %v3723
      %3842 = vmatprep.subr.bf16.mxu0 %v3728
      %3843 = vmatpush1.bf16.msra.mxu0 %v3727
      %3844 = vmatprep.subr.bf16.mxu0 %v3732
      %3845 = vmatpush1.bf16.msra.mxu0 %v3731
      %3846 = vmatprep.subr.bf16.mxu0 %v3736
      %3847 = vmatpush1.bf16.msra.mxu0 %v3735
      %3848 = vmatprep.subr.bf16.mxu0 %v3740
      %3849 = vmatpush1.bf16.msra.mxu0 %v3739
      %3850 = vmatprep.subr.bf16.mxu0 %v3744
      %3851 = vmatpush1.bf16.msra.mxu0 %v3743
      %3852 = vmatprep.subr.bf16.mxu0 %v3748
      %3853 = vmatpush1.bf16.msra.mxu0 %v3747
      %3854 = vmatprep.subr.bf16.mxu0 %v3752
      %3855 = vmatpush1.bf16.msra.mxu0 %v3751
      %3856 = vmatprep.subr.bf16.mxu0 %v3756
      %3857 = vmatpush1.bf16.msra.mxu0 %v3755
      %3858 = vmatprep.subr.bf16.mxu0 %v3760
      %3859 = vmatpush1.bf16.msra.mxu0 %v3759
      %3860 = vmatprep.subr.bf16.mxu0 %v3826
      %3861 = vmatpush1.bf16.msra.mxu0 %v3823
      %3862 = vmatprep.subr.bf16.mxu0 0
      %3863 = vmatpush1.bf16.msra.mxu0 0
      %3864 = vmatprep.subr.bf16.mxu0 0
      %3865 = vmatpush1.bf16.msra.mxu0 0
      %3866 = vmatprep.mubr.bf16.mxu0 %v3820
      %3867 = vmatmul.mubr.bf16.gmra.mrb[0].mxu0 %v3546
      %v3868 = vpop.f32.mrb[0].mxu0
      %v3869 = vadd.f32 0.0, %v3868
      %v3870 = vpop.f32.mrb[0].mxu0
      %v3871 = vadd.f32 0.0, %v3870
      %v3872 = vpop.f32.mrb[0].mxu0
      %v3873 = vpop.f32.mrb[0].mxu0
      %3874 = vdwg.mxu0
      %3875 = vmatprep.subr.bf16.mxu0 %v3714
      %3876 = vmatpush1.bf16.msra.mxu0 %v3713
      %3877 = vmatprep.subr.bf16.mxu0 %v3718
      %3878 = vmatpush1.bf16.msra.mxu0 %v3717
      %3879 = vmatprep.subr.bf16.mxu0 %v3722
      %3880 = vmatpush1.bf16.msra.mxu0 %v3721
      %3881 = vmatprep.subr.bf16.mxu0 %v3726
      %3882 = vmatpush1.bf16.msra.mxu0 %v3725
      %3883 = vmatprep.subr.bf16.mxu0 %v3730
      %3884 = vmatpush1.bf16.msra.mxu0 %v3729
      %3885 = vmatprep.subr.bf16.mxu0 %v3734
      %3886 = vmatpush1.bf16.msra.mxu0 %v3733
      %3887 = vmatprep.subr.bf16.mxu0 %v3738
      %3888 = vmatpush1.bf16.msra.mxu0 %v3737
      %3889 = vmatprep.subr.bf16.mxu0 %v3742
      %3890 = vmatpush1.bf16.msra.mxu0 %v3741
      %3891 = vmatprep.subr.bf16.mxu0 %v3746
      %3892 = vmatpush1.bf16.msra.mxu0 %v3745
      %3893 = vmatprep.subr.bf16.mxu0 %v3750
      %3894 = vmatpush1.bf16.msra.mxu0 %v3749
      %3895 = vmatprep.subr.bf16.mxu0 %v3754
      %3896 = vmatpush1.bf16.msra.mxu0 %v3753
      %3897 = vmatprep.subr.bf16.mxu0 %v3758
      %3898 = vmatpush1.bf16.msra.mxu0 %v3757
      %3899 = vmatprep.subr.bf16.mxu0 %v3762
      %3900 = vmatpush1.bf16.msra.mxu0 %v3761
      %3901 = vmatprep.subr.bf16.mxu0 %v3832
      %3902 = vmatpush1.bf16.msra.mxu0 %v3829
      %3903 = vmatprep.subr.bf16.mxu0 0
      %3904 = vmatpush1.bf16.msra.mxu0 0
      %3905 = vmatprep.subr.bf16.mxu0 0
      %3906 = vmatpush1.bf16.msra.mxu0 0
      %3907 = vmatprep.mubr.bf16.mxu0 %v3820
      %3908 = vmatmul.mubr.bf16.gmra.mrb[0].mxu0 %v3546
      %v3909 = vpop.f32.mrb[0].mxu0
      %v3910 = vadd.f32 0.0, %v3909
      %v3911 = vpop.f32.mrb[0].mxu0
      %v3912 = vadd.f32 0.0, %v3911
      %v3913 = vpop.f32.mrb[0].mxu0
      %v3914 = vpop.f32.mrb[0].mxu0
      %3915 = vdwg.mxu0
      %v3916 = vadd.f32 %v3869, %v3871
      %v3917 = vadd.f32 %v3916, %v3910
      %v3918 = vadd.f32 %v3917, %v3912
      %3919 = vadd.xlane.f32.xlu0 %v3918
      %v3920 = vpop.xlane.xlu0 %3919
      %v3921 = vmul.f32 %v3920, 0.001953125
      %v3922 = vmul.f32 %v3869, %v3869
      %v3923 = vmul.f32 %v3871, %v3871
      %v3924 = vmul.f32 %v3910, %v3910
      %v3925 = vmul.f32 %v3912, %v3912
      %v3926 = vadd.f32 %v3922, %v3923
      %v3927 = vadd.f32 %v3926, %v3924
      %v3928 = vadd.f32 %v3927, %v3925
      %3929 = vadd.xlane.f32.xlu0 %v3928
      %v3930 = vpop.xlane.xlu0 %3929
      %v3931 = vmul.f32 %v3930, 0.001953125
      %v3932 = vmul.f32 %v3921, %v3921
      %v3933 = vsub.f32 %v3931, %v3932
      %v3934 = vmax.f32 %v3933, 0.0
      %v3935 = vadd.f32 %v3934, 1e-05
      %v3936 = vrsqrt.pop %v3935
      %v3937 = vmul.f32 %v231, %v3936
      %v3938 = vmul.f32 %v3921, %v3937
      %3940 = vrot.lane.b32.xlu0 %v3938, 1
      %v3941 = vpop.permute.xlu0 %3940
      %v3943 = vsub.f32 %v231, %v3941
      %3945 = vset.pattern.permute.xlu0 0
      %3946 = vperm.xlu0 %3945, %v3937
      %v3947 = vpop.permute.xlu0 %3946
      %v3949 = vmul.f32 %v3869, %v3947
      %v3950 = vmul.f32 %v3871, %v3947
      %v3951 = vmul.f32 %v3910, %v3947
      %v3952 = vmul.f32 %v3912, %v3947
      %3954 = vset.pattern.permute.xlu0 1
      %3955 = vperm.xlu0 %3954, %v3943
      %v3956 = vpop.permute.xlu0 %3955
      %v3958 = vadd.f32 %v3949, %v3956
      %v3959 = vadd.f32 %v3950, %v3956
      %v3960 = vadd.f32 %v3951, %v3956
      %v3961 = vadd.f32 %v3952, %v3956
      %v3962 = vadd.f32 %v226, %v3958
      %v3963 = vadd.f32 %v227, %v3959
      %v3964 = vadd.f32 %v228, %v3960
      %v3965 = vadd.f32 %v229, %v3961
      %v3966 = vmax.f32 %v3962, 0.0
      %v3967 = vmax.f32 %v3963, 0.0
      %v3968 = vmax.f32 %v3964, 0.0
      %v3969 = vmax.f32 %v3965, 0.0
      %3970 = vst [vmem:[%s224] sm:$0xff] %v3966
      %3971 = vst [vmem:[%s224 + $0x8] sm:$0xff] %v3967
      %3972 = vst [vmem:[%s224 + $0x10] sm:$0xff] %v3968
      %3973 = vst [vmem:[%s224 + $0x18] sm:$0xff] %v3969
      %p3974 = scmp.lt.s32.totalorder %s16, 1
      %s3975 = scalar_select %p3974, %s16, 1
      %s3976 = smul.addr %s3975, 4
      %s3977 = smul.addr %s3976, 8
      %s3978 = scalar_lea.vmem %s5, %s3977
      // Predicated region
      $region41: #{basic_block_3d.1} parent=39 // pred_check
        %p3979 = pneg %p144
      $region42: #{basic_block_3d.1} parent=39 // pred_check_branch
        %3981 = sbr.rel (%p3979) target = $region44
      $region43: #{basic_block_3d.1} parent=39 // pred_region
        _
      $region44: #{basic_block_3d.1} parent=39 // pred_fallthru
        _
    $region40: #{basic_block_3d.1} parent=5 // pred_fallthru
      _
    %p3982 = scmp.le.s32.totalorder 2, %s11
    // Predicated region
    $region45: #{basic_block_3d.1} parent=5 // pred_check
      %p3983 = pneg %p3982
    $region46: #{basic_block_3d.1} parent=5 // pred_check_branch
      %3985 = sbr.rel (%p3983) target = $region48
    $region47: #{basic_block_3d.1} parent=5 // pred_region
      %s3986 = ssub.s32 %s11, 2
      // Predicated region
      $region49: #{basic_block_3d.1} parent=47 // pred_check
        %p3987 = pneg %p150
      $region50: #{basic_block_3d.1} parent=47 // pred_check_branch
        %3989 = sbr.rel (%p3987) target = $region52
      $region51: #{basic_block_3d.1} parent=47 // pred_region
        %p3990 = scmp.lt.s32.totalorder %s17, 1
        %s3991 = scalar_select %p3990, %s17, 1
        %s3992 = smul.addr %s3991, 4
        %s3993 = smul.addr %s3992, 8
        %s3994 = scalar_lea.vmem %s5, %s3993
      $region52: #{basic_block_3d.1} parent=47 // pred_fallthru
        _
    $region48: #{basic_block_3d.1} parent=5 // pred_fallthru
      _
  $region6: #{basic_block_3d.1} parent=0 // loop_footer
    %s15 = sadd.s32 1, %s11
  $region7: #{basic_block_3d.1} parent=0 // loop_footer_branch
    %10 = sbr.rel target = $region3
  $region8: #{basic_block_3d.1} parent=0 // loop_exit
    _

</llo_original>
